<compile_context>
chip_gen: v7x
topology: tpu7x:2x2x1
jax: 0.10.0
libtpu: 0.0.40
codegen_flags: <defaults>
</compile_context>

<pallas_src>
import jax
import jax.numpy as jnp
import numpy as np
from jax import lax
from jax.experimental import pallas as pl
from jax.experimental.pallas import tpu as pltpu

_EPS = 1e-5  # PyTorch BatchNorm2d default eps


def _round_up(v, m):
    return (v + m - 1) // m * m


def _pick_batch_block(n, hw, max_rows=1024):
    """Largest divisor of n keeping M = Bt*H*W moderate and >=2 grid steps if possible."""
    divisors = [d for d in range(1, n + 1) if n % d == 0]
    cands = [d for d in divisors if d * hw <= max_rows] or [1]
    multi = [d for d in cands if n // d >= 2]
    return max(multi) if multi else max(cands)


# ------------------------------ fused kernel -------------------------------- #

def _make_fused_kernel(Bt, H, W, Wp, C, D, Dp, stride, has_conv_shortcut):
    """Builds the fused bottleneck_IR kernel for a (Bt, H, W, C) batch block."""
    s = int(stride)
    Ho = (H - 1) // s + 1   # = floor((H + 2*1 - 3)/s) + 1
    Wo = (W - 1) // s + 1
    M1 = Bt * H * W
    M2 = Bt * Ho * Wo
    f32, bf16 = jnp.float32, jnp.bfloat16

    def kernel(*refs):
        if has_conv_shortcut:
            (x_ref, s1_ref, b1_ref, w1_ref, a_ref, w2_ref, s2_ref, b2_ref,
             wsc_ref, s3_ref, b3_ref, o_ref, xpad_ref, y1pad_ref) = refs
        else:
            (x_ref, s1_ref, b1_ref, w1_ref, a_ref, w2_ref, s2_ref, b2_ref,
             o_ref, xpad_ref, y1pad_ref) = refs

        # ---------------- stage 1: BN1 (folded eval affine) --------------------
        x = x_ref[...]                                      # (Bt, H, W, C) f32
        bnx = x * s1_ref[...] + b1_ref[...]                 # per-channel affine

        # zero only the 1-px halo; the interior is fully overwritten below.
        # (kept per step: scratch is per-TensorCore, so a program_id==0 guard is
        #  not safe once the "parallel" batch axis is sharded across cores.)
        xpad_ref[:, 0:1, :, :] = jnp.zeros((Bt, 1, Wp, C), f32)
        xpad_ref[:, H + 1:H + 2, :, :] = jnp.zeros((Bt, 1, Wp, C), f32)
        xpad_ref[:, :, 0:1, :] = jnp.zeros((Bt, H + 2, 1, C), f32)
        xpad_ref[:, :, W + 1:W + 2, :] = jnp.zeros((Bt, H + 2, 1, C), f32)
        xpad_ref[:, 1:H + 1, 1:W + 1, :] = bnx

        # ------ stage 1: value-level im2col (K = 9*C) -> one MXU matmul ---------
        taps = []
        for kh in range(3):
            for kw in range(3):
                taps.append(xpad_ref[:, kh:kh + H, kw:kw + W, :]
                            .reshape(M1, C).astype(bf16))
        col1 = jnp.concatenate(taps, axis=-1)               # (M1, 9*C) bf16, regs
        y1 = jnp.dot(col1, w1_ref[...], preferred_element_type=f32)   # (M1, Dp)
        y1 = jnp.where(y1 > 0, y1, y1 * a_ref[...])         # PReLU, full-lane vregs

        # ------ stage 2: pad, STRIDED value-level im2col, one MXU matmul --------
        y1pad_ref[:, 0:1, :, :] = jnp.zeros((Bt, 1, Wp, Dp), f32)
        y1pad_ref[:, H + 1:H + 2, :, :] = jnp.zeros((Bt, 1, Wp, Dp), f32)
        y1pad_ref[:, :, 0:1, :] = jnp.zeros((Bt, H + 2, 1, Dp), f32)
        y1pad_ref[:, :, W + 1:W + 2, :] = jnp.zeros((Bt, H + 2, 1, Dp), f32)
        y1pad_ref[:, 1:H + 1, 1:W + 1, :] = y1.reshape(Bt, H, W, Dp)

        taps2 = []
        for kh in range(3):
            for kw in range(3):
                if s == 1:
                    p = y1pad_ref[:, kh:kh + Ho, kw:kw + Wo, :]
                else:
                    # strided conv computed directly at the output positions
                    p = y1pad_ref[:, pl.ds(kh, Ho, stride=s),
                                  pl.ds(kw, Wo, stride=s), :]
                taps2.append(p.reshape(M2, Dp).astype(bf16))
        col2 = jnp.concatenate(taps2, axis=-1)              # (M2, 9*Dp) bf16
        res = jnp.dot(col2, w2_ref[...], preferred_element_type=f32)  # (M2, Dp)
        res = res * s2_ref[...] + b2_ref[...]               # BN2 (folded eval affine)

        # ---------------- fused shortcut + residual add epilogue ----------------
        if s == 1:
            xs = x
        else:
            xs = x_ref[:, pl.ds(0, Ho, stride=s), pl.ds(0, Wo, stride=s), :]
        xs = xs.reshape(M2, C)
        if has_conv_shortcut:                               # Conv2d(1x1, stride) + BN
            sc = jnp.dot(xs.astype(bf16), wsc_ref[...],
                         preferred_element_type=f32)        # (M2, Dp)
            sc = sc * s3_ref[...] + b3_ref[...]
        else:                                               # MaxPool2d(1, stride): identity (C == D)
            sc = xs
            if Dp > C:                                      # padded lanes are sliced off in the wrapper
                sc = jnp.concatenate([sc, jnp.zeros((M2, Dp - C), f32)], axis=-1)

        o_ref[...] = (res + sc).reshape(Bt, Ho, Wo, Dp).astype(o_ref.dtype)

    return kernel


# --------------------------- pallas_call wrapper ----------------------------- #

def _fold_bn(bn):
    gamma, beta, rmean, rvar = bn
    scale = gamma / jnp.sqrt(rvar + _EPS)
    return scale, beta - rmean * scale


def bottleneck_ir_forward_nhwc(x_nhwc, params, stride, batch_block=None):
    """Fused bottleneck_IR forward, NHWC in (f32) / NHWC out (bf16)."""
    N, H, W, C = x_nhwc.shape
    D = params["w1"].shape[3]
    s = int(stride)
    Ho = (H - 1) // s + 1
    Wo = (W - 1) // s + 1
    has_sc = "w_sc" in params

    Dp = _round_up(max(D, 128), 128)            # lane-dense output/channel dim
    Wp = _round_up(W + 2, 8)                    # sublane-aligned padded scratch
    Bt = batch_block or _pick_batch_block(N, H * W)
    assert N % Bt == 0

    f32, bf16 = jnp.float32, jnp.bfloat16
    s1, b1 = _fold_bn(params["bn1"])
    s2, b2 = _fold_bn(params["bn2"])

    def pad_cols(a, cols):                      # zero-pad last dim to `cols`
        return jnp.pad(a, [(0, 0)] * (a.ndim - 1) + [(0, cols - a.shape[-1])])

    # weights in im2col layout; output dim zero-padded to Dp (zero extra MXU cost)
    w1col = pad_cols(params["w1"].reshape(9 * C, D), Dp).astype(bf16)
    w2p = jnp.zeros((3, 3, Dp, Dp), f32).at[:, :, :D, :D].set(params["w2"])
    w2col = w2p.reshape(9 * Dp, Dp).astype(bf16)

    args = [x_nhwc.astype(f32),
            s1.reshape(1, C).astype(f32), b1.reshape(1, C).astype(f32),
            w1col,
            pad_cols(params["alpha"].reshape(1, D), Dp).astype(f32),
            w2col,
            pad_cols(s2.reshape(1, D), Dp).astype(f32),
            pad_cols(b2.reshape(1, D), Dp).astype(f32)]
    in_specs = [
        pl.BlockSpec((Bt, H, W, C), lambda n: (n, 0, 0, 0)),
        pl.BlockSpec((1, C), lambda n: (0, 0)),
        pl.BlockSpec((1, C), lambda n: (0, 0)),
        pl.BlockSpec((9 * C, Dp), lambda n: (0, 0)),
        pl.BlockSpec((1, Dp), lambda n: (0, 0)),
        pl.BlockSpec((9 * Dp, Dp), lambda n: (0, 0)),
        pl.BlockSpec((1, Dp), lambda n: (0, 0)),
        pl.BlockSpec((1, Dp), lambda n: (0, 0)),
    ]
    if has_sc:
        s3, b3 = _fold_bn(params["bn_sc"])
        args += [pad_cols(params["w_sc"].reshape(C, D), Dp).astype(bf16),
                 pad_cols(s3.reshape(1, D), Dp).astype(f32),
                 pad_cols(b3.reshape(1, D), Dp).astype(f32)]
        in_specs += [pl.BlockSpec((C, Dp), lambda n: (0, 0)),
                     pl.BlockSpec((1, Dp), lambda n: (0, 0)),
                     pl.BlockSpec((1, Dp), lambda n: (0, 0))]

    kernel = _make_fused_kernel(Bt, H, W, Wp, C, D, Dp, s, has_sc)
    grid_spec = pltpu.PrefetchScalarGridSpec(
        num_scalar_prefetch=0,
        grid=(N // Bt,),
        in_specs=in_specs,
        out_specs=pl.BlockSpec((Bt, Ho, Wo, Dp), lambda n: (n, 0, 0, 0)),
        scratch_shapes=[
            pltpu.VMEM((Bt, H + 2, Wp, C), f32),     # padded BN1(x)
            pltpu.VMEM((Bt, H + 2, Wp, Dp), f32),    # padded PReLU output (lane-dense)
        ],
    )
    out_padded = pl.pallas_call(
        kernel,
        out_shape=jax.ShapeDtypeStruct((N, Ho, Wo, Dp), bf16),
        grid_spec=grid_spec,
        compiler_params=pltpu.CompilerParams(
            dimension_semantics=("parallel",),
            # raise toward ~96 MiB on v5e/v6e once the H-tile axis exists;
            # keep <=32-48 MiB for the v7x (64 MiB VMEM) build.
            vmem_limit_bytes=32 * 1024 * 1024),
    )(*args)
    return out_padded[..., :D]                  # drop the lane padding


def bottleneck_ir_forward(x_nchw, params, stride, batch_block=None):
    """PyTorch-compatible entry point: NCHW in / NCHW out (f32)."""
    x = jnp.transpose(x_nchw, (0, 2, 3, 1))                 # NCHW -> NHWC
    out = bottleneck_ir_forward_nhwc(x, params, stride, batch_block)
    return jnp.transpose(out, (0, 3, 1, 2)).astype(jnp.float32)


# ------------------------ deterministic parameter init ----------------------- #

def init_params(key, in_channel, depth):
    ks = jax.random.split(key, 8)

    def bn_params(k, c):
        k1, k2, k3, k4 = jax.random.split(k, 4)
        gamma = 1.0 + 0.1 * jax.random.normal(k1, (c,), jnp.float32)
        beta = 0.1 * jax.random.normal(k2, (c,), jnp.float32)
        rmean = 0.1 * jax.random.normal(k3, (c,), jnp.float32)
        rvar = 1.0 + 0.1 * jax.random.uniform(k4, (c,), jnp.float32)
        return (gamma, beta, rmean, rvar)

    p = {
        "bn1": bn_params(ks[0], in_channel),
        "w1": 0.2 * jax.random.normal(ks[1], (3, 3, in_channel, depth), jnp.float32),
        "alpha": 0.25 + 0.05 * jax.random.normal(ks[2], (depth,), jnp.float32),
        "w2": 0.2 * jax.random.normal(ks[3], (3, 3, depth, depth), jnp.float32),
        "bn2": bn_params(ks[4], depth),
    }
    if in_channel != depth:
        p["w_sc"] = 0.2 * jax.random.normal(ks[5], (1, 1, in_channel, depth), jnp.float32)
        p["bn_sc"] = bn_params(ks[6], depth)
    return p


# ---------------------------- pure-JAX reference ------------------------------ #

def reference_forward(x_nchw, params, stride):
    x = jnp.transpose(x_nchw, (0, 2, 3, 1)).astype(jnp.float32)

    def bn(v, bnp):
        g, be, rm, rv = bnp
        return (v - rm) / jnp.sqrt(rv + _EPS) * g + be

    def conv(v, w_hwio, s, pad):
        return lax.conv_general_dilated(
            v, w_hwio, (s, s), [(pad, pad), (pad, pad)],
            dimension_numbers=("NHWC", "HWIO", "NHWC"))

    y = bn(x, params["bn1"])
    y = conv(y, params["w1"], 1, 1)
    y = jnp.where(y > 0, y, params["alpha"] * y)
    y = conv(y, params["w2"], stride, 1)
    y = bn(y, params["bn2"])
    if "w_sc" in params:
        sc = bn(conv(x, params["w_sc"], stride, 0), params["bn_sc"])
    else:
        sc = x[:, ::stride, ::stride, :]
    return jnp.transpose(y + sc, (0, 3, 1, 2))


# ------------------------------------ main ------------------------------------ #

if __name__ == "__main__":
    key = jax.random.PRNGKey(0)
    kx, kp, kx2, kp2 = jax.random.split(key, 4)

    fwd = jax.jit(bottleneck_ir_forward, static_argnums=(2,))

    # Case 1: in_channel != depth -> Conv1x1+BN shortcut, stride 2.
    # N=4 so the batch-block heuristic picks Bt=2 -> grid=(2,) (two parallel steps).
    in_channel, depth, stride = 4, 8, 2
    x = jax.random.normal(kx, (4, in_channel, 16, 16), jnp.float32)
    params = init_params(kp, in_channel, depth)
    out = jax.block_until_ready(fwd(x, params, stride))
    assert out.shape == (4, depth, 8, 8), out.shape
    ref = reference_forward(x, params, stride)
    # bf16 matmul operands + bf16 HBM output (f32 accumulation) -> loose tolerance
    np.testing.assert_allclose(np.asarray(out), np.asarray(ref),
                               rtol=2.5e-2, atol=8e-2)

    # Case 2: in_channel == depth -> MaxPool2d(1, stride) shortcut, stride 1
    # (heuristic picks Bt=1 -> grid=(2,)).
    in_channel2, depth2, stride2 = 8, 8, 1
    x2 = jax.random.normal(kx2, (2, in_channel2, 16, 16), jnp.float32)
    params2 = init_params(kp2, in_channel2, depth2)
    out2 = jax.block_until_ready(fwd(x2, params2, stride2))
    assert out2.shape == (2, depth2, 16, 16), out2.shape
    ref2 = reference_forward(x2, params2, stride2)
    np.testing.assert_allclose(np.asarray(out2), np.asarray(ref2),
                               rtol=2.5e-2, atol=8e-2)

    print("KERNEL_OK")
</pallas_src>

<mosaic_0001>
module attributes {stable_mosaic.version = 11 : i64} {
  func.func @kernel(%arg0: i32, %arg1: memref<2x16x16x4xf32, #tpu.memory_space<vmem>>, %arg2: memref<1x4xf32, #tpu.memory_space<vmem>>, %arg3: memref<1x4xf32, #tpu.memory_space<vmem>>, %arg4: memref<36x128xbf16, #tpu.memory_space<vmem>>, %arg5: memref<1x128xf32, #tpu.memory_space<vmem>>, %arg6: memref<1152x128xbf16, #tpu.memory_space<vmem>>, %arg7: memref<1x128xf32, #tpu.memory_space<vmem>>, %arg8: memref<1x128xf32, #tpu.memory_space<vmem>>, %arg9: memref<4x128xbf16, #tpu.memory_space<vmem>>, %arg10: memref<1x128xf32, #tpu.memory_space<vmem>>, %arg11: memref<1x128xf32, #tpu.memory_space<vmem>>, %arg12: memref<2x8x8x128xbf16, #tpu.memory_space<vmem>>, %arg13: memref<2x18x24x4xf32, #tpu.memory_space<vmem>>, %arg14: memref<2x18x24x128xf32, #tpu.memory_space<vmem>>) attributes {dimension_semantics = [#tpu.dimension_semantics<parallel>], iteration_bounds = array<i64: 2>, scalar_prefetch = 0 : i64, scratch_operands = 2 : i64, tpu.core_type = #tpu.core_type<tc>, window_params = [{transform_indices = @transform_0, window_bounds = array<i64: 2, 16, 16, 4>}, {pipeline_mode = #tpu.pipeline_mode<synchronous>, transform_indices = @transform_1, window_bounds = array<i64: 1, 4>}, {pipeline_mode = #tpu.pipeline_mode<synchronous>, transform_indices = @transform_2, window_bounds = array<i64: 1, 4>}, {pipeline_mode = #tpu.pipeline_mode<synchronous>, transform_indices = @transform_3, window_bounds = array<i64: 36, 128>}, {pipeline_mode = #tpu.pipeline_mode<synchronous>, transform_indices = @transform_4, window_bounds = array<i64: 1, 128>}, {pipeline_mode = #tpu.pipeline_mode<synchronous>, transform_indices = @transform_5, window_bounds = array<i64: 1152, 128>}, {pipeline_mode = #tpu.pipeline_mode<synchronous>, transform_indices = @transform_6, window_bounds = array<i64: 1, 128>}, {pipeline_mode = #tpu.pipeline_mode<synchronous>, transform_indices = @transform_7, window_bounds = array<i64: 1, 128>}, {pipeline_mode = #tpu.pipeline_mode<synchronous>, transform_indices = @transform_8, window_bounds = array<i64: 4, 128>}, {pipeline_mode = #tpu.pipeline_mode<synchronous>, transform_indices = @transform_9, window_bounds = array<i64: 1, 128>}, {pipeline_mode = #tpu.pipeline_mode<synchronous>, transform_indices = @transform_10, window_bounds = array<i64: 1, 128>}, {transform_indices = @transform_11, window_bounds = array<i64: 2, 8, 8, 128>}]} {
    %c0 = arith.constant 0 : index
    %c0_0 = arith.constant 0 : index
    %c0_1 = arith.constant 0 : index
    %c0_2 = arith.constant 0 : index
    %0 = vector.load %arg1[%c0, %c0_0, %c0_1, %c0_2] : memref<2x16x16x4xf32, #tpu.memory_space<vmem>>, vector<2x16x16x4xf32>
    %c0_3 = arith.constant 0 : index
    %c0_4 = arith.constant 0 : index
    %1 = vector.load %arg2[%c0_3, %c0_4] : memref<1x4xf32, #tpu.memory_space<vmem>>, vector<1x4xf32>
    %2 = vector.shape_cast %1 : vector<1x4xf32> to vector<1x1x1x4xf32>
    %3 = vector.broadcast %2 : vector<1x1x1x4xf32> to vector<2x16x16x4xf32>
    %4 = arith.mulf %0, %3 : vector<2x16x16x4xf32>
    %c0_5 = arith.constant 0 : index
    %c0_6 = arith.constant 0 : index
    %5 = vector.load %arg3[%c0_5, %c0_6] : memref<1x4xf32, #tpu.memory_space<vmem>>, vector<1x4xf32>
    %6 = vector.shape_cast %5 : vector<1x4xf32> to vector<1x1x1x4xf32>
    %7 = vector.broadcast %6 : vector<1x1x1x4xf32> to vector<2x16x16x4xf32>
    %8 = arith.addf %4, %7 : vector<2x16x16x4xf32>
    %cst = arith.constant 0.000000e+00 : f32
    %9 = vector.broadcast %cst : f32 to vector<2x1x24x4xf32>
    %c0_7 = arith.constant 0 : index
    %c0_8 = arith.constant 0 : index
    %c0_9 = arith.constant 0 : index
    %c0_10 = arith.constant 0 : index
    %10 = vector.load %arg13[%c0_7, %c0_8, %c0_9, %c0_10] : memref<2x18x24x4xf32, #tpu.memory_space<vmem>>, vector<2x1x24x4xf32>
    tpu.vector_store %arg13[%c0_7, %c0_8, %c0_9, %c0_10], %9 {strides = array<i32>} : memref<2x18x24x4xf32, #tpu.memory_space<vmem>>, vector<2x1x24x4xf32>,
    %cst_11 = arith.constant 0.000000e+00 : f32
    %11 = vector.broadcast %cst_11 : f32 to vector<2x1x24x4xf32>
    %c0_12 = arith.constant 0 : index
    %c17 = arith.constant 17 : index
    %c0_13 = arith.constant 0 : index
    %c0_14 = arith.constant 0 : index
    %12 = vector.load %arg13[%c0_12, %c17, %c0_13, %c0_14] : memref<2x18x24x4xf32, #tpu.memory_space<vmem>>, vector<2x1x24x4xf32>
    tpu.vector_store %arg13[%c0_12, %c17, %c0_13, %c0_14], %11 {strides = array<i32>} : memref<2x18x24x4xf32, #tpu.memory_space<vmem>>, vector<2x1x24x4xf32>,
    %cst_15 = arith.constant 0.000000e+00 : f32
    %13 = vector.broadcast %cst_15 : f32 to vector<2x18x1x4xf32>
    %c0_16 = arith.constant 0 : index
    %c0_17 = arith.constant 0 : index
    %c0_18 = arith.constant 0 : index
    %c0_19 = arith.constant 0 : index
    %14 = vector.load %arg13[%c0_16, %c0_17, %c0_18, %c0_19] : memref<2x18x24x4xf32, #tpu.memory_space<vmem>>, vector<2x18x1x4xf32>
    tpu.vector_store %arg13[%c0_16, %c0_17, %c0_18, %c0_19], %13 {strides = array<i32>} : memref<2x18x24x4xf32, #tpu.memory_space<vmem>>, vector<2x18x1x4xf32>,
    %cst_20 = arith.constant 0.000000e+00 : f32
    %15 = vector.broadcast %cst_20 : f32 to vector<2x18x1x4xf32>
    %c0_21 = arith.constant 0 : index
    %c0_22 = arith.constant 0 : index
    %c17_23 = arith.constant 17 : index
    %c0_24 = arith.constant 0 : index
    %16 = vector.load %arg13[%c0_21, %c0_22, %c17_23, %c0_24] : memref<2x18x24x4xf32, #tpu.memory_space<vmem>>, vector<2x18x1x4xf32>
    tpu.vector_store %arg13[%c0_21, %c0_22, %c17_23, %c0_24], %15 {strides = array<i32>} : memref<2x18x24x4xf32, #tpu.memory_space<vmem>>, vector<2x18x1x4xf32>,
    %c0_25 = arith.constant 0 : index
    %c1 = arith.constant 1 : index
    %c1_26 = arith.constant 1 : index
    %c0_27 = arith.constant 0 : index
    %17 = vector.load %arg13[%c0_25, %c1, %c1_26, %c0_27] : memref<2x18x24x4xf32, #tpu.memory_space<vmem>>, vector<2x16x16x4xf32>
    tpu.vector_store %arg13[%c0_25, %c1, %c1_26, %c0_27], %8 {strides = array<i32>} : memref<2x18x24x4xf32, #tpu.memory_space<vmem>>, vector<2x16x16x4xf32>,
    %c0_28 = arith.constant 0 : index
    %c0_29 = arith.constant 0 : index
    %c0_30 = arith.constant 0 : index
    %c0_31 = arith.constant 0 : index
    %18 = vector.load %arg13[%c0_28, %c0_29, %c0_30, %c0_31] : memref<2x18x24x4xf32, #tpu.memory_space<vmem>>, vector<2x16x16x4xf32>
    %19 = vector.shape_cast %18 : vector<2x16x16x4xf32> to vector<512x4xf32>
    %20 = arith.truncf %19 : vector<512x4xf32> to vector<512x4xbf16>
    %c0_32 = arith.constant 0 : index
    %c0_33 = arith.constant 0 : index
    %c1_34 = arith.constant 1 : index
    %c0_35 = arith.constant 0 : index
    %21 = vector.load %arg13[%c0_32, %c0_33, %c1_34, %c0_35] : memref<2x18x24x4xf32, #tpu.memory_space<vmem>>, vector<2x16x16x4xf32>
    %22 = vector.shape_cast %21 : vector<2x16x16x4xf32> to vector<512x4xf32>
    %23 = arith.truncf %22 : vector<512x4xf32> to vector<512x4xbf16>
    %c0_36 = arith.constant 0 : index
    %c0_37 = arith.constant 0 : index
    %c2 = arith.constant 2 : index
    %c0_38 = arith.constant 0 : index
    %24 = vector.load %arg13[%c0_36, %c0_37, %c2, %c0_38] : memref<2x18x24x4xf32, #tpu.memory_space<vmem>>, vector<2x16x16x4xf32>
    %25 = vector.shape_cast %24 : vector<2x16x16x4xf32> to vector<512x4xf32>
    %26 = arith.truncf %25 : vector<512x4xf32> to vector<512x4xbf16>
    %c0_39 = arith.constant 0 : index
    %c1_40 = arith.constant 1 : index
    %c0_41 = arith.constant 0 : index
    %c0_42 = arith.constant 0 : index
    %27 = vector.load %arg13[%c0_39, %c1_40, %c0_41, %c0_42] : memref<2x18x24x4xf32, #tpu.memory_space<vmem>>, vector<2x16x16x4xf32>
    %28 = vector.shape_cast %27 : vector<2x16x16x4xf32> to vector<512x4xf32>
    %29 = arith.truncf %28 : vector<512x4xf32> to vector<512x4xbf16>
    %c0_43 = arith.constant 0 : index
    %c1_44 = arith.constant 1 : index
    %c1_45 = arith.constant 1 : index
    %c0_46 = arith.constant 0 : index
    %30 = vector.load %arg13[%c0_43, %c1_44, %c1_45, %c0_46] : memref<2x18x24x4xf32, #tpu.memory_space<vmem>>, vector<2x16x16x4xf32>
    %31 = vector.shape_cast %30 : vector<2x16x16x4xf32> to vector<512x4xf32>
    %32 = arith.truncf %31 : vector<512x4xf32> to vector<512x4xbf16>
    %c0_47 = arith.constant 0 : index
    %c1_48 = arith.constant 1 : index
    %c2_49 = arith.constant 2 : index
    %c0_50 = arith.constant 0 : index
    %33 = vector.load %arg13[%c0_47, %c1_48, %c2_49, %c0_50] : memref<2x18x24x4xf32, #tpu.memory_space<vmem>>, vector<2x16x16x4xf32>
    %34 = vector.shape_cast %33 : vector<2x16x16x4xf32> to vector<512x4xf32>
    %35 = arith.truncf %34 : vector<512x4xf32> to vector<512x4xbf16>
    %c0_51 = arith.constant 0 : index
    %c2_52 = arith.constant 2 : index
    %c0_53 = arith.constant 0 : index
    %c0_54 = arith.constant 0 : index
    %36 = vector.load %arg13[%c0_51, %c2_52, %c0_53, %c0_54] : memref<2x18x24x4xf32, #tpu.memory_space<vmem>>, vector<2x16x16x4xf32>
    %37 = vector.shape_cast %36 : vector<2x16x16x4xf32> to vector<512x4xf32>
    %38 = arith.truncf %37 : vector<512x4xf32> to vector<512x4xbf16>
    %c0_55 = arith.constant 0 : index
    %c2_56 = arith.constant 2 : index
    %c1_57 = arith.constant 1 : index
    %c0_58 = arith.constant 0 : index
    %39 = vector.load %arg13[%c0_55, %c2_56, %c1_57, %c0_58] : memref<2x18x24x4xf32, #tpu.memory_space<vmem>>, vector<2x16x16x4xf32>
    %40 = vector.shape_cast %39 : vector<2x16x16x4xf32> to vector<512x4xf32>
    %41 = arith.truncf %40 : vector<512x4xf32> to vector<512x4xbf16>
    %c0_59 = arith.constant 0 : index
    %c2_60 = arith.constant 2 : index
    %c2_61 = arith.constant 2 : index
    %c0_62 = arith.constant 0 : index
    %42 = vector.load %arg13[%c0_59, %c2_60, %c2_61, %c0_62] : memref<2x18x24x4xf32, #tpu.memory_space<vmem>>, vector<2x16x16x4xf32>
    %43 = vector.shape_cast %42 : vector<2x16x16x4xf32> to vector<512x4xf32>
    %44 = arith.truncf %43 : vector<512x4xf32> to vector<512x4xbf16>
    %45 = tpu.concatenate %20, %23, %26, %29, %32, %35, %38, %41, %44 in 1 : vector<512x4xbf16>, vector<512x4xbf16>, vector<512x4xbf16>, vector<512x4xbf16>, vector<512x4xbf16>, vector<512x4xbf16>, vector<512x4xbf16>, vector<512x4xbf16>, vector<512x4xbf16> -> vector<512x36xbf16>
    %c0_63 = arith.constant 0 : index
    %c0_64 = arith.constant 0 : index
    %46 = vector.load %arg4[%c0_63, %c0_64] : memref<36x128xbf16, #tpu.memory_space<vmem>>, vector<36x128xbf16>
    %cst_65 = arith.constant dense<0.000000e+00> : vector<512x128xf32>
    %47 = tpu.matmul %45, %46, %cst_65 {dimension_numbers = #tpu.dot_dimension_numbers<[1], [0], [0], [1], [0, 0, 1, 1], [], []>} : vector<512x36xbf16>, vector<36x128xbf16>, vector<512x128xf32> -> vector<512x128xf32>
    %cst_66 = arith.constant 0.000000e+00 : f32
    %48 = vector.broadcast %cst_66 : f32 to vector<512x128xf32>
    %49 = arith.cmpf ogt, %47, %48 : vector<512x128xf32>
    %c0_67 = arith.constant 0 : index
    %c0_68 = arith.constant 0 : index
    %50 = vector.load %arg5[%c0_67, %c0_68] : memref<1x128xf32, #tpu.memory_space<vmem>>, vector<1x128xf32>
    %51 = vector.broadcast %50 : vector<1x128xf32> to vector<512x128xf32>
    %52 = arith.mulf %47, %51 : vector<512x128xf32>
    %53 = arith.select %49, %47, %52 : vector<512x128xi1>, vector<512x128xf32>
    %cst_69 = arith.constant 0.000000e+00 : f32
    %54 = vector.broadcast %cst_69 : f32 to vector<2x1x24x128xf32>
    %c0_70 = arith.constant 0 : index
    %c0_71 = arith.constant 0 : index
    %c0_72 = arith.constant 0 : index
    %c0_73 = arith.constant 0 : index
    %55 = vector.load %arg14[%c0_70, %c0_71, %c0_72, %c0_73] : memref<2x18x24x128xf32, #tpu.memory_space<vmem>>, vector<2x1x24x128xf32>
    tpu.vector_store %arg14[%c0_70, %c0_71, %c0_72, %c0_73], %54 {strides = array<i32>} : memref<2x18x24x128xf32, #tpu.memory_space<vmem>>, vector<2x1x24x128xf32>,
    %cst_74 = arith.constant 0.000000e+00 : f32
    %56 = vector.broadcast %cst_74 : f32 to vector<2x1x24x128xf32>
    %c0_75 = arith.constant 0 : index
    %c17_76 = arith.constant 17 : index
    %c0_77 = arith.constant 0 : index
    %c0_78 = arith.constant 0 : index
    %57 = vector.load %arg14[%c0_75, %c17_76, %c0_77, %c0_78] : memref<2x18x24x128xf32, #tpu.memory_space<vmem>>, vector<2x1x24x128xf32>
    tpu.vector_store %arg14[%c0_75, %c17_76, %c0_77, %c0_78], %56 {strides = array<i32>} : memref<2x18x24x128xf32, #tpu.memory_space<vmem>>, vector<2x1x24x128xf32>,
    %cst_79 = arith.constant 0.000000e+00 : f32
    %58 = vector.broadcast %cst_79 : f32 to vector<2x18x1x128xf32>
    %c0_80 = arith.constant 0 : index
    %c0_81 = arith.constant 0 : index
    %c0_82 = arith.constant 0 : index
    %c0_83 = arith.constant 0 : index
    %59 = vector.load %arg14[%c0_80, %c0_81, %c0_82, %c0_83] : memref<2x18x24x128xf32, #tpu.memory_space<vmem>>, vector<2x18x1x128xf32>
    tpu.vector_store %arg14[%c0_80, %c0_81, %c0_82, %c0_83], %58 {strides = array<i32>} : memref<2x18x24x128xf32, #tpu.memory_space<vmem>>, vector<2x18x1x128xf32>,
    %cst_84 = arith.constant 0.000000e+00 : f32
    %60 = vector.broadcast %cst_84 : f32 to vector<2x18x1x128xf32>
    %c0_85 = arith.constant 0 : index
    %c0_86 = arith.constant 0 : index
    %c17_87 = arith.constant 17 : index
    %c0_88 = arith.constant 0 : index
    %61 = vector.load %arg14[%c0_85, %c0_86, %c17_87, %c0_88] : memref<2x18x24x128xf32, #tpu.memory_space<vmem>>, vector<2x18x1x128xf32>
    tpu.vector_store %arg14[%c0_85, %c0_86, %c17_87, %c0_88], %60 {strides = array<i32>} : memref<2x18x24x128xf32, #tpu.memory_space<vmem>>, vector<2x18x1x128xf32>,
    %62 = vector.shape_cast %53 : vector<512x128xf32> to vector<2x16x16x128xf32>
    %c0_89 = arith.constant 0 : index
    %c1_90 = arith.constant 1 : index
    %c1_91 = arith.constant 1 : index
    %c0_92 = arith.constant 0 : index
    %63 = vector.load %arg14[%c0_89, %c1_90, %c1_91, %c0_92] : memref<2x18x24x128xf32, #tpu.memory_space<vmem>>, vector<2x16x16x128xf32>
    tpu.vector_store %arg14[%c0_89, %c1_90, %c1_91, %c0_92], %62 {strides = array<i32>} : memref<2x18x24x128xf32, #tpu.memory_space<vmem>>, vector<2x16x16x128xf32>,
    %c0_93 = arith.constant 0 : index
    %c0_94 = arith.constant 0 : index
    %c0_95 = arith.constant 0 : index
    %c0_96 = arith.constant 0 : index
    %64 = tpu.strided_load %arg14[%c0_93, %c0_94, %c0_95, %c0_96] {strides = array<i32: 1, 2, 2, 1>} : memref<2x18x24x128xf32, #tpu.memory_space<vmem>>, vector<2x8x8x128xf32>
    %65 = vector.shape_cast %64 : vector<2x8x8x128xf32> to vector<128x128xf32>
    %66 = arith.truncf %65 : vector<128x128xf32> to vector<128x128xbf16>
    %c0_97 = arith.constant 0 : index
    %c0_98 = arith.constant 0 : index
    %c1_99 = arith.constant 1 : index
    %c0_100 = arith.constant 0 : index
    %67 = tpu.strided_load %arg14[%c0_97, %c0_98, %c1_99, %c0_100] {strides = array<i32: 1, 2, 2, 1>} : memref<2x18x24x128xf32, #tpu.memory_space<vmem>>, vector<2x8x8x128xf32>
    %68 = vector.shape_cast %67 : vector<2x8x8x128xf32> to vector<128x128xf32>
    %69 = arith.truncf %68 : vector<128x128xf32> to vector<128x128xbf16>
    %c0_101 = arith.constant 0 : index
    %c0_102 = arith.constant 0 : index
    %c2_103 = arith.constant 2 : index
    %c0_104 = arith.constant 0 : index
    %70 = tpu.strided_load %arg14[%c0_101, %c0_102, %c2_103, %c0_104] {strides = array<i32: 1, 2, 2, 1>} : memref<2x18x24x128xf32, #tpu.memory_space<vmem>>, vector<2x8x8x128xf32>
    %71 = vector.shape_cast %70 : vector<2x8x8x128xf32> to vector<128x128xf32>
    %72 = arith.truncf %71 : vector<128x128xf32> to vector<128x128xbf16>
    %c0_105 = arith.constant 0 : index
    %c1_106 = arith.constant 1 : index
    %c0_107 = arith.constant 0 : index
    %c0_108 = arith.constant 0 : index
    %73 = tpu.strided_load %arg14[%c0_105, %c1_106, %c0_107, %c0_108] {strides = array<i32: 1, 2, 2, 1>} : memref<2x18x24x128xf32, #tpu.memory_space<vmem>>, vector<2x8x8x128xf32>
    %74 = vector.shape_cast %73 : vector<2x8x8x128xf32> to vector<128x128xf32>
    %75 = arith.truncf %74 : vector<128x128xf32> to vector<128x128xbf16>
    %c0_109 = arith.constant 0 : index
    %c1_110 = arith.constant 1 : index
    %c1_111 = arith.constant 1 : index
    %c0_112 = arith.constant 0 : index
    %76 = tpu.strided_load %arg14[%c0_109, %c1_110, %c1_111, %c0_112] {strides = array<i32: 1, 2, 2, 1>} : memref<2x18x24x128xf32, #tpu.memory_space<vmem>>, vector<2x8x8x128xf32>
    %77 = vector.shape_cast %76 : vector<2x8x8x128xf32> to vector<128x128xf32>
    %78 = arith.truncf %77 : vector<128x128xf32> to vector<128x128xbf16>
    %c0_113 = arith.constant 0 : index
    %c1_114 = arith.constant 1 : index
    %c2_115 = arith.constant 2 : index
    %c0_116 = arith.constant 0 : index
    %79 = tpu.strided_load %arg14[%c0_113, %c1_114, %c2_115, %c0_116] {strides = array<i32: 1, 2, 2, 1>} : memref<2x18x24x128xf32, #tpu.memory_space<vmem>>, vector<2x8x8x128xf32>
    %80 = vector.shape_cast %79 : vector<2x8x8x128xf32> to vector<128x128xf32>
    %81 = arith.truncf %80 : vector<128x128xf32> to vector<128x128xbf16>
    %c0_117 = arith.constant 0 : index
    %c2_118 = arith.constant 2 : index
    %c0_119 = arith.constant 0 : index
    %c0_120 = arith.constant 0 : index
    %82 = tpu.strided_load %arg14[%c0_117, %c2_118, %c0_119, %c0_120] {strides = array<i32: 1, 2, 2, 1>} : memref<2x18x24x128xf32, #tpu.memory_space<vmem>>, vector<2x8x8x128xf32>
    %83 = vector.shape_cast %82 : vector<2x8x8x128xf32> to vector<128x128xf32>
    %84 = arith.truncf %83 : vector<128x128xf32> to vector<128x128xbf16>
    %c0_121 = arith.constant 0 : index
    %c2_122 = arith.constant 2 : index
    %c1_123 = arith.constant 1 : index
    %c0_124 = arith.constant 0 : index
    %85 = tpu.strided_load %arg14[%c0_121, %c2_122, %c1_123, %c0_124] {strides = array<i32: 1, 2, 2, 1>} : memref<2x18x24x128xf32, #tpu.memory_space<vmem>>, vector<2x8x8x128xf32>
    %86 = vector.shape_cast %85 : vector<2x8x8x128xf32> to vector<128x128xf32>
    %87 = arith.truncf %86 : vector<128x128xf32> to vector<128x128xbf16>
    %c0_125 = arith.constant 0 : index
    %c2_126 = arith.constant 2 : index
    %c2_127 = arith.constant 2 : index
    %c0_128 = arith.constant 0 : index
    %88 = tpu.strided_load %arg14[%c0_125, %c2_126, %c2_127, %c0_128] {strides = array<i32: 1, 2, 2, 1>} : memref<2x18x24x128xf32, #tpu.memory_space<vmem>>, vector<2x8x8x128xf32>
    %89 = vector.shape_cast %88 : vector<2x8x8x128xf32> to vector<128x128xf32>
    %90 = arith.truncf %89 : vector<128x128xf32> to vector<128x128xbf16>
    %91 = tpu.concatenate %66, %69, %72, %75, %78, %81, %84, %87, %90 in 1 : vector<128x128xbf16>, vector<128x128xbf16>, vector<128x128xbf16>, vector<128x128xbf16>, vector<128x128xbf16>, vector<128x128xbf16>, vector<128x128xbf16>, vector<128x128xbf16>, vector<128x128xbf16> -> vector<128x1152xbf16>
    %c0_129 = arith.constant 0 : index
    %c0_130 = arith.constant 0 : index
    %92 = vector.load %arg6[%c0_129, %c0_130] : memref<1152x128xbf16, #tpu.memory_space<vmem>>, vector<1152x128xbf16>
    %cst_131 = arith.constant dense<0.000000e+00> : vector<128x128xf32>
    %93 = tpu.matmul %91, %92, %cst_131 {dimension_numbers = #tpu.dot_dimension_numbers<[1], [0], [0], [1], [0, 0, 1, 1], [], []>} : vector<128x1152xbf16>, vector<1152x128xbf16>, vector<128x128xf32> -> vector<128x128xf32>
    %c0_132 = arith.constant 0 : index
    %c0_133 = arith.constant 0 : index
    %94 = vector.load %arg7[%c0_132, %c0_133] : memref<1x128xf32, #tpu.memory_space<vmem>>, vector<1x128xf32>
    %95 = vector.broadcast %94 : vector<1x128xf32> to vector<128x128xf32>
    %96 = arith.mulf %93, %95 : vector<128x128xf32>
    %c0_134 = arith.constant 0 : index
    %c0_135 = arith.constant 0 : index
    %97 = vector.load %arg8[%c0_134, %c0_135] : memref<1x128xf32, #tpu.memory_space<vmem>>, vector<1x128xf32>
    %98 = vector.broadcast %97 : vector<1x128xf32> to vector<128x128xf32>
    %99 = arith.addf %96, %98 : vector<128x128xf32>
    %c0_136 = arith.constant 0 : index
    %c0_137 = arith.constant 0 : index
    %c0_138 = arith.constant 0 : index
    %c0_139 = arith.constant 0 : index
    %100 = tpu.strided_load %arg1[%c0_136, %c0_137, %c0_138, %c0_139] {strides = array<i32: 1, 2, 2, 1>} : memref<2x16x16x4xf32, #tpu.memory_space<vmem>>, vector<2x8x8x4xf32>
    %101 = vector.shape_cast %100 : vector<2x8x8x4xf32> to vector<128x4xf32>
    %102 = arith.truncf %101 : vector<128x4xf32> to vector<128x4xbf16>
    %c0_140 = arith.constant 0 : index
    %c0_141 = arith.constant 0 : index
    %103 = vector.load %arg9[%c0_140, %c0_141] : memref<4x128xbf16, #tpu.memory_space<vmem>>, vector<4x128xbf16>
    %cst_142 = arith.constant dense<0.000000e+00> : vector<128x128xf32>
    %104 = tpu.matmul %102, %103, %cst_142 {dimension_numbers = #tpu.dot_dimension_numbers<[1], [0], [0], [1], [0, 0, 1, 1], [], []>} : vector<128x4xbf16>, vector<4x128xbf16>, vector<128x128xf32> -> vector<128x128xf32>
    %c0_143 = arith.constant 0 : index
    %c0_144 = arith.constant 0 : index
    %105 = vector.load %arg10[%c0_143, %c0_144] : memref<1x128xf32, #tpu.memory_space<vmem>>, vector<1x128xf32>
    %106 = vector.broadcast %105 : vector<1x128xf32> to vector<128x128xf32>
    %107 = arith.mulf %104, %106 : vector<128x128xf32>
    %c0_145 = arith.constant 0 : index
    %c0_146 = arith.constant 0 : index
    %108 = vector.load %arg11[%c0_145, %c0_146] : memref<1x128xf32, #tpu.memory_space<vmem>>, vector<1x128xf32>
    %109 = vector.broadcast %108 : vector<1x128xf32> to vector<128x128xf32>
    %110 = arith.addf %107, %109 : vector<128x128xf32>
    %111 = arith.addf %99, %110 : vector<128x128xf32>
    %112 = vector.shape_cast %111 : vector<128x128xf32> to vector<2x8x8x128xf32>
    %113 = arith.truncf %112 : vector<2x8x8x128xf32> to vector<2x8x8x128xbf16>
    %c0_147 = arith.constant 0 : index
    %c0_148 = arith.constant 0 : index
    %c0_149 = arith.constant 0 : index
    %c0_150 = arith.constant 0 : index
    %114 = vector.load %arg12[%c0_147, %c0_148, %c0_149, %c0_150] : memref<2x8x8x128xbf16, #tpu.memory_space<vmem>>, vector<2x8x8x128xbf16>
    tpu.vector_store %arg12[%c0_147, %c0_148, %c0_149, %c0_150], %113 {strides = array<i32>} : memref<2x8x8x128xbf16, #tpu.memory_space<vmem>>, vector<2x8x8x128xbf16>,
    return
  }
  func.func @transform_0(%arg0: i32) -> (i32, i32, i32, i32) {
    %c0_i32 = arith.constant 0 : i32
    %c0_i32_0 = arith.constant 0 : i32
    %c0_i32_1 = arith.constant 0 : i32
    %c0_i32_2 = arith.constant 0 : i32
    return %arg0, %c0_i32, %c0_i32_0, %c0_i32_1 : i32, i32, i32, i32
  }
  func.func @transform_1(%arg0: i32) -> (i32, i32) {
    %c0_i32 = arith.constant 0 : i32
    %c0_i32_0 = arith.constant 0 : i32
    %c0_i32_1 = arith.constant 0 : i32
    return %c0_i32, %c0_i32_0 : i32, i32
  }
  func.func @transform_2(%arg0: i32) -> (i32, i32) {
    %c0_i32 = arith.constant 0 : i32
    %c0_i32_0 = arith.constant 0 : i32
    %c0_i32_1 = arith.constant 0 : i32
    return %c0_i32, %c0_i32_0 : i32, i32
  }
  func.func @transform_3(%arg0: i32) -> (i32, i32) {
    %c0_i32 = arith.constant 0 : i32
    %c0_i32_0 = arith.constant 0 : i32
    %c0_i32_1 = arith.constant 0 : i32
    return %c0_i32, %c0_i32_0 : i32, i32
  }
  func.func @transform_4(%arg0: i32) -> (i32, i32) {
    %c0_i32 = arith.constant 0 : i32
    %c0_i32_0 = arith.constant 0 : i32
    %c0_i32_1 = arith.constant 0 : i32
    return %c0_i32, %c0_i32_0 : i32, i32
  }
  func.func @transform_5(%arg0: i32) -> (i32, i32) {
    %c0_i32 = arith.constant 0 : i32
    %c0_i32_0 = arith.constant 0 : i32
    %c0_i32_1 = arith.constant 0 : i32
    return %c0_i32, %c0_i32_0 : i32, i32
  }
  func.func @transform_6(%arg0: i32) -> (i32, i32) {
    %c0_i32 = arith.constant 0 : i32
    %c0_i32_0 = arith.constant 0 : i32
    %c0_i32_1 = arith.constant 0 : i32
    return %c0_i32, %c0_i32_0 : i32, i32
  }
  func.func @transform_7(%arg0: i32) -> (i32, i32) {
    %c0_i32 = arith.constant 0 : i32
    %c0_i32_0 = arith.constant 0 : i32
    %c0_i32_1 = arith.constant 0 : i32
    return %c0_i32, %c0_i32_0 : i32, i32
  }
  func.func @transform_8(%arg0: i32) -> (i32, i32) {
    %c0_i32 = arith.constant 0 : i32
    %c0_i32_0 = arith.constant 0 : i32
    %c0_i32_1 = arith.constant 0 : i32
    return %c0_i32, %c0_i32_0 : i32, i32
  }
  func.func @transform_9(%arg0: i32) -> (i32, i32) {
    %c0_i32 = arith.constant 0 : i32
    %c0_i32_0 = arith.constant 0 : i32
    %c0_i32_1 = arith.constant 0 : i32
    return %c0_i32, %c0_i32_0 : i32, i32
  }
  func.func @transform_10(%arg0: i32) -> (i32, i32) {
    %c0_i32 = arith.constant 0 : i32
    %c0_i32_0 = arith.constant 0 : i32
    %c0_i32_1 = arith.constant 0 : i32
    return %c0_i32, %c0_i32_0 : i32, i32
  }
  func.func @transform_11(%arg0: i32) -> (i32, i32, i32, i32) {
    %c0_i32 = arith.constant 0 : i32
    %c0_i32_0 = arith.constant 0 : i32
    %c0_i32_1 = arith.constant 0 : i32
    %c0_i32_2 = arith.constant 0 : i32
    return %arg0, %c0_i32, %c0_i32_0, %c0_i32_1 : i32, i32, i32, i32
  }
}

</mosaic_0001>

<llo_original>
// kernel: bottleneck_ir_forward.1
$region0: #{bottleneck_ir_forward.1}
  #allocation0 [shape = 'u32[]', space=smem, size = 0x4, offset = 0x4, fixed_abs, tag = 'smem constant byte address 0x4 - core index']
  #allocation1 [shape = 'u32[144,128]{1,0:T(1,128)}', space=vmem, size = 0x12000, scoped, tag = 'internal scratch']
  #allocation2 [shape = 'f32[2,18,24,4]{3,2,1,0:T(8,128)}', space=vmem, size = 0x6c000, scoped, tag = 'scratch operand']
  #allocation3 [shape = 'f32[2,18,24,128]{3,2,1,0:T(8,128)}', space=vmem, size = 0x6c000, scoped, tag = 'scratch operand']
  %s0 = inlined_call_operand.vmem [shape: f32[4,16,16,4], index: 0, kind: input, shape index: {}]
  %s1 = inlined_call_operand.vmem [shape: f32[1,4], index: 1, kind: input, shape index: {}]
  %s2 = inlined_call_operand.vmem [shape: f32[1,4], index: 2, kind: input, shape index: {}]
  %s3 = inlined_call_operand.vmem [shape: bf16[36,128], index: 3, kind: input, shape index: {}]
  %s4 = inlined_call_operand.vmem [shape: f32[1,128], index: 4, kind: input, shape index: {}]
  %s5 = inlined_call_operand.vmem [shape: bf16[1152,128], index: 5, kind: input, shape index: {}]
  %s6 = inlined_call_operand.vmem [shape: f32[1,128], index: 6, kind: input, shape index: {}]
  %s7 = inlined_call_operand.vmem [shape: f32[1,128], index: 7, kind: input, shape index: {}]
  %s8 = inlined_call_operand.vmem [shape: bf16[4,128], index: 8, kind: input, shape index: {}]
  %s9 = inlined_call_operand.vmem [shape: f32[1,128], index: 9, kind: input, shape index: {}]
  %s10 = inlined_call_operand.vmem [shape: f32[1,128], index: 10, kind: input, shape index: {}]
  %s11 = inlined_call_operand.vmem [shape: bf16[4,8,8,128], index: 11, kind: output, shape index: {}]
  %s12 = sld [smem:[#allocation0]]
  $region77: #{bottleneck_ir_forward.1} parent=0
    _
  %s14 = ssub.s32 1, %s12
  %s15 = scalar_select 0, %s14, %s12
  loop: start=0, step=1, limit=4
  $region2: #{bottleneck_ir_forward.1} parent=0 // loop_pre_header
    _
  $region3: #{bottleneck_ir_forward.1} parent=0 // loop_header
    %s17 = sphi 0, %s21
    %p18 = scmp.ge.s32.totalorder %s17, 4
    %s27 = sphi 0, %s29
    %s30 = sphi 0, %s27
    %s31 = sphi 0, %s30
    %s47 = sphi 0, %s31
    %s51 = sphi 0, %s51
    %s53 = sphi 0, %s51
    %s54 = sphi 0, %s53
    %s68 = sphi 0, %s54
    %s72 = sphi 0, %s72
    %s74 = sphi 0, %s72
    %s75 = sphi 0, %s74
    %s89 = sphi 0, %s75
    %s93 = sphi 0, %s93
    %s95 = sphi 0, %s93
    %s96 = sphi 0, %s95
    %s110 = sphi 0, %s96
    %s114 = sphi 0, %s114
    %s116 = sphi 0, %s114
    %s117 = sphi 0, %s116
    %s131 = sphi 0, %s117
    %s135 = sphi 0, %s135
    %s137 = sphi 0, %s135
    %s138 = sphi 0, %s137
    %s152 = sphi 0, %s138
    %s156 = sphi 0, %s156
    %s158 = sphi 0, %s156
    %s159 = sphi 0, %s158
    %s173 = sphi 0, %s159
    %s177 = sphi 0, %s177
    %s179 = sphi 0, %s177
    %s180 = sphi 0, %s179
    %s194 = sphi 0, %s180
    %s198 = sphi 0, %s198
    %s200 = sphi 0, %s198
    %s201 = sphi 0, %s200
    %s215 = sphi 0, %s201
    %s219 = sphi 0, %s219
    %s221 = sphi 0, %s219
    %s222 = sphi 0, %s221
    %s236 = sphi 0, %s222
    %s240 = sphi 0, %s240
    %s242 = sphi 0, %s240
    %s243 = sphi 0, %s242
    %s257 = sphi 0, %s243
    %s263 = sphi 0, %s265
    %s266 = sphi 0, %s263
    %s267 = sphi 0, %s266
    %s283 = sphi 0, %s267
  $region4: #{bottleneck_ir_forward.1} parent=0 // loop_header_branch
    %20 = sbr.rel (%p18) target = $region8
  $region5: #{bottleneck_ir_forward.1} parent=0 // loop_body
    %s22 = ssub.s32 %s17, 1
    %s23 = ssub.s32 %s17, 2
    %s24 = sadd.s32 %s17, 1
    %s25 = ssub.s32 %s17, %s24
    %p26 = scmp.eq.s32.totalorder %s25, 0
    %s28 = sadd.s32 %s27, 1
    %s29 = scalar_select %p26, %s27, %s28
    %p32 = pneg %p26
    %p33 = scmp.eq.s32.totalorder %s17, 1
    %p34 = por %p32, %p33
    %p35 = scmp.ne.s32.totalorder %s27, %s30
    %p36 = scmp.eq.s32.totalorder %s17, 0
    %p37 = por %p35, %p36
    %p38 = scmp.ne.s32.totalorder %s27, %s30
    %p39 = scmp.eq.s32.totalorder %s22, 1
    %p40 = por %p38, %p39
    %p41 = scmp.ne.s32.totalorder %s30, %s31
    %p42 = scmp.eq.s32.totalorder %s22, 0
    %p43 = por %p41, %p42
    %p44 = scmp.ne.s32.totalorder %s30, %s31
    %p45 = scmp.eq.s32.totalorder %s23, 1
    %p46 = por %p44, %p45
    %p48 = scmp.ne.s32.totalorder %s31, %s47
    %p49 = scmp.eq.s32.totalorder %s23, 0
    %p50 = por %p48, %p49
    %s52 = sadd.s32 %s51, 1
    %p55 = scmp.eq.s32.totalorder %s17, 1
    %p56 = scmp.ne.s32.totalorder %s51, %s53
    %p57 = scmp.eq.s32.totalorder %s17, 0
    %p58 = por %p56, %p57
    %p59 = scmp.ne.s32.totalorder %s51, %s53
    %p60 = scmp.eq.s32.totalorder %s22, 1
    %p61 = por %p59, %p60
    %p62 = scmp.ne.s32.totalorder %s53, %s54
    %p63 = scmp.eq.s32.totalorder %s22, 0
    %p64 = por %p62, %p63
    %p65 = scmp.ne.s32.totalorder %s53, %s54
    %p66 = scmp.eq.s32.totalorder %s23, 1
    %p67 = por %p65, %p66
    %p69 = scmp.ne.s32.totalorder %s54, %s68
    %p70 = scmp.eq.s32.totalorder %s23, 0
    %p71 = por %p69, %p70
    %s73 = sadd.s32 %s72, 1
    %p76 = scmp.eq.s32.totalorder %s17, 1
    %p77 = scmp.ne.s32.totalorder %s72, %s74
    %p78 = scmp.eq.s32.totalorder %s17, 0
    %p79 = por %p77, %p78
    %p80 = scmp.ne.s32.totalorder %s72, %s74
    %p81 = scmp.eq.s32.totalorder %s22, 1
    %p82 = por %p80, %p81
    %p83 = scmp.ne.s32.totalorder %s74, %s75
    %p84 = scmp.eq.s32.totalorder %s22, 0
    %p85 = por %p83, %p84
    %p86 = scmp.ne.s32.totalorder %s74, %s75
    %p87 = scmp.eq.s32.totalorder %s23, 1
    %p88 = por %p86, %p87
    %p90 = scmp.ne.s32.totalorder %s75, %s89
    %p91 = scmp.eq.s32.totalorder %s23, 0
    %p92 = por %p90, %p91
    %s94 = sadd.s32 %s93, 1
    %p97 = scmp.eq.s32.totalorder %s17, 1
    %p98 = scmp.ne.s32.totalorder %s93, %s95
    %p99 = scmp.eq.s32.totalorder %s17, 0
    %p100 = por %p98, %p99
    %p101 = scmp.ne.s32.totalorder %s93, %s95
    %p102 = scmp.eq.s32.totalorder %s22, 1
    %p103 = por %p101, %p102
    %p104 = scmp.ne.s32.totalorder %s95, %s96
    %p105 = scmp.eq.s32.totalorder %s22, 0
    %p106 = por %p104, %p105
    %p107 = scmp.ne.s32.totalorder %s95, %s96
    %p108 = scmp.eq.s32.totalorder %s23, 1
    %p109 = por %p107, %p108
    %p111 = scmp.ne.s32.totalorder %s96, %s110
    %p112 = scmp.eq.s32.totalorder %s23, 0
    %p113 = por %p111, %p112
    %s115 = sadd.s32 %s114, 1
    %p118 = scmp.eq.s32.totalorder %s17, 1
    %p119 = scmp.ne.s32.totalorder %s114, %s116
    %p120 = scmp.eq.s32.totalorder %s17, 0
    %p121 = por %p119, %p120
    %p122 = scmp.ne.s32.totalorder %s114, %s116
    %p123 = scmp.eq.s32.totalorder %s22, 1
    %p124 = por %p122, %p123
    %p125 = scmp.ne.s32.totalorder %s116, %s117
    %p126 = scmp.eq.s32.totalorder %s22, 0
    %p127 = por %p125, %p126
    %p128 = scmp.ne.s32.totalorder %s116, %s117
    %p129 = scmp.eq.s32.totalorder %s23, 1
    %p130 = por %p128, %p129
    %p132 = scmp.ne.s32.totalorder %s117, %s131
    %p133 = scmp.eq.s32.totalorder %s23, 0
    %p134 = por %p132, %p133
    %s136 = sadd.s32 %s135, 1
    %p139 = scmp.eq.s32.totalorder %s17, 1
    %p140 = scmp.ne.s32.totalorder %s135, %s137
    %p141 = scmp.eq.s32.totalorder %s17, 0
    %p142 = por %p140, %p141
    %p143 = scmp.ne.s32.totalorder %s135, %s137
    %p144 = scmp.eq.s32.totalorder %s22, 1
    %p145 = por %p143, %p144
    %p146 = scmp.ne.s32.totalorder %s137, %s138
    %p147 = scmp.eq.s32.totalorder %s22, 0
    %p148 = por %p146, %p147
    %p149 = scmp.ne.s32.totalorder %s137, %s138
    %p150 = scmp.eq.s32.totalorder %s23, 1
    %p151 = por %p149, %p150
    %p153 = scmp.ne.s32.totalorder %s138, %s152
    %p154 = scmp.eq.s32.totalorder %s23, 0
    %p155 = por %p153, %p154
    %s157 = sadd.s32 %s156, 1
    %p160 = scmp.eq.s32.totalorder %s17, 1
    %p161 = scmp.ne.s32.totalorder %s156, %s158
    %p162 = scmp.eq.s32.totalorder %s17, 0
    %p163 = por %p161, %p162
    %p164 = scmp.ne.s32.totalorder %s156, %s158
    %p165 = scmp.eq.s32.totalorder %s22, 1
    %p166 = por %p164, %p165
    %p167 = scmp.ne.s32.totalorder %s158, %s159
    %p168 = scmp.eq.s32.totalorder %s22, 0
    %p169 = por %p167, %p168
    %p170 = scmp.ne.s32.totalorder %s158, %s159
    %p171 = scmp.eq.s32.totalorder %s23, 1
    %p172 = por %p170, %p171
    %p174 = scmp.ne.s32.totalorder %s159, %s173
    %p175 = scmp.eq.s32.totalorder %s23, 0
    %p176 = por %p174, %p175
    %s178 = sadd.s32 %s177, 1
    %p181 = scmp.eq.s32.totalorder %s17, 1
    %p182 = scmp.ne.s32.totalorder %s177, %s179
    %p183 = scmp.eq.s32.totalorder %s17, 0
    %p184 = por %p182, %p183
    %p185 = scmp.ne.s32.totalorder %s177, %s179
    %p186 = scmp.eq.s32.totalorder %s22, 1
    %p187 = por %p185, %p186
    %p188 = scmp.ne.s32.totalorder %s179, %s180
    %p189 = scmp.eq.s32.totalorder %s22, 0
    %p190 = por %p188, %p189
    %p191 = scmp.ne.s32.totalorder %s179, %s180
    %p192 = scmp.eq.s32.totalorder %s23, 1
    %p193 = por %p191, %p192
    %p195 = scmp.ne.s32.totalorder %s180, %s194
    %p196 = scmp.eq.s32.totalorder %s23, 0
    %p197 = por %p195, %p196
    %s199 = sadd.s32 %s198, 1
    %p202 = scmp.eq.s32.totalorder %s17, 1
    %p203 = scmp.ne.s32.totalorder %s198, %s200
    %p204 = scmp.eq.s32.totalorder %s17, 0
    %p205 = por %p203, %p204
    %p206 = scmp.ne.s32.totalorder %s198, %s200
    %p207 = scmp.eq.s32.totalorder %s22, 1
    %p208 = por %p206, %p207
    %p209 = scmp.ne.s32.totalorder %s200, %s201
    %p210 = scmp.eq.s32.totalorder %s22, 0
    %p211 = por %p209, %p210
    %p212 = scmp.ne.s32.totalorder %s200, %s201
    %p213 = scmp.eq.s32.totalorder %s23, 1
    %p214 = por %p212, %p213
    %p216 = scmp.ne.s32.totalorder %s201, %s215
    %p217 = scmp.eq.s32.totalorder %s23, 0
    %p218 = por %p216, %p217
    %s220 = sadd.s32 %s219, 1
    %p223 = scmp.eq.s32.totalorder %s17, 1
    %p224 = scmp.ne.s32.totalorder %s219, %s221
    %p225 = scmp.eq.s32.totalorder %s17, 0
    %p226 = por %p224, %p225
    %p227 = scmp.ne.s32.totalorder %s219, %s221
    %p228 = scmp.eq.s32.totalorder %s22, 1
    %p229 = por %p227, %p228
    %p230 = scmp.ne.s32.totalorder %s221, %s222
    %p231 = scmp.eq.s32.totalorder %s22, 0
    %p232 = por %p230, %p231
    %p233 = scmp.ne.s32.totalorder %s221, %s222
    %p234 = scmp.eq.s32.totalorder %s23, 1
    %p235 = por %p233, %p234
    %p237 = scmp.ne.s32.totalorder %s222, %s236
    %p238 = scmp.eq.s32.totalorder %s23, 0
    %p239 = por %p237, %p238
    %s241 = sadd.s32 %s240, 1
    %p244 = scmp.eq.s32.totalorder %s17, 1
    %p245 = scmp.ne.s32.totalorder %s240, %s242
    %p246 = scmp.eq.s32.totalorder %s17, 0
    %p247 = por %p245, %p246
    %p248 = scmp.ne.s32.totalorder %s240, %s242
    %p249 = scmp.eq.s32.totalorder %s22, 1
    %p250 = por %p248, %p249
    %p251 = scmp.ne.s32.totalorder %s242, %s243
    %p252 = scmp.eq.s32.totalorder %s22, 0
    %p253 = por %p251, %p252
    %p254 = scmp.ne.s32.totalorder %s242, %s243
    %p255 = scmp.eq.s32.totalorder %s23, 1
    %p256 = por %p254, %p255
    %p258 = scmp.ne.s32.totalorder %s243, %s257
    %p259 = scmp.eq.s32.totalorder %s23, 0
    %p260 = por %p258, %p259
    %s261 = ssub.s32 %s17, %s24
    %p262 = scmp.eq.s32.totalorder %s261, 0
    %s264 = sadd.s32 %s263, 1
    %s265 = scalar_select %p262, %s263, %s264
    %p268 = pneg %p262
    %p269 = scmp.eq.s32.totalorder %s17, 1
    %p270 = por %p268, %p269
    %p271 = scmp.ne.s32.totalorder %s263, %s266
    %p272 = scmp.eq.s32.totalorder %s17, 0
    %p273 = por %p271, %p272
    %p274 = scmp.ne.s32.totalorder %s263, %s266
    %p275 = scmp.eq.s32.totalorder %s22, 1
    %p276 = por %p274, %p275
    %p277 = scmp.ne.s32.totalorder %s266, %s267
    %p278 = scmp.eq.s32.totalorder %s22, 0
    %p279 = por %p277, %p278
    %p280 = scmp.ne.s32.totalorder %s266, %s267
    %p281 = scmp.eq.s32.totalorder %s23, 1
    %p282 = por %p280, %p281
    %p284 = scmp.ne.s32.totalorder %s267, %s283
    %p285 = scmp.eq.s32.totalorder %s23, 0
    %p286 = por %p284, %p285
    %p287 = scmp.le.s32.totalorder 1, %s17
    %p288 = scmp.lt.s32.totalorder %s17, 3
    %p289 = pnand %p287, %p288
    %p290 = pneg %p289
    // Predicated region
    $region9: #{bottleneck_ir_forward.1} parent=5 // pred_check
      _
    $region10: #{bottleneck_ir_forward.1} parent=5 // pred_check_branch
      %292 = sbr.rel (%p289) target = $region12
    $region11: #{bottleneck_ir_forward.1} parent=5 // pred_region
      %s293 = ssub.s32 %s17, 1
      // Predicated region
      $region13: #{bottleneck_ir_forward.1} parent=11 // pred_check
        %p294 = pneg %p64
      $region14: #{bottleneck_ir_forward.1} parent=11 // pred_check_branch
        %296 = sbr.rel (%p294) target = $region16
      $region15: #{bottleneck_ir_forward.1} parent=11 // pred_region
        _
      $region16: #{bottleneck_ir_forward.1} parent=11 // pred_fallthru
        _
      // Predicated region
      $region17: #{bottleneck_ir_forward.1} parent=11 // pred_check
        %p297 = pneg %p85
      $region18: #{bottleneck_ir_forward.1} parent=11 // pred_check_branch
        %299 = sbr.rel (%p297) target = $region20
      $region19: #{bottleneck_ir_forward.1} parent=11 // pred_region
        _
      $region20: #{bottleneck_ir_forward.1} parent=11 // pred_fallthru
        _
      // Predicated region
      $region21: #{bottleneck_ir_forward.1} parent=11 // pred_check
        %p300 = pneg %p106
      $region22: #{bottleneck_ir_forward.1} parent=11 // pred_check_branch
        %302 = sbr.rel (%p300) target = $region24
      $region23: #{bottleneck_ir_forward.1} parent=11 // pred_region
        _
      $region24: #{bottleneck_ir_forward.1} parent=11 // pred_fallthru
        _
      // Predicated region
      $region25: #{bottleneck_ir_forward.1} parent=11 // pred_check
        %p303 = pneg %p127
      $region26: #{bottleneck_ir_forward.1} parent=11 // pred_check_branch
        %305 = sbr.rel (%p303) target = $region28
      $region27: #{bottleneck_ir_forward.1} parent=11 // pred_region
        _
      $region28: #{bottleneck_ir_forward.1} parent=11 // pred_fallthru
        _
      // Predicated region
      $region29: #{bottleneck_ir_forward.1} parent=11 // pred_check
        %p306 = pneg %p148
      $region30: #{bottleneck_ir_forward.1} parent=11 // pred_check_branch
        %308 = sbr.rel (%p306) target = $region32
      $region31: #{bottleneck_ir_forward.1} parent=11 // pred_region
        _
      $region32: #{bottleneck_ir_forward.1} parent=11 // pred_fallthru
        _
      // Predicated region
      $region33: #{bottleneck_ir_forward.1} parent=11 // pred_check
        %p309 = pneg %p169
      $region34: #{bottleneck_ir_forward.1} parent=11 // pred_check_branch
        %311 = sbr.rel (%p309) target = $region36
      $region35: #{bottleneck_ir_forward.1} parent=11 // pred_region
        _
      $region36: #{bottleneck_ir_forward.1} parent=11 // pred_fallthru
        _
      // Predicated region
      $region37: #{bottleneck_ir_forward.1} parent=11 // pred_check
        %p312 = pneg %p190
      $region38: #{bottleneck_ir_forward.1} parent=11 // pred_check_branch
        %314 = sbr.rel (%p312) target = $region40
      $region39: #{bottleneck_ir_forward.1} parent=11 // pred_region
        _
      $region40: #{bottleneck_ir_forward.1} parent=11 // pred_fallthru
        _
      // Predicated region
      $region41: #{bottleneck_ir_forward.1} parent=11 // pred_check
        %p315 = pneg %p211
      $region42: #{bottleneck_ir_forward.1} parent=11 // pred_check_branch
        %317 = sbr.rel (%p315) target = $region44
      $region43: #{bottleneck_ir_forward.1} parent=11 // pred_region
        _
      $region44: #{bottleneck_ir_forward.1} parent=11 // pred_fallthru
        _
      // Predicated region
      $region45: #{bottleneck_ir_forward.1} parent=11 // pred_check
        %p318 = pneg %p232
      $region46: #{bottleneck_ir_forward.1} parent=11 // pred_check_branch
        %320 = sbr.rel (%p318) target = $region48
      $region47: #{bottleneck_ir_forward.1} parent=11 // pred_region
        _
      $region48: #{bottleneck_ir_forward.1} parent=11 // pred_fallthru
        _
      // Predicated region
      $region49: #{bottleneck_ir_forward.1} parent=11 // pred_check
        %p321 = pneg %p253
      $region50: #{bottleneck_ir_forward.1} parent=11 // pred_check_branch
        %323 = sbr.rel (%p321) target = $region52
      $region51: #{bottleneck_ir_forward.1} parent=11 // pred_region
        _
      $region52: #{bottleneck_ir_forward.1} parent=11 // pred_fallthru
        _
    $region12: #{bottleneck_ir_forward.1} parent=5 // pred_fallthru
      _
    %p324 = scmp.lt.s32.totalorder %s17, 2
    // Predicated region
    $region53: #{bottleneck_ir_forward.1} parent=5 // pred_check
      %p325 = pneg %p324
    $region54: #{bottleneck_ir_forward.1} parent=5 // pred_check_branch
      %327 = sbr.rel (%p325) target = $region56
    $region55: #{bottleneck_ir_forward.1} parent=5 // pred_region
      // Predicated region
      $region57: #{bottleneck_ir_forward.1} parent=55 // pred_check
        %p328 = pneg %p37
      $region58: #{bottleneck_ir_forward.1} parent=55 // pred_check_branch
        %330 = sbr.rel (%p328) target = $region60
      $region59: #{bottleneck_ir_forward.1} parent=55 // pred_region
        %s331 = smul.u32 2, %s17
        %p332 = scmp.lt.s32.totalorder %s331, 3
        %s333 = scalar_select %p332, %s331, 3
        %s334 = smul.addr %s333, 32
        %s335 = smul.addr %s334, 8
        %s336 = scalar_lea.vmem %s0, %s335
        %s337 = smul.u32 2, %s17
      $region60: #{bottleneck_ir_forward.1} parent=55 // pred_fallthru
        _
    $region56: #{bottleneck_ir_forward.1} parent=5 // pred_fallthru
      _
    %p338 = scmp.le.s32.totalorder 1, %s17
    %p339 = scmp.lt.s32.totalorder %s17, 3
    %p340 = pnand %p338, %p339
    %p341 = pneg %p340
    // Predicated region
    $region61: #{bottleneck_ir_forward.1} parent=5 // pred_check
      _
    $region62: #{bottleneck_ir_forward.1} parent=5 // pred_check_branch
      %343 = sbr.rel (%p340) target = $region64
    $region63: #{bottleneck_ir_forward.1} parent=5 // pred_region
      %s344 = ssub.s32 %s17, 1
      %s345 = smul.u32 2, %s22
      %p346 = scmp.lt.s32.totalorder %s345, 3
      %s347 = scalar_select %p346, %s345, 3
      %s348 = smul.addr %s347, 32
      %s349 = smul.addr %s348, 8
      %s350 = scalar_lea.vmem %s0, %s349
      %p351 = pneg %p43
      %p352 = pneg %p40
      %p353 = pneg %p64
      %p354 = pneg %p61
      %p355 = pneg %p85
      %p356 = pneg %p82
      %p357 = pneg %p106
      %p358 = pneg %p103
      %p359 = pneg %p127
      %p360 = pneg %p124
      %p361 = pneg %p148
      %p362 = pneg %p145
      %p363 = pneg %p169
      %p364 = pneg %p166
      %p365 = pneg %p190
      %p366 = pneg %p187
      %p367 = pneg %p211
      %p368 = pneg %p208
      %p369 = pneg %p232
      %p370 = pneg %p229
      %p371 = pneg %p253
      %p372 = pneg %p250
      %p373 = pneg %p279
      %p374 = pneg %p276
      %s375 = smul.u32 2, %s22
      %p376 = scmp.lt.s32.totalorder %s375, 3
      %s377 = scalar_select %p376, %s375, 3
      %s378 = smul.addr %s377, 8
      %s379 = smul.addr %s378, 4
      %s380 = scalar_lea.vmem %s11, %s379
      %s381 = smul.u32 2, %s22
      %p382 = scmp.lt.s32.totalorder %s381, 3
      %s383 = scalar_select %p382, %s381, 3
      %s384 = smul.addr %s383, 32
      %s385 = smul.addr %s384, 8
      %s386 = scalar_lea.vmem %s0, %s385
      %s387 = smul.u32 2, %s22
      %s388 = smul.u32 2, %s22
      %p389 = scmp.lt.s32.totalorder %s388, 3
      %s390 = scalar_select %p389, %s388, 3
      %s391 = smul.addr %s390, 8
      %s392 = smul.addr %s391, 4
      %s393 = scalar_lea.vmem %s11, %s392
      %s394 = smul.u32 2, %s22
      %v396 = vld [vmem:[%s386] sm:$0xff]
      %v397 = vld [vmem:[%s386 + $0x8] sm:$0xff]
      %v398 = vld [vmem:[%s386 + $0x10] sm:$0xff]
      %v399 = vld [vmem:[%s386 + $0x18] sm:$0xff]
      %v400 = vld [vmem:[%s386 + $0x20] sm:$0xff]
      %v401 = vld [vmem:[%s386 + $0x28] sm:$0xff]
      %v402 = vld [vmem:[%s386 + $0x30] sm:$0xff]
      %v403 = vld [vmem:[%s386 + $0x38] sm:$0xff]
      %v404 = vld [vmem:[%s386 + $0x40] sm:$0xff]
      %v405 = vld [vmem:[%s386 + $0x48] sm:$0xff]
      %v406 = vld [vmem:[%s386 + $0x50] sm:$0xff]
      %v407 = vld [vmem:[%s386 + $0x58] sm:$0xff]
      %v408 = vld [vmem:[%s386 + $0x60] sm:$0xff]
      %v409 = vld [vmem:[%s386 + $0x68] sm:$0xff]
      %v410 = vld [vmem:[%s386 + $0x70] sm:$0xff]
      %v411 = vld [vmem:[%s386 + $0x78] sm:$0xff]
      %v412 = vld [vmem:[%s386 + $0x80] sm:$0xff]
      %v413 = vld [vmem:[%s386 + $0x88] sm:$0xff]
      %v414 = vld [vmem:[%s386 + $0x90] sm:$0xff]
      %v415 = vld [vmem:[%s386 + $0x98] sm:$0xff]
      %v416 = vld [vmem:[%s386 + $0xa0] sm:$0xff]
      %v417 = vld [vmem:[%s386 + $0xa8] sm:$0xff]
      %v418 = vld [vmem:[%s386 + $0xb0] sm:$0xff]
      %v419 = vld [vmem:[%s386 + $0xb8] sm:$0xff]
      %v420 = vld [vmem:[%s386 + $0xc0] sm:$0xff]
      %v421 = vld [vmem:[%s386 + $0xc8] sm:$0xff]
      %v422 = vld [vmem:[%s386 + $0xd0] sm:$0xff]
      %v423 = vld [vmem:[%s386 + $0xd8] sm:$0xff]
      %v424 = vld [vmem:[%s386 + $0xe0] sm:$0xff]
      %v425 = vld [vmem:[%s386 + $0xe8] sm:$0xff]
      %v426 = vld [vmem:[%s386 + $0xf0] sm:$0xff]
      %v427 = vld [vmem:[%s386 + $0xf8] sm:$0xff]
      %v428 = vld [vmem:[%s386 + $0x100] sm:$0xff]
      %v429 = vld [vmem:[%s386 + $0x108] sm:$0xff]
      %v430 = vld [vmem:[%s386 + $0x110] sm:$0xff]
      %v431 = vld [vmem:[%s386 + $0x118] sm:$0xff]
      %v432 = vld [vmem:[%s386 + $0x120] sm:$0xff]
      %v433 = vld [vmem:[%s386 + $0x128] sm:$0xff]
      %v434 = vld [vmem:[%s386 + $0x130] sm:$0xff]
      %v435 = vld [vmem:[%s386 + $0x138] sm:$0xff]
      %v436 = vld [vmem:[%s386 + $0x140] sm:$0xff]
      %v437 = vld [vmem:[%s386 + $0x148] sm:$0xff]
      %v438 = vld [vmem:[%s386 + $0x150] sm:$0xff]
      %v439 = vld [vmem:[%s386 + $0x158] sm:$0xff]
      %v440 = vld [vmem:[%s386 + $0x160] sm:$0xff]
      %v441 = vld [vmem:[%s386 + $0x168] sm:$0xff]
      %v442 = vld [vmem:[%s386 + $0x170] sm:$0xff]
      %v443 = vld [vmem:[%s386 + $0x178] sm:$0xff]
      %v444 = vld [vmem:[%s386 + $0x180] sm:$0xff]
      %v445 = vld [vmem:[%s386 + $0x188] sm:$0xff]
      %v446 = vld [vmem:[%s386 + $0x190] sm:$0xff]
      %v447 = vld [vmem:[%s386 + $0x198] sm:$0xff]
      %v448 = vld [vmem:[%s386 + $0x1a0] sm:$0xff]
      %v449 = vld [vmem:[%s386 + $0x1a8] sm:$0xff]
      %v450 = vld [vmem:[%s386 + $0x1b0] sm:$0xff]
      %v451 = vld [vmem:[%s386 + $0x1b8] sm:$0xff]
      %v452 = vld [vmem:[%s386 + $0x1c0] sm:$0xff]
      %v453 = vld [vmem:[%s386 + $0x1c8] sm:$0xff]
      %v454 = vld [vmem:[%s386 + $0x1d0] sm:$0xff]
      %v455 = vld [vmem:[%s386 + $0x1d8] sm:$0xff]
      %v456 = vld [vmem:[%s386 + $0x1e0] sm:$0xff]
      %v457 = vld [vmem:[%s386 + $0x1e8] sm:$0xff]
      %v458 = vld [vmem:[%s386 + $0x1f0] sm:$0xff]
      %v459 = vld [vmem:[%s386 + $0x1f8] sm:$0xff]
      %v460 = vld [vmem:[%s1] sm:$0x1]
      %v462 = vlaneseq
      %v463 = vshrl.u32 %v462, 7
      %v464 = vsub.s32 0, %v463
      %v465 = vrot.slane %v460, %v464
      %v467 = vmul.f32 %v396, %v465
      %v468 = vmul.f32 %v397, %v465
      %v469 = vmul.f32 %v398, %v465
      %v470 = vmul.f32 %v399, %v465
      %v471 = vmul.f32 %v400, %v465
      %v472 = vmul.f32 %v401, %v465
      %v473 = vmul.f32 %v402, %v465
      %v474 = vmul.f32 %v403, %v465
      %v475 = vmul.f32 %v404, %v465
      %v476 = vmul.f32 %v405, %v465
      %v477 = vmul.f32 %v406, %v465
      %v478 = vmul.f32 %v407, %v465
      %v479 = vmul.f32 %v408, %v465
      %v480 = vmul.f32 %v409, %v465
      %v481 = vmul.f32 %v410, %v465
      %v482 = vmul.f32 %v411, %v465
      %v483 = vmul.f32 %v412, %v465
      %v484 = vmul.f32 %v413, %v465
      %v485 = vmul.f32 %v414, %v465
      %v486 = vmul.f32 %v415, %v465
      %v487 = vmul.f32 %v416, %v465
      %v488 = vmul.f32 %v417, %v465
      %v489 = vmul.f32 %v418, %v465
      %v490 = vmul.f32 %v419, %v465
      %v491 = vmul.f32 %v420, %v465
      %v492 = vmul.f32 %v421, %v465
      %v493 = vmul.f32 %v422, %v465
      %v494 = vmul.f32 %v423, %v465
      %v495 = vmul.f32 %v424, %v465
      %v496 = vmul.f32 %v425, %v465
      %v497 = vmul.f32 %v426, %v465
      %v498 = vmul.f32 %v427, %v465
      %v499 = vmul.f32 %v428, %v465
      %v500 = vmul.f32 %v429, %v465
      %v501 = vmul.f32 %v430, %v465
      %v502 = vmul.f32 %v431, %v465
      %v503 = vmul.f32 %v432, %v465
      %v504 = vmul.f32 %v433, %v465
      %v505 = vmul.f32 %v434, %v465
      %v506 = vmul.f32 %v435, %v465
      %v507 = vmul.f32 %v436, %v465
      %v508 = vmul.f32 %v437, %v465
      %v509 = vmul.f32 %v438, %v465
      %v510 = vmul.f32 %v439, %v465
      %v511 = vmul.f32 %v440, %v465
      %v512 = vmul.f32 %v441, %v465
      %v513 = vmul.f32 %v442, %v465
      %v514 = vmul.f32 %v443, %v465
      %v515 = vmul.f32 %v444, %v465
      %v516 = vmul.f32 %v445, %v465
      %v517 = vmul.f32 %v446, %v465
      %v518 = vmul.f32 %v447, %v465
      %v519 = vmul.f32 %v448, %v465
      %v520 = vmul.f32 %v449, %v465
      %v521 = vmul.f32 %v450, %v465
      %v522 = vmul.f32 %v451, %v465
      %v523 = vmul.f32 %v452, %v465
      %v524 = vmul.f32 %v453, %v465
      %v525 = vmul.f32 %v454, %v465
      %v526 = vmul.f32 %v455, %v465
      %v527 = vmul.f32 %v456, %v465
      %v528 = vmul.f32 %v457, %v465
      %v529 = vmul.f32 %v458, %v465
      %v530 = vmul.f32 %v459, %v465
      %v531 = vld [vmem:[%s2] sm:$0x1]
      %v533 = vlaneseq
      %v534 = vshrl.u32 %v533, 7
      %v535 = vsub.s32 0, %v534
      %v536 = vrot.slane %v531, %v535
      %v538 = vadd.f32 %v467, %v536
      %v539 = vadd.f32 %v468, %v536
      %v540 = vadd.f32 %v469, %v536
      %v541 = vadd.f32 %v470, %v536
      %v542 = vadd.f32 %v471, %v536
      %v543 = vadd.f32 %v472, %v536
      %v544 = vadd.f32 %v473, %v536
      %v545 = vadd.f32 %v474, %v536
      %v546 = vadd.f32 %v475, %v536
      %v547 = vadd.f32 %v476, %v536
      %v548 = vadd.f32 %v477, %v536
      %v549 = vadd.f32 %v478, %v536
      %v550 = vadd.f32 %v479, %v536
      %v551 = vadd.f32 %v480, %v536
      %v552 = vadd.f32 %v481, %v536
      %v553 = vadd.f32 %v482, %v536
      %v554 = vadd.f32 %v483, %v536
      %v555 = vadd.f32 %v484, %v536
      %v556 = vadd.f32 %v485, %v536
      %v557 = vadd.f32 %v486, %v536
      %v558 = vadd.f32 %v487, %v536
      %v559 = vadd.f32 %v488, %v536
      %v560 = vadd.f32 %v489, %v536
      %v561 = vadd.f32 %v490, %v536
      %v562 = vadd.f32 %v491, %v536
      %v563 = vadd.f32 %v492, %v536
      %v564 = vadd.f32 %v493, %v536
      %v565 = vadd.f32 %v494, %v536
      %v566 = vadd.f32 %v495, %v536
      %v567 = vadd.f32 %v496, %v536
      %v568 = vadd.f32 %v497, %v536
      %v569 = vadd.f32 %v498, %v536
      %v570 = vadd.f32 %v499, %v536
      %v571 = vadd.f32 %v500, %v536
      %v572 = vadd.f32 %v501, %v536
      %v573 = vadd.f32 %v502, %v536
      %v574 = vadd.f32 %v503, %v536
      %v575 = vadd.f32 %v504, %v536
      %v576 = vadd.f32 %v505, %v536
      %v577 = vadd.f32 %v506, %v536
      %v578 = vadd.f32 %v507, %v536
      %v579 = vadd.f32 %v508, %v536
      %v580 = vadd.f32 %v509, %v536
      %v581 = vadd.f32 %v510, %v536
      %v582 = vadd.f32 %v511, %v536
      %v583 = vadd.f32 %v512, %v536
      %v584 = vadd.f32 %v513, %v536
      %v585 = vadd.f32 %v514, %v536
      %v586 = vadd.f32 %v515, %v536
      %v587 = vadd.f32 %v516, %v536
      %v588 = vadd.f32 %v517, %v536
      %v589 = vadd.f32 %v518, %v536
      %v590 = vadd.f32 %v519, %v536
      %v591 = vadd.f32 %v520, %v536
      %v592 = vadd.f32 %v521, %v536
      %v593 = vadd.f32 %v522, %v536
      %v594 = vadd.f32 %v523, %v536
      %v595 = vadd.f32 %v524, %v536
      %v596 = vadd.f32 %v525, %v536
      %v597 = vadd.f32 %v526, %v536
      %v598 = vadd.f32 %v527, %v536
      %v599 = vadd.f32 %v528, %v536
      %v600 = vadd.f32 %v529, %v536
      %v601 = vadd.f32 %v530, %v536
      %vm602 = vcmask 31744
      %603 = vst.msk [vmem:[#allocation2] sm:$0xff] %vm602, 0.0
      %604 = vst.msk [vmem:[#allocation2 + $0x8] sm:$0xff] %vm602, 0.0
      %605 = vst.msk [vmem:[#allocation2 + $0x10] sm:$0xff] %vm602, 0.0
      %606 = vst.msk [vmem:[#allocation2 + $0x1b0] sm:$0xff] %vm602, 0.0
      %607 = vst.msk [vmem:[#allocation2 + $0x1b8] sm:$0xff] %vm602, 0.0
      %608 = vst.msk [vmem:[#allocation2 + $0x1c0] sm:$0xff] %vm602, 0.0
      %s609 = scalar_lea.vmem [#allocation2], 408
      %610 = vst.msk [vmem:[%s609] sm:$0xff] %vm602, 0.0
      %611 = vst.msk [vmem:[%s609 + $0x8] sm:$0xff] %vm602, 0.0
      %612 = vst.msk [vmem:[%s609 + $0x10] sm:$0xff] %vm602, 0.0
      %613 = vst.msk [vmem:[%s609 + $0x1b0] sm:$0xff] %vm602, 0.0
      %614 = vst.msk [vmem:[%s609 + $0x1b8] sm:$0xff] %vm602, 0.0
      %615 = vst.msk [vmem:[%s609 + $0x1c0] sm:$0xff] %vm602, 0.0
      %vm616 = vcmask 24576
      %617 = vst.msk [vmem:[#allocation2] sm:$0x1] %vm616, 0.0
      %618 = vst.msk [vmem:[#allocation2 + $0x18] sm:$0x1] %vm616, 0.0
      %619 = vst.msk [vmem:[#allocation2 + $0x30] sm:$0x1] %vm616, 0.0
      %620 = vst.msk [vmem:[#allocation2 + $0x48] sm:$0x1] %vm616, 0.0
      %621 = vst.msk [vmem:[#allocation2 + $0x60] sm:$0x1] %vm616, 0.0
      %622 = vst.msk [vmem:[#allocation2 + $0x78] sm:$0x1] %vm616, 0.0
      %623 = vst.msk [vmem:[#allocation2 + $0x90] sm:$0x1] %vm616, 0.0
      %624 = vst.msk [vmem:[#allocation2 + $0xa8] sm:$0x1] %vm616, 0.0
      %625 = vst.msk [vmem:[#allocation2 + $0xc0] sm:$0x1] %vm616, 0.0
      %626 = vst.msk [vmem:[#allocation2 + $0xd8] sm:$0x1] %vm616, 0.0
      %627 = vst.msk [vmem:[#allocation2 + $0xf0] sm:$0x1] %vm616, 0.0
      %628 = vst.msk [vmem:[#allocation2 + $0x108] sm:$0x1] %vm616, 0.0
      %629 = vst.msk [vmem:[#allocation2 + $0x120] sm:$0x1] %vm616, 0.0
      %630 = vst.msk [vmem:[#allocation2 + $0x138] sm:$0x1] %vm616, 0.0
      %631 = vst.msk [vmem:[#allocation2 + $0x150] sm:$0x1] %vm616, 0.0
      %632 = vst.msk [vmem:[#allocation2 + $0x168] sm:$0x1] %vm616, 0.0
      %633 = vst.msk [vmem:[#allocation2 + $0x180] sm:$0x1] %vm616, 0.0
      %634 = vst.msk [vmem:[#allocation2 + $0x198] sm:$0x1] %vm616, 0.0
      %635 = vst.msk [vmem:[#allocation2 + $0x1b0] sm:$0x1] %vm616, 0.0
      %636 = vst.msk [vmem:[#allocation2 + $0x1c8] sm:$0x1] %vm616, 0.0
      %637 = vst.msk [vmem:[#allocation2 + $0x1e0] sm:$0x1] %vm616, 0.0
      %638 = vst.msk [vmem:[#allocation2 + $0x1f8] sm:$0x1] %vm616, 0.0
      %639 = vst.msk [vmem:[#allocation2 + $0x210] sm:$0x1] %vm616, 0.0
      %640 = vst.msk [vmem:[#allocation2 + $0x228] sm:$0x1] %vm616, 0.0
      %641 = vst.msk [vmem:[#allocation2 + $0x240] sm:$0x1] %vm616, 0.0
      %642 = vst.msk [vmem:[#allocation2 + $0x258] sm:$0x1] %vm616, 0.0
      %643 = vst.msk [vmem:[#allocation2 + $0x270] sm:$0x1] %vm616, 0.0
      %644 = vst.msk [vmem:[#allocation2 + $0x288] sm:$0x1] %vm616, 0.0
      %645 = vst.msk [vmem:[#allocation2 + $0x2a0] sm:$0x1] %vm616, 0.0
      %646 = vst.msk [vmem:[#allocation2 + $0x2b8] sm:$0x1] %vm616, 0.0
      %647 = vst.msk [vmem:[#allocation2 + $0x2d0] sm:$0x1] %vm616, 0.0
      %648 = vst.msk [vmem:[#allocation2 + $0x2e8] sm:$0x1] %vm616, 0.0
      %649 = vst.msk [vmem:[#allocation2 + $0x300] sm:$0x1] %vm616, 0.0
      %650 = vst.msk [vmem:[#allocation2 + $0x318] sm:$0x1] %vm616, 0.0
      %651 = vst.msk [vmem:[#allocation2 + $0x330] sm:$0x1] %vm616, 0.0
      %652 = vst.msk [vmem:[#allocation2 + $0x348] sm:$0x1] %vm616, 0.0
      %653 = vst.msk [vmem:[#allocation2 + $0x11] sm:$0x1] %vm616, 0.0
      %654 = vst.msk [vmem:[#allocation2 + $0x29] sm:$0x1] %vm616, 0.0
      %655 = vst.msk [vmem:[#allocation2 + $0x41] sm:$0x1] %vm616, 0.0
      %656 = vst.msk [vmem:[#allocation2 + $0x59] sm:$0x1] %vm616, 0.0
      %657 = vst.msk [vmem:[#allocation2 + $0x71] sm:$0x1] %vm616, 0.0
      %658 = vst.msk [vmem:[#allocation2 + $0x89] sm:$0x1] %vm616, 0.0
      %659 = vst.msk [vmem:[#allocation2 + $0xa1] sm:$0x1] %vm616, 0.0
      %660 = vst.msk [vmem:[#allocation2 + $0xb9] sm:$0x1] %vm616, 0.0
      %661 = vst.msk [vmem:[#allocation2 + $0xd1] sm:$0x1] %vm616, 0.0
      %662 = vst.msk [vmem:[#allocation2 + $0xe9] sm:$0x1] %vm616, 0.0
      %663 = vst.msk [vmem:[#allocation2 + $0x101] sm:$0x1] %vm616, 0.0
      %664 = vst.msk [vmem:[#allocation2 + $0x119] sm:$0x1] %vm616, 0.0
      %665 = vst.msk [vmem:[#allocation2 + $0x131] sm:$0x1] %vm616, 0.0
      %666 = vst.msk [vmem:[#allocation2 + $0x149] sm:$0x1] %vm616, 0.0
      %667 = vst.msk [vmem:[#allocation2 + $0x161] sm:$0x1] %vm616, 0.0
      %668 = vst.msk [vmem:[#allocation2 + $0x179] sm:$0x1] %vm616, 0.0
      %669 = vst.msk [vmem:[#allocation2 + $0x191] sm:$0x1] %vm616, 0.0
      %670 = vst.msk [vmem:[#allocation2 + $0x1a9] sm:$0x1] %vm616, 0.0
      %671 = vst.msk [vmem:[#allocation2 + $0x1c1] sm:$0x1] %vm616, 0.0
      %672 = vst.msk [vmem:[#allocation2 + $0x1d9] sm:$0x1] %vm616, 0.0
      %673 = vst.msk [vmem:[#allocation2 + $0x1f1] sm:$0x1] %vm616, 0.0
      %674 = vst.msk [vmem:[#allocation2 + $0x209] sm:$0x1] %vm616, 0.0
      %675 = vst.msk [vmem:[#allocation2 + $0x221] sm:$0x1] %vm616, 0.0
      %676 = vst.msk [vmem:[#allocation2 + $0x239] sm:$0x1] %vm616, 0.0
      %677 = vst.msk [vmem:[#allocation2 + $0x251] sm:$0x1] %vm616, 0.0
      %678 = vst.msk [vmem:[#allocation2 + $0x269] sm:$0x1] %vm616, 0.0
      %679 = vst.msk [vmem:[#allocation2 + $0x281] sm:$0x1] %vm616, 0.0
      %680 = vst.msk [vmem:[#allocation2 + $0x299] sm:$0x1] %vm616, 0.0
      %681 = vst.msk [vmem:[#allocation2 + $0x2b1] sm:$0x1] %vm616, 0.0
      %682 = vst.msk [vmem:[#allocation2 + $0x2c9] sm:$0x1] %vm616, 0.0
      %683 = vst.msk [vmem:[#allocation2 + $0x2e1] sm:$0x1] %vm616, 0.0
      %684 = vst.msk [vmem:[#allocation2 + $0x2f9] sm:$0x1] %vm616, 0.0
      %685 = vst.msk [vmem:[#allocation2 + $0x311] sm:$0x1] %vm616, 0.0
      %686 = vst.msk [vmem:[#allocation2 + $0x329] sm:$0x1] %vm616, 0.0
      %687 = vst.msk [vmem:[#allocation2 + $0x341] sm:$0x1] %vm616, 0.0
      %688 = vst.msk [vmem:[#allocation2 + $0x359] sm:$0x1] %vm616, 0.0
      %s689 = scalar_lea.vmem [#allocation2], 24
      %690 = vst.msk [vmem:[%s689 + $0x1] sm:$0xff] %vm602, %v538
      %691 = vst.msk [vmem:[%s689 + $0x9] sm:$0xff] %vm602, %v539
      %692 = vst.msk [vmem:[%s689 + $0x19] sm:$0xff] %vm602, %v540
      %693 = vst.msk [vmem:[%s689 + $0x21] sm:$0xff] %vm602, %v541
      %694 = vst.msk [vmem:[%s689 + $0x31] sm:$0xff] %vm602, %v542
      %695 = vst.msk [vmem:[%s689 + $0x39] sm:$0xff] %vm602, %v543
      %696 = vst.msk [vmem:[%s689 + $0x49] sm:$0xff] %vm602, %v544
      %697 = vst.msk [vmem:[%s689 + $0x51] sm:$0xff] %vm602, %v545
      %698 = vst.msk [vmem:[%s689 + $0x61] sm:$0xff] %vm602, %v546
      %699 = vst.msk [vmem:[%s689 + $0x69] sm:$0xff] %vm602, %v547
      %700 = vst.msk [vmem:[%s689 + $0x79] sm:$0xff] %vm602, %v548
      %701 = vst.msk [vmem:[%s689 + $0x81] sm:$0xff] %vm602, %v549
      %702 = vst.msk [vmem:[%s689 + $0x91] sm:$0xff] %vm602, %v550
      %703 = vst.msk [vmem:[%s689 + $0x99] sm:$0xff] %vm602, %v551
      %704 = vst.msk [vmem:[%s689 + $0xa9] sm:$0xff] %vm602, %v552
      %705 = vst.msk [vmem:[%s689 + $0xb1] sm:$0xff] %vm602, %v553
      %706 = vst.msk [vmem:[%s689 + $0xc1] sm:$0xff] %vm602, %v554
      %707 = vst.msk [vmem:[%s689 + $0xc9] sm:$0xff] %vm602, %v555
      %708 = vst.msk [vmem:[%s689 + $0xd9] sm:$0xff] %vm602, %v556
      %709 = vst.msk [vmem:[%s689 + $0xe1] sm:$0xff] %vm602, %v557
      %710 = vst.msk [vmem:[%s689 + $0xf1] sm:$0xff] %vm602, %v558
      %711 = vst.msk [vmem:[%s689 + $0xf9] sm:$0xff] %vm602, %v559
      %712 = vst.msk [vmem:[%s689 + $0x109] sm:$0xff] %vm602, %v560
      %713 = vst.msk [vmem:[%s689 + $0x111] sm:$0xff] %vm602, %v561
      %714 = vst.msk [vmem:[%s689 + $0x121] sm:$0xff] %vm602, %v562
      %715 = vst.msk [vmem:[%s689 + $0x129] sm:$0xff] %vm602, %v563
      %716 = vst.msk [vmem:[%s689 + $0x139] sm:$0xff] %vm602, %v564
      %717 = vst.msk [vmem:[%s689 + $0x141] sm:$0xff] %vm602, %v565
      %718 = vst.msk [vmem:[%s689 + $0x151] sm:$0xff] %vm602, %v566
      %719 = vst.msk [vmem:[%s689 + $0x159] sm:$0xff] %vm602, %v567
      %720 = vst.msk [vmem:[%s689 + $0x169] sm:$0xff] %vm602, %v568
      %721 = vst.msk [vmem:[%s689 + $0x171] sm:$0xff] %vm602, %v569
      %722 = vst.msk [vmem:[%s689 + $0x1b1] sm:$0xff] %vm602, %v570
      %723 = vst.msk [vmem:[%s689 + $0x1b9] sm:$0xff] %vm602, %v571
      %724 = vst.msk [vmem:[%s689 + $0x1c9] sm:$0xff] %vm602, %v572
      %725 = vst.msk [vmem:[%s689 + $0x1d1] sm:$0xff] %vm602, %v573
      %726 = vst.msk [vmem:[%s689 + $0x1e1] sm:$0xff] %vm602, %v574
      %727 = vst.msk [vmem:[%s689 + $0x1e9] sm:$0xff] %vm602, %v575
      %728 = vst.msk [vmem:[%s689 + $0x1f9] sm:$0xff] %vm602, %v576
      %729 = vst.msk [vmem:[%s689 + $0x201] sm:$0xff] %vm602, %v577
      %730 = vst.msk [vmem:[%s689 + $0x211] sm:$0xff] %vm602, %v578
      %731 = vst.msk [vmem:[%s689 + $0x219] sm:$0xff] %vm602, %v579
      %732 = vst.msk [vmem:[%s689 + $0x229] sm:$0xff] %vm602, %v580
      %733 = vst.msk [vmem:[%s689 + $0x231] sm:$0xff] %vm602, %v581
      %734 = vst.msk [vmem:[%s689 + $0x241] sm:$0xff] %vm602, %v582
      %735 = vst.msk [vmem:[%s689 + $0x249] sm:$0xff] %vm602, %v583
      %736 = vst.msk [vmem:[%s689 + $0x259] sm:$0xff] %vm602, %v584
      %737 = vst.msk [vmem:[%s689 + $0x261] sm:$0xff] %vm602, %v585
      %738 = vst.msk [vmem:[%s689 + $0x271] sm:$0xff] %vm602, %v586
      %739 = vst.msk [vmem:[%s689 + $0x279] sm:$0xff] %vm602, %v587
      %740 = vst.msk [vmem:[%s689 + $0x289] sm:$0xff] %vm602, %v588
      %741 = vst.msk [vmem:[%s689 + $0x291] sm:$0xff] %vm602, %v589
      %742 = vst.msk [vmem:[%s689 + $0x2a1] sm:$0xff] %vm602, %v590
      %743 = vst.msk [vmem:[%s689 + $0x2a9] sm:$0xff] %vm602, %v591
      %744 = vst.msk [vmem:[%s689 + $0x2b9] sm:$0xff] %vm602, %v592
      %745 = vst.msk [vmem:[%s689 + $0x2c1] sm:$0xff] %vm602, %v593
      %746 = vst.msk [vmem:[%s689 + $0x2d1] sm:$0xff] %vm602, %v594
      %747 = vst.msk [vmem:[%s689 + $0x2d9] sm:$0xff] %vm602, %v595
      %748 = vst.msk [vmem:[%s689 + $0x2e9] sm:$0xff] %vm602, %v596
      %749 = vst.msk [vmem:[%s689 + $0x2f1] sm:$0xff] %vm602, %v597
      %750 = vst.msk [vmem:[%s689 + $0x301] sm:$0xff] %vm602, %v598
      %751 = vst.msk [vmem:[%s689 + $0x309] sm:$0xff] %vm602, %v599
      %752 = vst.msk [vmem:[%s689 + $0x319] sm:$0xff] %vm602, %v600
      %753 = vst.msk [vmem:[%s689 + $0x321] sm:$0xff] %vm602, %v601
      %v754 = vld [vmem:[#allocation2] sm:$0xff]
      %v755 = vld [vmem:[#allocation2 + $0x8] sm:$0xff]
      %v756 = vld [vmem:[#allocation2 + $0x18] sm:$0xff]
      %v757 = vld [vmem:[#allocation2 + $0x20] sm:$0xff]
      %v758 = vld [vmem:[#allocation2 + $0x30] sm:$0xff]
      %v759 = vld [vmem:[#allocation2 + $0x38] sm:$0xff]
      %v760 = vld [vmem:[#allocation2 + $0x48] sm:$0xff]
      %v761 = vld [vmem:[#allocation2 + $0x50] sm:$0xff]
      %v762 = vld [vmem:[#allocation2 + $0x60] sm:$0xff]
      %v763 = vld [vmem:[#allocation2 + $0x68] sm:$0xff]
      %v764 = vld [vmem:[#allocation2 + $0x78] sm:$0xff]
      %v765 = vld [vmem:[#allocation2 + $0x80] sm:$0xff]
      %v766 = vld [vmem:[#allocation2 + $0x90] sm:$0xff]
      %v767 = vld [vmem:[#allocation2 + $0x98] sm:$0xff]
      %v768 = vld [vmem:[#allocation2 + $0xa8] sm:$0xff]
      %v769 = vld [vmem:[#allocation2 + $0xb0] sm:$0xff]
      %v770 = vld [vmem:[#allocation2 + $0xc0] sm:$0xff]
      %v771 = vld [vmem:[#allocation2 + $0xc8] sm:$0xff]
      %v772 = vld [vmem:[#allocation2 + $0xd8] sm:$0xff]
      %v773 = vld [vmem:[#allocation2 + $0xe0] sm:$0xff]
      %v774 = vld [vmem:[#allocation2 + $0xf0] sm:$0xff]
      %v775 = vld [vmem:[#allocation2 + $0xf8] sm:$0xff]
      %v776 = vld [vmem:[#allocation2 + $0x108] sm:$0xff]
      %v777 = vld [vmem:[#allocation2 + $0x110] sm:$0xff]
      %v778 = vld [vmem:[#allocation2 + $0x120] sm:$0xff]
      %v779 = vld [vmem:[#allocation2 + $0x128] sm:$0xff]
      %v780 = vld [vmem:[#allocation2 + $0x138] sm:$0xff]
      %v781 = vld [vmem:[#allocation2 + $0x140] sm:$0xff]
      %v782 = vld [vmem:[#allocation2 + $0x150] sm:$0xff]
      %v783 = vld [vmem:[#allocation2 + $0x158] sm:$0xff]
      %v784 = vld [vmem:[#allocation2 + $0x168] sm:$0xff]
      %v785 = vld [vmem:[#allocation2 + $0x170] sm:$0xff]
      %v786 = vld [vmem:[#allocation2 + $0x1b0] sm:$0xff]
      %v787 = vld [vmem:[#allocation2 + $0x1b8] sm:$0xff]
      %v788 = vld [vmem:[#allocation2 + $0x1c8] sm:$0xff]
      %v789 = vld [vmem:[#allocation2 + $0x1d0] sm:$0xff]
      %v790 = vld [vmem:[#allocation2 + $0x1e0] sm:$0xff]
      %v791 = vld [vmem:[#allocation2 + $0x1e8] sm:$0xff]
      %v792 = vld [vmem:[#allocation2 + $0x1f8] sm:$0xff]
      %v793 = vld [vmem:[#allocation2 + $0x200] sm:$0xff]
      %v794 = vld [vmem:[#allocation2 + $0x210] sm:$0xff]
      %v795 = vld [vmem:[#allocation2 + $0x218] sm:$0xff]
      %v796 = vld [vmem:[#allocation2 + $0x228] sm:$0xff]
      %v797 = vld [vmem:[#allocation2 + $0x230] sm:$0xff]
      %v798 = vld [vmem:[#allocation2 + $0x240] sm:$0xff]
      %v799 = vld [vmem:[#allocation2 + $0x248] sm:$0xff]
      %v800 = vld [vmem:[#allocation2 + $0x258] sm:$0xff]
      %v801 = vld [vmem:[#allocation2 + $0x260] sm:$0xff]
      %v802 = vld [vmem:[#allocation2 + $0x270] sm:$0xff]
      %v803 = vld [vmem:[#allocation2 + $0x278] sm:$0xff]
      %v804 = vld [vmem:[#allocation2 + $0x288] sm:$0xff]
      %v805 = vld [vmem:[#allocation2 + $0x290] sm:$0xff]
      %v806 = vld [vmem:[#allocation2 + $0x2a0] sm:$0xff]
      %v807 = vld [vmem:[#allocation2 + $0x2a8] sm:$0xff]
      %v808 = vld [vmem:[#allocation2 + $0x2b8] sm:$0xff]
      %v809 = vld [vmem:[#allocation2 + $0x2c0] sm:$0xff]
      %v810 = vld [vmem:[#allocation2 + $0x2d0] sm:$0xff]
      %v811 = vld [vmem:[#allocation2 + $0x2d8] sm:$0xff]
      %v812 = vld [vmem:[#allocation2 + $0x2e8] sm:$0xff]
      %v813 = vld [vmem:[#allocation2 + $0x2f0] sm:$0xff]
      %v814 = vld [vmem:[#allocation2 + $0x300] sm:$0xff]
      %v815 = vld [vmem:[#allocation2 + $0x308] sm:$0xff]
      %v816 = vld [vmem:[#allocation2 + $0x318] sm:$0xff]
      %v817 = vld [vmem:[#allocation2 + $0x320] sm:$0xff]
      %v818 = vpack.c.bf16 %v755, %v754
      %v819 = vpack.c.bf16 %v757, %v756
      %v820 = vpack.c.bf16 %v759, %v758
      %v821 = vpack.c.bf16 %v761, %v760
      %v822 = vpack.c.bf16 %v763, %v762
      %v823 = vpack.c.bf16 %v765, %v764
      %v824 = vpack.c.bf16 %v767, %v766
      %v825 = vpack.c.bf16 %v769, %v768
      %v826 = vpack.c.bf16 %v771, %v770
      %v827 = vpack.c.bf16 %v773, %v772
      %v828 = vpack.c.bf16 %v775, %v774
      %v829 = vpack.c.bf16 %v777, %v776
      %v830 = vpack.c.bf16 %v779, %v778
      %v831 = vpack.c.bf16 %v781, %v780
      %v832 = vpack.c.bf16 %v783, %v782
      %v833 = vpack.c.bf16 %v785, %v784
      %v834 = vpack.c.bf16 %v787, %v786
      %v835 = vpack.c.bf16 %v789, %v788
      %v836 = vpack.c.bf16 %v791, %v790
      %v837 = vpack.c.bf16 %v793, %v792
      %v838 = vpack.c.bf16 %v795, %v794
      %v839 = vpack.c.bf16 %v797, %v796
      %v840 = vpack.c.bf16 %v799, %v798
      %v841 = vpack.c.bf16 %v801, %v800
      %v842 = vpack.c.bf16 %v803, %v802
      %v843 = vpack.c.bf16 %v805, %v804
      %v844 = vpack.c.bf16 %v807, %v806
      %v845 = vpack.c.bf16 %v809, %v808
      %v846 = vpack.c.bf16 %v811, %v810
      %v847 = vpack.c.bf16 %v813, %v812
      %v848 = vpack.c.bf16 %v815, %v814
      %v849 = vpack.c.bf16 %v817, %v816
      %v850 = vld [vmem:[#allocation2 + $0x1] sm:$0xff]
      %v851 = vld [vmem:[#allocation2 + $0x9] sm:$0xff]
      %v852 = vld [vmem:[#allocation2 + $0x19] sm:$0xff]
      %v853 = vld [vmem:[#allocation2 + $0x21] sm:$0xff]
      %v854 = vld [vmem:[#allocation2 + $0x31] sm:$0xff]
      %v855 = vld [vmem:[#allocation2 + $0x39] sm:$0xff]
      %v856 = vld [vmem:[#allocation2 + $0x49] sm:$0xff]
      %v857 = vld [vmem:[#allocation2 + $0x51] sm:$0xff]
      %v858 = vld [vmem:[#allocation2 + $0x61] sm:$0xff]
      %v859 = vld [vmem:[#allocation2 + $0x69] sm:$0xff]
      %v860 = vld [vmem:[#allocation2 + $0x79] sm:$0xff]
      %v861 = vld [vmem:[#allocation2 + $0x81] sm:$0xff]
      %v862 = vld [vmem:[#allocation2 + $0x91] sm:$0xff]
      %v863 = vld [vmem:[#allocation2 + $0x99] sm:$0xff]
      %v864 = vld [vmem:[#allocation2 + $0xa9] sm:$0xff]
      %v865 = vld [vmem:[#allocation2 + $0xb1] sm:$0xff]
      %v866 = vld [vmem:[#allocation2 + $0xc1] sm:$0xff]
      %v867 = vld [vmem:[#allocation2 + $0xc9] sm:$0xff]
      %v868 = vld [vmem:[#allocation2 + $0xd9] sm:$0xff]
      %v869 = vld [vmem:[#allocation2 + $0xe1] sm:$0xff]
      %v870 = vld [vmem:[#allocation2 + $0xf1] sm:$0xff]
      %v871 = vld [vmem:[#allocation2 + $0xf9] sm:$0xff]
      %v872 = vld [vmem:[#allocation2 + $0x109] sm:$0xff]
      %v873 = vld [vmem:[#allocation2 + $0x111] sm:$0xff]
      %v874 = vld [vmem:[#allocation2 + $0x121] sm:$0xff]
      %v875 = vld [vmem:[#allocation2 + $0x129] sm:$0xff]
      %v876 = vld [vmem:[#allocation2 + $0x139] sm:$0xff]
      %v877 = vld [vmem:[#allocation2 + $0x141] sm:$0xff]
      %v878 = vld [vmem:[#allocation2 + $0x151] sm:$0xff]
      %v879 = vld [vmem:[#allocation2 + $0x159] sm:$0xff]
      %v880 = vld [vmem:[#allocation2 + $0x169] sm:$0xff]
      %v881 = vld [vmem:[#allocation2 + $0x171] sm:$0xff]
      %v882 = vld [vmem:[#allocation2 + $0x1b1] sm:$0xff]
      %v883 = vld [vmem:[#allocation2 + $0x1b9] sm:$0xff]
      %v884 = vld [vmem:[#allocation2 + $0x1c9] sm:$0xff]
      %v885 = vld [vmem:[#allocation2 + $0x1d1] sm:$0xff]
      %v886 = vld [vmem:[#allocation2 + $0x1e1] sm:$0xff]
      %v887 = vld [vmem:[#allocation2 + $0x1e9] sm:$0xff]
      %v888 = vld [vmem:[#allocation2 + $0x1f9] sm:$0xff]
      %v889 = vld [vmem:[#allocation2 + $0x201] sm:$0xff]
      %v890 = vld [vmem:[#allocation2 + $0x211] sm:$0xff]
      %v891 = vld [vmem:[#allocation2 + $0x219] sm:$0xff]
      %v892 = vld [vmem:[#allocation2 + $0x229] sm:$0xff]
      %v893 = vld [vmem:[#allocation2 + $0x231] sm:$0xff]
      %v894 = vld [vmem:[#allocation2 + $0x241] sm:$0xff]
      %v895 = vld [vmem:[#allocation2 + $0x249] sm:$0xff]
      %v896 = vld [vmem:[#allocation2 + $0x259] sm:$0xff]
      %v897 = vld [vmem:[#allocation2 + $0x261] sm:$0xff]
      %v898 = vld [vmem:[#allocation2 + $0x271] sm:$0xff]
      %v899 = vld [vmem:[#allocation2 + $0x279] sm:$0xff]
      %v900 = vld [vmem:[#allocation2 + $0x289] sm:$0xff]
      %v901 = vld [vmem:[#allocation2 + $0x291] sm:$0xff]
      %v902 = vld [vmem:[#allocation2 + $0x2a1] sm:$0xff]
      %v903 = vld [vmem:[#allocation2 + $0x2a9] sm:$0xff]
      %v904 = vld [vmem:[#allocation2 + $0x2b9] sm:$0xff]
      %v905 = vld [vmem:[#allocation2 + $0x2c1] sm:$0xff]
      %v906 = vld [vmem:[#allocation2 + $0x2d1] sm:$0xff]
      %v907 = vld [vmem:[#allocation2 + $0x2d9] sm:$0xff]
      %v908 = vld [vmem:[#allocation2 + $0x2e9] sm:$0xff]
      %v909 = vld [vmem:[#allocation2 + $0x2f1] sm:$0xff]
      %v910 = vld [vmem:[#allocation2 + $0x301] sm:$0xff]
      %v911 = vld [vmem:[#allocation2 + $0x309] sm:$0xff]
      %v912 = vld [vmem:[#allocation2 + $0x319] sm:$0xff]
      %v913 = vld [vmem:[#allocation2 + $0x321] sm:$0xff]
      %v914 = vpack.c.bf16 %v851, %v850
      %v915 = vpack.c.bf16 %v853, %v852
      %v916 = vpack.c.bf16 %v855, %v854
      %v917 = vpack.c.bf16 %v857, %v856
      %v918 = vpack.c.bf16 %v859, %v858
      %v919 = vpack.c.bf16 %v861, %v860
      %v920 = vpack.c.bf16 %v863, %v862
      %v921 = vpack.c.bf16 %v865, %v864
      %v922 = vpack.c.bf16 %v867, %v866
      %v923 = vpack.c.bf16 %v869, %v868
      %v924 = vpack.c.bf16 %v871, %v870
      %v925 = vpack.c.bf16 %v873, %v872
      %v926 = vpack.c.bf16 %v875, %v874
      %v927 = vpack.c.bf16 %v877, %v876
      %v928 = vpack.c.bf16 %v879, %v878
      %v929 = vpack.c.bf16 %v881, %v880
      %v930 = vpack.c.bf16 %v883, %v882
      %v931 = vpack.c.bf16 %v885, %v884
      %v932 = vpack.c.bf16 %v887, %v886
      %v933 = vpack.c.bf16 %v889, %v888
      %v934 = vpack.c.bf16 %v891, %v890
      %v935 = vpack.c.bf16 %v893, %v892
      %v936 = vpack.c.bf16 %v895, %v894
      %v937 = vpack.c.bf16 %v897, %v896
      %v938 = vpack.c.bf16 %v899, %v898
      %v939 = vpack.c.bf16 %v901, %v900
      %v940 = vpack.c.bf16 %v903, %v902
      %v941 = vpack.c.bf16 %v905, %v904
      %v942 = vpack.c.bf16 %v907, %v906
      %v943 = vpack.c.bf16 %v909, %v908
      %v944 = vpack.c.bf16 %v911, %v910
      %v945 = vpack.c.bf16 %v913, %v912
      %v946 = vld [vmem:[#allocation2 + $0x2] sm:$0xff]
      %v947 = vld [vmem:[#allocation2 + $0xa] sm:$0xff]
      %v948 = vld [vmem:[#allocation2 + $0x1a] sm:$0xff]
      %v949 = vld [vmem:[#allocation2 + $0x22] sm:$0xff]
      %v950 = vld [vmem:[#allocation2 + $0x32] sm:$0xff]
      %v951 = vld [vmem:[#allocation2 + $0x3a] sm:$0xff]
      %v952 = vld [vmem:[#allocation2 + $0x4a] sm:$0xff]
      %v953 = vld [vmem:[#allocation2 + $0x52] sm:$0xff]
      %v954 = vld [vmem:[#allocation2 + $0x62] sm:$0xff]
      %v955 = vld [vmem:[#allocation2 + $0x6a] sm:$0xff]
      %v956 = vld [vmem:[#allocation2 + $0x7a] sm:$0xff]
      %v957 = vld [vmem:[#allocation2 + $0x82] sm:$0xff]
      %v958 = vld [vmem:[#allocation2 + $0x92] sm:$0xff]
      %v959 = vld [vmem:[#allocation2 + $0x9a] sm:$0xff]
      %v960 = vld [vmem:[#allocation2 + $0xaa] sm:$0xff]
      %v961 = vld [vmem:[#allocation2 + $0xb2] sm:$0xff]
      %v962 = vld [vmem:[#allocation2 + $0xc2] sm:$0xff]
      %v963 = vld [vmem:[#allocation2 + $0xca] sm:$0xff]
      %v964 = vld [vmem:[#allocation2 + $0xda] sm:$0xff]
      %v965 = vld [vmem:[#allocation2 + $0xe2] sm:$0xff]
      %v966 = vld [vmem:[#allocation2 + $0xf2] sm:$0xff]
      %v967 = vld [vmem:[#allocation2 + $0xfa] sm:$0xff]
      %v968 = vld [vmem:[#allocation2 + $0x10a] sm:$0xff]
      %v969 = vld [vmem:[#allocation2 + $0x112] sm:$0xff]
      %v970 = vld [vmem:[#allocation2 + $0x122] sm:$0xff]
      %v971 = vld [vmem:[#allocation2 + $0x12a] sm:$0xff]
      %v972 = vld [vmem:[#allocation2 + $0x13a] sm:$0xff]
      %v973 = vld [vmem:[#allocation2 + $0x142] sm:$0xff]
      %v974 = vld [vmem:[#allocation2 + $0x152] sm:$0xff]
      %v975 = vld [vmem:[#allocation2 + $0x15a] sm:$0xff]
      %v976 = vld [vmem:[#allocation2 + $0x16a] sm:$0xff]
      %v977 = vld [vmem:[#allocation2 + $0x172] sm:$0xff]
      %v978 = vld [vmem:[#allocation2 + $0x1b2] sm:$0xff]
      %v979 = vld [vmem:[#allocation2 + $0x1ba] sm:$0xff]
      %v980 = vld [vmem:[#allocation2 + $0x1ca] sm:$0xff]
      %v981 = vld [vmem:[#allocation2 + $0x1d2] sm:$0xff]
      %v982 = vld [vmem:[#allocation2 + $0x1e2] sm:$0xff]
      %v983 = vld [vmem:[#allocation2 + $0x1ea] sm:$0xff]
      %v984 = vld [vmem:[#allocation2 + $0x1fa] sm:$0xff]
      %v985 = vld [vmem:[#allocation2 + $0x202] sm:$0xff]
      %v986 = vld [vmem:[#allocation2 + $0x212] sm:$0xff]
      %v987 = vld [vmem:[#allocation2 + $0x21a] sm:$0xff]
      %v988 = vld [vmem:[#allocation2 + $0x22a] sm:$0xff]
      %v989 = vld [vmem:[#allocation2 + $0x232] sm:$0xff]
      %v990 = vld [vmem:[#allocation2 + $0x242] sm:$0xff]
      %v991 = vld [vmem:[#allocation2 + $0x24a] sm:$0xff]
      %v992 = vld [vmem:[#allocation2 + $0x25a] sm:$0xff]
      %v993 = vld [vmem:[#allocation2 + $0x262] sm:$0xff]
      %v994 = vld [vmem:[#allocation2 + $0x272] sm:$0xff]
      %v995 = vld [vmem:[#allocation2 + $0x27a] sm:$0xff]
      %v996 = vld [vmem:[#allocation2 + $0x28a] sm:$0xff]
      %v997 = vld [vmem:[#allocation2 + $0x292] sm:$0xff]
      %v998 = vld [vmem:[#allocation2 + $0x2a2] sm:$0xff]
      %v999 = vld [vmem:[#allocation2 + $0x2aa] sm:$0xff]
      %v1000 = vld [vmem:[#allocation2 + $0x2ba] sm:$0xff]
      %v1001 = vld [vmem:[#allocation2 + $0x2c2] sm:$0xff]
      %v1002 = vld [vmem:[#allocation2 + $0x2d2] sm:$0xff]
      %v1003 = vld [vmem:[#allocation2 + $0x2da] sm:$0xff]
      %v1004 = vld [vmem:[#allocation2 + $0x2ea] sm:$0xff]
      %v1005 = vld [vmem:[#allocation2 + $0x2f2] sm:$0xff]
      %v1006 = vld [vmem:[#allocation2 + $0x302] sm:$0xff]
      %v1007 = vld [vmem:[#allocation2 + $0x30a] sm:$0xff]
      %v1008 = vld [vmem:[#allocation2 + $0x31a] sm:$0xff]
      %v1009 = vld [vmem:[#allocation2 + $0x322] sm:$0xff]
      %v1010 = vpack.c.bf16 %v947, %v946
      %v1011 = vpack.c.bf16 %v949, %v948
      %v1012 = vpack.c.bf16 %v951, %v950
      %v1013 = vpack.c.bf16 %v953, %v952
      %v1014 = vpack.c.bf16 %v955, %v954
      %v1015 = vpack.c.bf16 %v957, %v956
      %v1016 = vpack.c.bf16 %v959, %v958
      %v1017 = vpack.c.bf16 %v961, %v960
      %v1018 = vpack.c.bf16 %v963, %v962
      %v1019 = vpack.c.bf16 %v965, %v964
      %v1020 = vpack.c.bf16 %v967, %v966
      %v1021 = vpack.c.bf16 %v969, %v968
      %v1022 = vpack.c.bf16 %v971, %v970
      %v1023 = vpack.c.bf16 %v973, %v972
      %v1024 = vpack.c.bf16 %v975, %v974
      %v1025 = vpack.c.bf16 %v977, %v976
      %v1026 = vpack.c.bf16 %v979, %v978
      %v1027 = vpack.c.bf16 %v981, %v980
      %v1028 = vpack.c.bf16 %v983, %v982
      %v1029 = vpack.c.bf16 %v985, %v984
      %v1030 = vpack.c.bf16 %v987, %v986
      %v1031 = vpack.c.bf16 %v989, %v988
      %v1032 = vpack.c.bf16 %v991, %v990
      %v1033 = vpack.c.bf16 %v993, %v992
      %v1034 = vpack.c.bf16 %v995, %v994
      %v1035 = vpack.c.bf16 %v997, %v996
      %v1036 = vpack.c.bf16 %v999, %v998
      %v1037 = vpack.c.bf16 %v1001, %v1000
      %v1038 = vpack.c.bf16 %v1003, %v1002
      %v1039 = vpack.c.bf16 %v1005, %v1004
      %v1040 = vpack.c.bf16 %v1007, %v1006
      %v1041 = vpack.c.bf16 %v1009, %v1008
      %v1042 = vld [vmem:[%s689] sm:$0xff]
      %v1043 = vld [vmem:[%s689 + $0x8] sm:$0xff]
      %v1044 = vld [vmem:[%s689 + $0x18] sm:$0xff]
      %v1045 = vld [vmem:[%s689 + $0x20] sm:$0xff]
      %v1046 = vld [vmem:[%s689 + $0x30] sm:$0xff]
      %v1047 = vld [vmem:[%s689 + $0x38] sm:$0xff]
      %v1048 = vld [vmem:[%s689 + $0x48] sm:$0xff]
      %v1049 = vld [vmem:[%s689 + $0x50] sm:$0xff]
      %v1050 = vld [vmem:[%s689 + $0x60] sm:$0xff]
      %v1051 = vld [vmem:[%s689 + $0x68] sm:$0xff]
      %v1052 = vld [vmem:[%s689 + $0x78] sm:$0xff]
      %v1053 = vld [vmem:[%s689 + $0x80] sm:$0xff]
      %v1054 = vld [vmem:[%s689 + $0x90] sm:$0xff]
      %v1055 = vld [vmem:[%s689 + $0x98] sm:$0xff]
      %v1056 = vld [vmem:[%s689 + $0xa8] sm:$0xff]
      %v1057 = vld [vmem:[%s689 + $0xb0] sm:$0xff]
      %v1058 = vld [vmem:[%s689 + $0xc0] sm:$0xff]
      %v1059 = vld [vmem:[%s689 + $0xc8] sm:$0xff]
      %v1060 = vld [vmem:[%s689 + $0xd8] sm:$0xff]
      %v1061 = vld [vmem:[%s689 + $0xe0] sm:$0xff]
      %v1062 = vld [vmem:[%s689 + $0xf0] sm:$0xff]
      %v1063 = vld [vmem:[%s689 + $0xf8] sm:$0xff]
      %v1064 = vld [vmem:[%s689 + $0x108] sm:$0xff]
      %v1065 = vld [vmem:[%s689 + $0x110] sm:$0xff]
      %v1066 = vld [vmem:[%s689 + $0x120] sm:$0xff]
      %v1067 = vld [vmem:[%s689 + $0x128] sm:$0xff]
      %v1068 = vld [vmem:[%s689 + $0x138] sm:$0xff]
      %v1069 = vld [vmem:[%s689 + $0x140] sm:$0xff]
      %v1070 = vld [vmem:[%s689 + $0x150] sm:$0xff]
      %v1071 = vld [vmem:[%s689 + $0x158] sm:$0xff]
      %v1072 = vld [vmem:[%s689 + $0x168] sm:$0xff]
      %v1073 = vld [vmem:[%s689 + $0x170] sm:$0xff]
      %v1074 = vld [vmem:[%s689 + $0x1b0] sm:$0xff]
      %v1075 = vld [vmem:[%s689 + $0x1b8] sm:$0xff]
      %v1076 = vld [vmem:[%s689 + $0x1c8] sm:$0xff]
      %v1077 = vld [vmem:[%s689 + $0x1d0] sm:$0xff]
      %v1078 = vld [vmem:[%s689 + $0x1e0] sm:$0xff]
      %v1079 = vld [vmem:[%s689 + $0x1e8] sm:$0xff]
      %v1080 = vld [vmem:[%s689 + $0x1f8] sm:$0xff]
      %v1081 = vld [vmem:[%s689 + $0x200] sm:$0xff]
      %v1082 = vld [vmem:[%s689 + $0x210] sm:$0xff]
      %v1083 = vld [vmem:[%s689 + $0x218] sm:$0xff]
      %v1084 = vld [vmem:[%s689 + $0x228] sm:$0xff]
      %v1085 = vld [vmem:[%s689 + $0x230] sm:$0xff]
      %v1086 = vld [vmem:[%s689 + $0x240] sm:$0xff]
      %v1087 = vld [vmem:[%s689 + $0x248] sm:$0xff]
      %v1088 = vld [vmem:[%s689 + $0x258] sm:$0xff]
      %v1089 = vld [vmem:[%s689 + $0x260] sm:$0xff]
      %v1090 = vld [vmem:[%s689 + $0x270] sm:$0xff]
      %v1091 = vld [vmem:[%s689 + $0x278] sm:$0xff]
      %v1092 = vld [vmem:[%s689 + $0x288] sm:$0xff]
      %v1093 = vld [vmem:[%s689 + $0x290] sm:$0xff]
      %v1094 = vld [vmem:[%s689 + $0x2a0] sm:$0xff]
      %v1095 = vld [vmem:[%s689 + $0x2a8] sm:$0xff]
      %v1096 = vld [vmem:[%s689 + $0x2b8] sm:$0xff]
      %v1097 = vld [vmem:[%s689 + $0x2c0] sm:$0xff]
      %v1098 = vld [vmem:[%s689 + $0x2d0] sm:$0xff]
      %v1099 = vld [vmem:[%s689 + $0x2d8] sm:$0xff]
      %v1100 = vld [vmem:[%s689 + $0x2e8] sm:$0xff]
      %v1101 = vld [vmem:[%s689 + $0x2f0] sm:$0xff]
      %v1102 = vld [vmem:[%s689 + $0x300] sm:$0xff]
      %v1103 = vld [vmem:[%s689 + $0x308] sm:$0xff]
      %v1104 = vld [vmem:[%s689 + $0x318] sm:$0xff]
      %v1105 = vld [vmem:[%s689 + $0x320] sm:$0xff]
      %v1106 = vpack.c.bf16 %v1043, %v1042
      %v1107 = vpack.c.bf16 %v1045, %v1044
      %v1108 = vpack.c.bf16 %v1047, %v1046
      %v1109 = vpack.c.bf16 %v1049, %v1048
      %v1110 = vpack.c.bf16 %v1051, %v1050
      %v1111 = vpack.c.bf16 %v1053, %v1052
      %v1112 = vpack.c.bf16 %v1055, %v1054
      %v1113 = vpack.c.bf16 %v1057, %v1056
      %v1114 = vpack.c.bf16 %v1059, %v1058
      %v1115 = vpack.c.bf16 %v1061, %v1060
      %v1116 = vpack.c.bf16 %v1063, %v1062
      %v1117 = vpack.c.bf16 %v1065, %v1064
      %v1118 = vpack.c.bf16 %v1067, %v1066
      %v1119 = vpack.c.bf16 %v1069, %v1068
      %v1120 = vpack.c.bf16 %v1071, %v1070
      %v1121 = vpack.c.bf16 %v1073, %v1072
      %v1122 = vpack.c.bf16 %v1075, %v1074
      %v1123 = vpack.c.bf16 %v1077, %v1076
      %v1124 = vpack.c.bf16 %v1079, %v1078
      %v1125 = vpack.c.bf16 %v1081, %v1080
      %v1126 = vpack.c.bf16 %v1083, %v1082
      %v1127 = vpack.c.bf16 %v1085, %v1084
      %v1128 = vpack.c.bf16 %v1087, %v1086
      %v1129 = vpack.c.bf16 %v1089, %v1088
      %v1130 = vpack.c.bf16 %v1091, %v1090
      %v1131 = vpack.c.bf16 %v1093, %v1092
      %v1132 = vpack.c.bf16 %v1095, %v1094
      %v1133 = vpack.c.bf16 %v1097, %v1096
      %v1134 = vpack.c.bf16 %v1099, %v1098
      %v1135 = vpack.c.bf16 %v1101, %v1100
      %v1136 = vpack.c.bf16 %v1103, %v1102
      %v1137 = vpack.c.bf16 %v1105, %v1104
      %v1138 = vld [vmem:[%s689 + $0x1] sm:$0xff]
      %v1139 = vld [vmem:[%s689 + $0x9] sm:$0xff]
      %v1140 = vld [vmem:[%s689 + $0x19] sm:$0xff]
      %v1141 = vld [vmem:[%s689 + $0x21] sm:$0xff]
      %v1142 = vld [vmem:[%s689 + $0x31] sm:$0xff]
      %v1143 = vld [vmem:[%s689 + $0x39] sm:$0xff]
      %v1144 = vld [vmem:[%s689 + $0x49] sm:$0xff]
      %v1145 = vld [vmem:[%s689 + $0x51] sm:$0xff]
      %v1146 = vld [vmem:[%s689 + $0x61] sm:$0xff]
      %v1147 = vld [vmem:[%s689 + $0x69] sm:$0xff]
      %v1148 = vld [vmem:[%s689 + $0x79] sm:$0xff]
      %v1149 = vld [vmem:[%s689 + $0x81] sm:$0xff]
      %v1150 = vld [vmem:[%s689 + $0x91] sm:$0xff]
      %v1151 = vld [vmem:[%s689 + $0x99] sm:$0xff]
      %v1152 = vld [vmem:[%s689 + $0xa9] sm:$0xff]
      %v1153 = vld [vmem:[%s689 + $0xb1] sm:$0xff]
      %v1154 = vld [vmem:[%s689 + $0xc1] sm:$0xff]
      %v1155 = vld [vmem:[%s689 + $0xc9] sm:$0xff]
      %v1156 = vld [vmem:[%s689 + $0xd9] sm:$0xff]
      %v1157 = vld [vmem:[%s689 + $0xe1] sm:$0xff]
      %v1158 = vld [vmem:[%s689 + $0xf1] sm:$0xff]
      %v1159 = vld [vmem:[%s689 + $0xf9] sm:$0xff]
      %v1160 = vld [vmem:[%s689 + $0x109] sm:$0xff]
      %v1161 = vld [vmem:[%s689 + $0x111] sm:$0xff]
      %v1162 = vld [vmem:[%s689 + $0x121] sm:$0xff]
      %v1163 = vld [vmem:[%s689 + $0x129] sm:$0xff]
      %v1164 = vld [vmem:[%s689 + $0x139] sm:$0xff]
      %v1165 = vld [vmem:[%s689 + $0x141] sm:$0xff]
      %v1166 = vld [vmem:[%s689 + $0x151] sm:$0xff]
      %v1167 = vld [vmem:[%s689 + $0x159] sm:$0xff]
      %v1168 = vld [vmem:[%s689 + $0x169] sm:$0xff]
      %v1169 = vld [vmem:[%s689 + $0x171] sm:$0xff]
      %v1170 = vld [vmem:[%s689 + $0x1b1] sm:$0xff]
      %v1171 = vld [vmem:[%s689 + $0x1b9] sm:$0xff]
      %v1172 = vld [vmem:[%s689 + $0x1c9] sm:$0xff]
      %v1173 = vld [vmem:[%s689 + $0x1d1] sm:$0xff]
      %v1174 = vld [vmem:[%s689 + $0x1e1] sm:$0xff]
      %v1175 = vld [vmem:[%s689 + $0x1e9] sm:$0xff]
      %v1176 = vld [vmem:[%s689 + $0x1f9] sm:$0xff]
      %v1177 = vld [vmem:[%s689 + $0x201] sm:$0xff]
      %v1178 = vld [vmem:[%s689 + $0x211] sm:$0xff]
      %v1179 = vld [vmem:[%s689 + $0x219] sm:$0xff]
      %v1180 = vld [vmem:[%s689 + $0x229] sm:$0xff]
      %v1181 = vld [vmem:[%s689 + $0x231] sm:$0xff]
      %v1182 = vld [vmem:[%s689 + $0x241] sm:$0xff]
      %v1183 = vld [vmem:[%s689 + $0x249] sm:$0xff]
      %v1184 = vld [vmem:[%s689 + $0x259] sm:$0xff]
      %v1185 = vld [vmem:[%s689 + $0x261] sm:$0xff]
      %v1186 = vld [vmem:[%s689 + $0x271] sm:$0xff]
      %v1187 = vld [vmem:[%s689 + $0x279] sm:$0xff]
      %v1188 = vld [vmem:[%s689 + $0x289] sm:$0xff]
      %v1189 = vld [vmem:[%s689 + $0x291] sm:$0xff]
      %v1190 = vld [vmem:[%s689 + $0x2a1] sm:$0xff]
      %v1191 = vld [vmem:[%s689 + $0x2a9] sm:$0xff]
      %v1192 = vld [vmem:[%s689 + $0x2b9] sm:$0xff]
      %v1193 = vld [vmem:[%s689 + $0x2c1] sm:$0xff]
      %v1194 = vld [vmem:[%s689 + $0x2d1] sm:$0xff]
      %v1195 = vld [vmem:[%s689 + $0x2d9] sm:$0xff]
      %v1196 = vld [vmem:[%s689 + $0x2e9] sm:$0xff]
      %v1197 = vld [vmem:[%s689 + $0x2f1] sm:$0xff]
      %v1198 = vld [vmem:[%s689 + $0x301] sm:$0xff]
      %v1199 = vld [vmem:[%s689 + $0x309] sm:$0xff]
      %v1200 = vld [vmem:[%s689 + $0x319] sm:$0xff]
      %v1201 = vld [vmem:[%s689 + $0x321] sm:$0xff]
      %v1202 = vpack.c.bf16 %v1139, %v1138
      %v1203 = vpack.c.bf16 %v1141, %v1140
      %v1204 = vpack.c.bf16 %v1143, %v1142
      %v1205 = vpack.c.bf16 %v1145, %v1144
      %v1206 = vpack.c.bf16 %v1147, %v1146
      %v1207 = vpack.c.bf16 %v1149, %v1148
      %v1208 = vpack.c.bf16 %v1151, %v1150
      %v1209 = vpack.c.bf16 %v1153, %v1152
      %v1210 = vpack.c.bf16 %v1155, %v1154
      %v1211 = vpack.c.bf16 %v1157, %v1156
      %v1212 = vpack.c.bf16 %v1159, %v1158
      %v1213 = vpack.c.bf16 %v1161, %v1160
      %v1214 = vpack.c.bf16 %v1163, %v1162
      %v1215 = vpack.c.bf16 %v1165, %v1164
      %v1216 = vpack.c.bf16 %v1167, %v1166
      %v1217 = vpack.c.bf16 %v1169, %v1168
      %v1218 = vpack.c.bf16 %v1171, %v1170
      %v1219 = vpack.c.bf16 %v1173, %v1172
      %v1220 = vpack.c.bf16 %v1175, %v1174
      %v1221 = vpack.c.bf16 %v1177, %v1176
      %v1222 = vpack.c.bf16 %v1179, %v1178
      %v1223 = vpack.c.bf16 %v1181, %v1180
      %v1224 = vpack.c.bf16 %v1183, %v1182
      %v1225 = vpack.c.bf16 %v1185, %v1184
      %v1226 = vpack.c.bf16 %v1187, %v1186
      %v1227 = vpack.c.bf16 %v1189, %v1188
      %v1228 = vpack.c.bf16 %v1191, %v1190
      %v1229 = vpack.c.bf16 %v1193, %v1192
      %v1230 = vpack.c.bf16 %v1195, %v1194
      %v1231 = vpack.c.bf16 %v1197, %v1196
      %v1232 = vpack.c.bf16 %v1199, %v1198
      %v1233 = vpack.c.bf16 %v1201, %v1200
      %v1234 = vld [vmem:[%s689 + $0x2] sm:$0xff]
      %v1235 = vld [vmem:[%s689 + $0xa] sm:$0xff]
      %v1236 = vld [vmem:[%s689 + $0x1a] sm:$0xff]
      %v1237 = vld [vmem:[%s689 + $0x22] sm:$0xff]
      %v1238 = vld [vmem:[%s689 + $0x32] sm:$0xff]
      %v1239 = vld [vmem:[%s689 + $0x3a] sm:$0xff]
      %v1240 = vld [vmem:[%s689 + $0x4a] sm:$0xff]
      %v1241 = vld [vmem:[%s689 + $0x52] sm:$0xff]
      %v1242 = vld [vmem:[%s689 + $0x62] sm:$0xff]
      %v1243 = vld [vmem:[%s689 + $0x6a] sm:$0xff]
      %v1244 = vld [vmem:[%s689 + $0x7a] sm:$0xff]
      %v1245 = vld [vmem:[%s689 + $0x82] sm:$0xff]
      %v1246 = vld [vmem:[%s689 + $0x92] sm:$0xff]
      %v1247 = vld [vmem:[%s689 + $0x9a] sm:$0xff]
      %v1248 = vld [vmem:[%s689 + $0xaa] sm:$0xff]
      %v1249 = vld [vmem:[%s689 + $0xb2] sm:$0xff]
      %v1250 = vld [vmem:[%s689 + $0xc2] sm:$0xff]
      %v1251 = vld [vmem:[%s689 + $0xca] sm:$0xff]
      %v1252 = vld [vmem:[%s689 + $0xda] sm:$0xff]
      %v1253 = vld [vmem:[%s689 + $0xe2] sm:$0xff]
      %v1254 = vld [vmem:[%s689 + $0xf2] sm:$0xff]
      %v1255 = vld [vmem:[%s689 + $0xfa] sm:$0xff]
      %v1256 = vld [vmem:[%s689 + $0x10a] sm:$0xff]
      %v1257 = vld [vmem:[%s689 + $0x112] sm:$0xff]
      %v1258 = vld [vmem:[%s689 + $0x122] sm:$0xff]
      %v1259 = vld [vmem:[%s689 + $0x12a] sm:$0xff]
      %v1260 = vld [vmem:[%s689 + $0x13a] sm:$0xff]
      %v1261 = vld [vmem:[%s689 + $0x142] sm:$0xff]
      %v1262 = vld [vmem:[%s689 + $0x152] sm:$0xff]
      %v1263 = vld [vmem:[%s689 + $0x15a] sm:$0xff]
      %v1264 = vld [vmem:[%s689 + $0x16a] sm:$0xff]
      %v1265 = vld [vmem:[%s689 + $0x172] sm:$0xff]
      %v1266 = vld [vmem:[%s689 + $0x1b2] sm:$0xff]
      %v1267 = vld [vmem:[%s689 + $0x1ba] sm:$0xff]
      %v1268 = vld [vmem:[%s689 + $0x1ca] sm:$0xff]
      %v1269 = vld [vmem:[%s689 + $0x1d2] sm:$0xff]
      %v1270 = vld [vmem:[%s689 + $0x1e2] sm:$0xff]
      %v1271 = vld [vmem:[%s689 + $0x1ea] sm:$0xff]
      %v1272 = vld [vmem:[%s689 + $0x1fa] sm:$0xff]
      %v1273 = vld [vmem:[%s689 + $0x202] sm:$0xff]
      %v1274 = vld [vmem:[%s689 + $0x212] sm:$0xff]
      %v1275 = vld [vmem:[%s689 + $0x21a] sm:$0xff]
      %v1276 = vld [vmem:[%s689 + $0x22a] sm:$0xff]
      %v1277 = vld [vmem:[%s689 + $0x232] sm:$0xff]
      %v1278 = vld [vmem:[%s689 + $0x242] sm:$0xff]
      %v1279 = vld [vmem:[%s689 + $0x24a] sm:$0xff]
      %v1280 = vld [vmem:[%s689 + $0x25a] sm:$0xff]
      %v1281 = vld [vmem:[%s689 + $0x262] sm:$0xff]
      %v1282 = vld [vmem:[%s689 + $0x272] sm:$0xff]
      %v1283 = vld [vmem:[%s689 + $0x27a] sm:$0xff]
      %v1284 = vld [vmem:[%s689 + $0x28a] sm:$0xff]
      %v1285 = vld [vmem:[%s689 + $0x292] sm:$0xff]
      %v1286 = vld [vmem:[%s689 + $0x2a2] sm:$0xff]
      %v1287 = vld [vmem:[%s689 + $0x2aa] sm:$0xff]
      %v1288 = vld [vmem:[%s689 + $0x2ba] sm:$0xff]
      %v1289 = vld [vmem:[%s689 + $0x2c2] sm:$0xff]
      %v1290 = vld [vmem:[%s689 + $0x2d2] sm:$0xff]
      %v1291 = vld [vmem:[%s689 + $0x2da] sm:$0xff]
      %v1292 = vld [vmem:[%s689 + $0x2ea] sm:$0xff]
      %v1293 = vld [vmem:[%s689 + $0x2f2] sm:$0xff]
      %v1294 = vld [vmem:[%s689 + $0x302] sm:$0xff]
      %v1295 = vld [vmem:[%s689 + $0x30a] sm:$0xff]
      %v1296 = vld [vmem:[%s689 + $0x31a] sm:$0xff]
      %v1297 = vld [vmem:[%s689 + $0x322] sm:$0xff]
      %v1298 = vpack.c.bf16 %v1235, %v1234
      %v1299 = vpack.c.bf16 %v1237, %v1236
      %v1300 = vpack.c.bf16 %v1239, %v1238
      %v1301 = vpack.c.bf16 %v1241, %v1240
      %v1302 = vpack.c.bf16 %v1243, %v1242
      %v1303 = vpack.c.bf16 %v1245, %v1244
      %v1304 = vpack.c.bf16 %v1247, %v1246
      %v1305 = vpack.c.bf16 %v1249, %v1248
      %v1306 = vpack.c.bf16 %v1251, %v1250
      %v1307 = vpack.c.bf16 %v1253, %v1252
      %v1308 = vpack.c.bf16 %v1255, %v1254
      %v1309 = vpack.c.bf16 %v1257, %v1256
      %v1310 = vpack.c.bf16 %v1259, %v1258
      %v1311 = vpack.c.bf16 %v1261, %v1260
      %v1312 = vpack.c.bf16 %v1263, %v1262
      %v1313 = vpack.c.bf16 %v1265, %v1264
      %v1314 = vpack.c.bf16 %v1267, %v1266
      %v1315 = vpack.c.bf16 %v1269, %v1268
      %v1316 = vpack.c.bf16 %v1271, %v1270
      %v1317 = vpack.c.bf16 %v1273, %v1272
      %v1318 = vpack.c.bf16 %v1275, %v1274
      %v1319 = vpack.c.bf16 %v1277, %v1276
      %v1320 = vpack.c.bf16 %v1279, %v1278
      %v1321 = vpack.c.bf16 %v1281, %v1280
      %v1322 = vpack.c.bf16 %v1283, %v1282
      %v1323 = vpack.c.bf16 %v1285, %v1284
      %v1324 = vpack.c.bf16 %v1287, %v1286
      %v1325 = vpack.c.bf16 %v1289, %v1288
      %v1326 = vpack.c.bf16 %v1291, %v1290
      %v1327 = vpack.c.bf16 %v1293, %v1292
      %v1328 = vpack.c.bf16 %v1295, %v1294
      %v1329 = vpack.c.bf16 %v1297, %v1296
      %s1330 = scalar_lea.vmem [#allocation2], 48
      %v1331 = vld [vmem:[%s1330] sm:$0xff]
      %v1332 = vld [vmem:[%s1330 + $0x8] sm:$0xff]
      %v1333 = vld [vmem:[%s1330 + $0x18] sm:$0xff]
      %v1334 = vld [vmem:[%s1330 + $0x20] sm:$0xff]
      %v1335 = vld [vmem:[%s1330 + $0x30] sm:$0xff]
      %v1336 = vld [vmem:[%s1330 + $0x38] sm:$0xff]
      %v1337 = vld [vmem:[%s1330 + $0x48] sm:$0xff]
      %v1338 = vld [vmem:[%s1330 + $0x50] sm:$0xff]
      %v1339 = vld [vmem:[%s1330 + $0x60] sm:$0xff]
      %v1340 = vld [vmem:[%s1330 + $0x68] sm:$0xff]
      %v1341 = vld [vmem:[%s1330 + $0x78] sm:$0xff]
      %v1342 = vld [vmem:[%s1330 + $0x80] sm:$0xff]
      %v1343 = vld [vmem:[%s1330 + $0x90] sm:$0xff]
      %v1344 = vld [vmem:[%s1330 + $0x98] sm:$0xff]
      %v1345 = vld [vmem:[%s1330 + $0xa8] sm:$0xff]
      %v1346 = vld [vmem:[%s1330 + $0xb0] sm:$0xff]
      %v1347 = vld [vmem:[%s1330 + $0xc0] sm:$0xff]
      %v1348 = vld [vmem:[%s1330 + $0xc8] sm:$0xff]
      %v1349 = vld [vmem:[%s1330 + $0xd8] sm:$0xff]
      %v1350 = vld [vmem:[%s1330 + $0xe0] sm:$0xff]
      %v1351 = vld [vmem:[%s1330 + $0xf0] sm:$0xff]
      %v1352 = vld [vmem:[%s1330 + $0xf8] sm:$0xff]
      %v1353 = vld [vmem:[%s1330 + $0x108] sm:$0xff]
      %v1354 = vld [vmem:[%s1330 + $0x110] sm:$0xff]
      %v1355 = vld [vmem:[%s1330 + $0x120] sm:$0xff]
      %v1356 = vld [vmem:[%s1330 + $0x128] sm:$0xff]
      %v1357 = vld [vmem:[%s1330 + $0x138] sm:$0xff]
      %v1358 = vld [vmem:[%s1330 + $0x140] sm:$0xff]
      %v1359 = vld [vmem:[%s1330 + $0x150] sm:$0xff]
      %v1360 = vld [vmem:[%s1330 + $0x158] sm:$0xff]
      %v1361 = vld [vmem:[%s1330 + $0x168] sm:$0xff]
      %v1362 = vld [vmem:[%s1330 + $0x170] sm:$0xff]
      %v1363 = vld [vmem:[%s1330 + $0x1b0] sm:$0xff]
      %v1364 = vld [vmem:[%s1330 + $0x1b8] sm:$0xff]
      %v1365 = vld [vmem:[%s1330 + $0x1c8] sm:$0xff]
      %v1366 = vld [vmem:[%s1330 + $0x1d0] sm:$0xff]
      %v1367 = vld [vmem:[%s1330 + $0x1e0] sm:$0xff]
      %v1368 = vld [vmem:[%s1330 + $0x1e8] sm:$0xff]
      %v1369 = vld [vmem:[%s1330 + $0x1f8] sm:$0xff]
      %v1370 = vld [vmem:[%s1330 + $0x200] sm:$0xff]
      %v1371 = vld [vmem:[%s1330 + $0x210] sm:$0xff]
      %v1372 = vld [vmem:[%s1330 + $0x218] sm:$0xff]
      %v1373 = vld [vmem:[%s1330 + $0x228] sm:$0xff]
      %v1374 = vld [vmem:[%s1330 + $0x230] sm:$0xff]
      %v1375 = vld [vmem:[%s1330 + $0x240] sm:$0xff]
      %v1376 = vld [vmem:[%s1330 + $0x248] sm:$0xff]
      %v1377 = vld [vmem:[%s1330 + $0x258] sm:$0xff]
      %v1378 = vld [vmem:[%s1330 + $0x260] sm:$0xff]
      %v1379 = vld [vmem:[%s1330 + $0x270] sm:$0xff]
      %v1380 = vld [vmem:[%s1330 + $0x278] sm:$0xff]
      %v1381 = vld [vmem:[%s1330 + $0x288] sm:$0xff]
      %v1382 = vld [vmem:[%s1330 + $0x290] sm:$0xff]
      %v1383 = vld [vmem:[%s1330 + $0x2a0] sm:$0xff]
      %v1384 = vld [vmem:[%s1330 + $0x2a8] sm:$0xff]
      %v1385 = vld [vmem:[%s1330 + $0x2b8] sm:$0xff]
      %v1386 = vld [vmem:[%s1330 + $0x2c0] sm:$0xff]
      %v1387 = vld [vmem:[%s1330 + $0x2d0] sm:$0xff]
      %v1388 = vld [vmem:[%s1330 + $0x2d8] sm:$0xff]
      %v1389 = vld [vmem:[%s1330 + $0x2e8] sm:$0xff]
      %v1390 = vld [vmem:[%s1330 + $0x2f0] sm:$0xff]
      %v1391 = vld [vmem:[%s1330 + $0x300] sm:$0xff]
      %v1392 = vld [vmem:[%s1330 + $0x308] sm:$0xff]
      %v1393 = vld [vmem:[%s1330 + $0x318] sm:$0xff]
      %v1394 = vld [vmem:[%s1330 + $0x320] sm:$0xff]
      %v1395 = vpack.c.bf16 %v1332, %v1331
      %v1396 = vpack.c.bf16 %v1334, %v1333
      %v1397 = vpack.c.bf16 %v1336, %v1335
      %v1398 = vpack.c.bf16 %v1338, %v1337
      %v1399 = vpack.c.bf16 %v1340, %v1339
      %v1400 = vpack.c.bf16 %v1342, %v1341
      %v1401 = vpack.c.bf16 %v1344, %v1343
      %v1402 = vpack.c.bf16 %v1346, %v1345
      %v1403 = vpack.c.bf16 %v1348, %v1347
      %v1404 = vpack.c.bf16 %v1350, %v1349
      %v1405 = vpack.c.bf16 %v1352, %v1351
      %v1406 = vpack.c.bf16 %v1354, %v1353
      %v1407 = vpack.c.bf16 %v1356, %v1355
      %v1408 = vpack.c.bf16 %v1358, %v1357
      %v1409 = vpack.c.bf16 %v1360, %v1359
      %v1410 = vpack.c.bf16 %v1362, %v1361
      %v1411 = vpack.c.bf16 %v1364, %v1363
      %v1412 = vpack.c.bf16 %v1366, %v1365
      %v1413 = vpack.c.bf16 %v1368, %v1367
      %v1414 = vpack.c.bf16 %v1370, %v1369
      %v1415 = vpack.c.bf16 %v1372, %v1371
      %v1416 = vpack.c.bf16 %v1374, %v1373
      %v1417 = vpack.c.bf16 %v1376, %v1375
      %v1418 = vpack.c.bf16 %v1378, %v1377
      %v1419 = vpack.c.bf16 %v1380, %v1379
      %v1420 = vpack.c.bf16 %v1382, %v1381
      %v1421 = vpack.c.bf16 %v1384, %v1383
      %v1422 = vpack.c.bf16 %v1386, %v1385
      %v1423 = vpack.c.bf16 %v1388, %v1387
      %v1424 = vpack.c.bf16 %v1390, %v1389
      %v1425 = vpack.c.bf16 %v1392, %v1391
      %v1426 = vpack.c.bf16 %v1394, %v1393
      %v1427 = vld [vmem:[%s1330 + $0x1] sm:$0xff]
      %v1428 = vld [vmem:[%s1330 + $0x9] sm:$0xff]
      %v1429 = vld [vmem:[%s1330 + $0x19] sm:$0xff]
      %v1430 = vld [vmem:[%s1330 + $0x21] sm:$0xff]
      %v1431 = vld [vmem:[%s1330 + $0x31] sm:$0xff]
      %v1432 = vld [vmem:[%s1330 + $0x39] sm:$0xff]
      %v1433 = vld [vmem:[%s1330 + $0x49] sm:$0xff]
      %v1434 = vld [vmem:[%s1330 + $0x51] sm:$0xff]
      %v1435 = vld [vmem:[%s1330 + $0x61] sm:$0xff]
      %v1436 = vld [vmem:[%s1330 + $0x69] sm:$0xff]
      %v1437 = vld [vmem:[%s1330 + $0x79] sm:$0xff]
      %v1438 = vld [vmem:[%s1330 + $0x81] sm:$0xff]
      %v1439 = vld [vmem:[%s1330 + $0x91] sm:$0xff]
      %v1440 = vld [vmem:[%s1330 + $0x99] sm:$0xff]
      %v1441 = vld [vmem:[%s1330 + $0xa9] sm:$0xff]
      %v1442 = vld [vmem:[%s1330 + $0xb1] sm:$0xff]
      %v1443 = vld [vmem:[%s1330 + $0xc1] sm:$0xff]
      %v1444 = vld [vmem:[%s1330 + $0xc9] sm:$0xff]
      %v1445 = vld [vmem:[%s1330 + $0xd9] sm:$0xff]
      %v1446 = vld [vmem:[%s1330 + $0xe1] sm:$0xff]
      %v1447 = vld [vmem:[%s1330 + $0xf1] sm:$0xff]
      %v1448 = vld [vmem:[%s1330 + $0xf9] sm:$0xff]
      %v1449 = vld [vmem:[%s1330 + $0x109] sm:$0xff]
      %v1450 = vld [vmem:[%s1330 + $0x111] sm:$0xff]
      %v1451 = vld [vmem:[%s1330 + $0x121] sm:$0xff]
      %v1452 = vld [vmem:[%s1330 + $0x129] sm:$0xff]
      %v1453 = vld [vmem:[%s1330 + $0x139] sm:$0xff]
      %v1454 = vld [vmem:[%s1330 + $0x141] sm:$0xff]
      %v1455 = vld [vmem:[%s1330 + $0x151] sm:$0xff]
      %v1456 = vld [vmem:[%s1330 + $0x159] sm:$0xff]
      %v1457 = vld [vmem:[%s1330 + $0x169] sm:$0xff]
      %v1458 = vld [vmem:[%s1330 + $0x171] sm:$0xff]
      %v1459 = vld [vmem:[%s1330 + $0x1b1] sm:$0xff]
      %v1460 = vld [vmem:[%s1330 + $0x1b9] sm:$0xff]
      %v1461 = vld [vmem:[%s1330 + $0x1c9] sm:$0xff]
      %v1462 = vld [vmem:[%s1330 + $0x1d1] sm:$0xff]
      %v1463 = vld [vmem:[%s1330 + $0x1e1] sm:$0xff]
      %v1464 = vld [vmem:[%s1330 + $0x1e9] sm:$0xff]
      %v1465 = vld [vmem:[%s1330 + $0x1f9] sm:$0xff]
      %v1466 = vld [vmem:[%s1330 + $0x201] sm:$0xff]
      %v1467 = vld [vmem:[%s1330 + $0x211] sm:$0xff]
      %v1468 = vld [vmem:[%s1330 + $0x219] sm:$0xff]
      %v1469 = vld [vmem:[%s1330 + $0x229] sm:$0xff]
      %v1470 = vld [vmem:[%s1330 + $0x231] sm:$0xff]
      %v1471 = vld [vmem:[%s1330 + $0x241] sm:$0xff]
      %v1472 = vld [vmem:[%s1330 + $0x249] sm:$0xff]
      %v1473 = vld [vmem:[%s1330 + $0x259] sm:$0xff]
      %v1474 = vld [vmem:[%s1330 + $0x261] sm:$0xff]
      %v1475 = vld [vmem:[%s1330 + $0x271] sm:$0xff]
      %v1476 = vld [vmem:[%s1330 + $0x279] sm:$0xff]
      %v1477 = vld [vmem:[%s1330 + $0x289] sm:$0xff]
      %v1478 = vld [vmem:[%s1330 + $0x291] sm:$0xff]
      %v1479 = vld [vmem:[%s1330 + $0x2a1] sm:$0xff]
      %v1480 = vld [vmem:[%s1330 + $0x2a9] sm:$0xff]
      %v1481 = vld [vmem:[%s1330 + $0x2b9] sm:$0xff]
      %v1482 = vld [vmem:[%s1330 + $0x2c1] sm:$0xff]
      %v1483 = vld [vmem:[%s1330 + $0x2d1] sm:$0xff]
      %v1484 = vld [vmem:[%s1330 + $0x2d9] sm:$0xff]
      %v1485 = vld [vmem:[%s1330 + $0x2e9] sm:$0xff]
      %v1486 = vld [vmem:[%s1330 + $0x2f1] sm:$0xff]
      %v1487 = vld [vmem:[%s1330 + $0x301] sm:$0xff]
      %v1488 = vld [vmem:[%s1330 + $0x309] sm:$0xff]
      %v1489 = vld [vmem:[%s1330 + $0x319] sm:$0xff]
      %v1490 = vld [vmem:[%s1330 + $0x321] sm:$0xff]
      %v1491 = vpack.c.bf16 %v1428, %v1427
      %v1492 = vpack.c.bf16 %v1430, %v1429
      %v1493 = vpack.c.bf16 %v1432, %v1431
      %v1494 = vpack.c.bf16 %v1434, %v1433
      %v1495 = vpack.c.bf16 %v1436, %v1435
      %v1496 = vpack.c.bf16 %v1438, %v1437
      %v1497 = vpack.c.bf16 %v1440, %v1439
      %v1498 = vpack.c.bf16 %v1442, %v1441
      %v1499 = vpack.c.bf16 %v1444, %v1443
      %v1500 = vpack.c.bf16 %v1446, %v1445
      %v1501 = vpack.c.bf16 %v1448, %v1447
      %v1502 = vpack.c.bf16 %v1450, %v1449
      %v1503 = vpack.c.bf16 %v1452, %v1451
      %v1504 = vpack.c.bf16 %v1454, %v1453
      %v1505 = vpack.c.bf16 %v1456, %v1455
      %v1506 = vpack.c.bf16 %v1458, %v1457
      %v1507 = vpack.c.bf16 %v1460, %v1459
      %v1508 = vpack.c.bf16 %v1462, %v1461
      %v1509 = vpack.c.bf16 %v1464, %v1463
      %v1510 = vpack.c.bf16 %v1466, %v1465
      %v1511 = vpack.c.bf16 %v1468, %v1467
      %v1512 = vpack.c.bf16 %v1470, %v1469
      %v1513 = vpack.c.bf16 %v1472, %v1471
      %v1514 = vpack.c.bf16 %v1474, %v1473
      %v1515 = vpack.c.bf16 %v1476, %v1475
      %v1516 = vpack.c.bf16 %v1478, %v1477
      %v1517 = vpack.c.bf16 %v1480, %v1479
      %v1518 = vpack.c.bf16 %v1482, %v1481
      %v1519 = vpack.c.bf16 %v1484, %v1483
      %v1520 = vpack.c.bf16 %v1486, %v1485
      %v1521 = vpack.c.bf16 %v1488, %v1487
      %v1522 = vpack.c.bf16 %v1490, %v1489
      %v1523 = vld [vmem:[%s1330 + $0x2] sm:$0xff]
      %v1524 = vld [vmem:[%s1330 + $0xa] sm:$0xff]
      %v1525 = vld [vmem:[%s1330 + $0x1a] sm:$0xff]
      %v1526 = vld [vmem:[%s1330 + $0x22] sm:$0xff]
      %v1527 = vld [vmem:[%s1330 + $0x32] sm:$0xff]
      %v1528 = vld [vmem:[%s1330 + $0x3a] sm:$0xff]
      %v1529 = vld [vmem:[%s1330 + $0x4a] sm:$0xff]
      %v1530 = vld [vmem:[%s1330 + $0x52] sm:$0xff]
      %v1531 = vld [vmem:[%s1330 + $0x62] sm:$0xff]
      %v1532 = vld [vmem:[%s1330 + $0x6a] sm:$0xff]
      %v1533 = vld [vmem:[%s1330 + $0x7a] sm:$0xff]
      %v1534 = vld [vmem:[%s1330 + $0x82] sm:$0xff]
      %v1535 = vld [vmem:[%s1330 + $0x92] sm:$0xff]
      %v1536 = vld [vmem:[%s1330 + $0x9a] sm:$0xff]
      %v1537 = vld [vmem:[%s1330 + $0xaa] sm:$0xff]
      %v1538 = vld [vmem:[%s1330 + $0xb2] sm:$0xff]
      %v1539 = vld [vmem:[%s1330 + $0xc2] sm:$0xff]
      %v1540 = vld [vmem:[%s1330 + $0xca] sm:$0xff]
      %v1541 = vld [vmem:[%s1330 + $0xda] sm:$0xff]
      %v1542 = vld [vmem:[%s1330 + $0xe2] sm:$0xff]
      %v1543 = vld [vmem:[%s1330 + $0xf2] sm:$0xff]
      %v1544 = vld [vmem:[%s1330 + $0xfa] sm:$0xff]
      %v1545 = vld [vmem:[%s1330 + $0x10a] sm:$0xff]
      %v1546 = vld [vmem:[%s1330 + $0x112] sm:$0xff]
      %v1547 = vld [vmem:[%s1330 + $0x122] sm:$0xff]
      %v1548 = vld [vmem:[%s1330 + $0x12a] sm:$0xff]
      %v1549 = vld [vmem:[%s1330 + $0x13a] sm:$0xff]
      %v1550 = vld [vmem:[%s1330 + $0x142] sm:$0xff]
      %v1551 = vld [vmem:[%s1330 + $0x152] sm:$0xff]
      %v1552 = vld [vmem:[%s1330 + $0x15a] sm:$0xff]
      %v1553 = vld [vmem:[%s1330 + $0x16a] sm:$0xff]
      %v1554 = vld [vmem:[%s1330 + $0x172] sm:$0xff]
      %v1555 = vld [vmem:[%s1330 + $0x1b2] sm:$0xff]
      %v1556 = vld [vmem:[%s1330 + $0x1ba] sm:$0xff]
      %v1557 = vld [vmem:[%s1330 + $0x1ca] sm:$0xff]
      %v1558 = vld [vmem:[%s1330 + $0x1d2] sm:$0xff]
      %v1559 = vld [vmem:[%s1330 + $0x1e2] sm:$0xff]
      %v1560 = vld [vmem:[%s1330 + $0x1ea] sm:$0xff]
      %v1561 = vld [vmem:[%s1330 + $0x1fa] sm:$0xff]
      %v1562 = vld [vmem:[%s1330 + $0x202] sm:$0xff]
      %v1563 = vld [vmem:[%s1330 + $0x212] sm:$0xff]
      %v1564 = vld [vmem:[%s1330 + $0x21a] sm:$0xff]
      %v1565 = vld [vmem:[%s1330 + $0x22a] sm:$0xff]
      %v1566 = vld [vmem:[%s1330 + $0x232] sm:$0xff]
      %v1567 = vld [vmem:[%s1330 + $0x242] sm:$0xff]
      %v1568 = vld [vmem:[%s1330 + $0x24a] sm:$0xff]
      %v1569 = vld [vmem:[%s1330 + $0x25a] sm:$0xff]
      %v1570 = vld [vmem:[%s1330 + $0x262] sm:$0xff]
      %v1571 = vld [vmem:[%s1330 + $0x272] sm:$0xff]
      %v1572 = vld [vmem:[%s1330 + $0x27a] sm:$0xff]
      %v1573 = vld [vmem:[%s1330 + $0x28a] sm:$0xff]
      %v1574 = vld [vmem:[%s1330 + $0x292] sm:$0xff]
      %v1575 = vld [vmem:[%s1330 + $0x2a2] sm:$0xff]
      %v1576 = vld [vmem:[%s1330 + $0x2aa] sm:$0xff]
      %v1577 = vld [vmem:[%s1330 + $0x2ba] sm:$0xff]
      %v1578 = vld [vmem:[%s1330 + $0x2c2] sm:$0xff]
      %v1579 = vld [vmem:[%s1330 + $0x2d2] sm:$0xff]
      %v1580 = vld [vmem:[%s1330 + $0x2da] sm:$0xff]
      %v1581 = vld [vmem:[%s1330 + $0x2ea] sm:$0xff]
      %v1582 = vld [vmem:[%s1330 + $0x2f2] sm:$0xff]
      %v1583 = vld [vmem:[%s1330 + $0x302] sm:$0xff]
      %v1584 = vld [vmem:[%s1330 + $0x30a] sm:$0xff]
      %v1585 = vld [vmem:[%s1330 + $0x31a] sm:$0xff]
      %v1586 = vld [vmem:[%s1330 + $0x322] sm:$0xff]
      %v1587 = vpack.c.bf16 %v1524, %v1523
      %v1588 = vpack.c.bf16 %v1526, %v1525
      %v1589 = vpack.c.bf16 %v1528, %v1527
      %v1590 = vpack.c.bf16 %v1530, %v1529
      %v1591 = vpack.c.bf16 %v1532, %v1531
      %v1592 = vpack.c.bf16 %v1534, %v1533
      %v1593 = vpack.c.bf16 %v1536, %v1535
      %v1594 = vpack.c.bf16 %v1538, %v1537
      %v1595 = vpack.c.bf16 %v1540, %v1539
      %v1596 = vpack.c.bf16 %v1542, %v1541
      %v1597 = vpack.c.bf16 %v1544, %v1543
      %v1598 = vpack.c.bf16 %v1546, %v1545
      %v1599 = vpack.c.bf16 %v1548, %v1547
      %v1600 = vpack.c.bf16 %v1550, %v1549
      %v1601 = vpack.c.bf16 %v1552, %v1551
      %v1602 = vpack.c.bf16 %v1554, %v1553
      %v1603 = vpack.c.bf16 %v1556, %v1555
      %v1604 = vpack.c.bf16 %v1558, %v1557
      %v1605 = vpack.c.bf16 %v1560, %v1559
      %v1606 = vpack.c.bf16 %v1562, %v1561
      %v1607 = vpack.c.bf16 %v1564, %v1563
      %v1608 = vpack.c.bf16 %v1566, %v1565
      %v1609 = vpack.c.bf16 %v1568, %v1567
      %v1610 = vpack.c.bf16 %v1570, %v1569
      %v1611 = vpack.c.bf16 %v1572, %v1571
      %v1612 = vpack.c.bf16 %v1574, %v1573
      %v1613 = vpack.c.bf16 %v1576, %v1575
      %v1614 = vpack.c.bf16 %v1578, %v1577
      %v1615 = vpack.c.bf16 %v1580, %v1579
      %v1616 = vpack.c.bf16 %v1582, %v1581
      %v1617 = vpack.c.bf16 %v1584, %v1583
      %v1618 = vpack.c.bf16 %v1586, %v1585
      %1651 = vrot.lane.b32.xlu0 %v914, 4
      %v1652 = vpop.permute.xlu0 %1651
      %1653 = vrot.lane.b32.xlu0 %v915, 4
      %v1654 = vpop.permute.xlu0 %1653
      %1655 = vrot.lane.b32.xlu0 %v916, 4
      %v1656 = vpop.permute.xlu0 %1655
      %1657 = vrot.lane.b32.xlu0 %v917, 4
      %v1658 = vpop.permute.xlu0 %1657
      %1659 = vrot.lane.b32.xlu0 %v918, 4
      %v1660 = vpop.permute.xlu0 %1659
      %1661 = vrot.lane.b32.xlu0 %v919, 4
      %v1662 = vpop.permute.xlu0 %1661
      %1663 = vrot.lane.b32.xlu0 %v920, 4
      %v1664 = vpop.permute.xlu0 %1663
      %1665 = vrot.lane.b32.xlu0 %v921, 4
      %v1666 = vpop.permute.xlu0 %1665
      %1667 = vrot.lane.b32.xlu0 %v922, 4
      %v1668 = vpop.permute.xlu0 %1667
      %1669 = vrot.lane.b32.xlu0 %v923, 4
      %v1670 = vpop.permute.xlu0 %1669
      %1671 = vrot.lane.b32.xlu0 %v924, 4
      %v1672 = vpop.permute.xlu0 %1671
      %1673 = vrot.lane.b32.xlu0 %v925, 4
      %v1674 = vpop.permute.xlu0 %1673
      %1675 = vrot.lane.b32.xlu0 %v926, 4
      %v1676 = vpop.permute.xlu0 %1675
      %1677 = vrot.lane.b32.xlu0 %v927, 4
      %v1678 = vpop.permute.xlu0 %1677
      %1679 = vrot.lane.b32.xlu0 %v928, 4
      %v1680 = vpop.permute.xlu0 %1679
      %1681 = vrot.lane.b32.xlu0 %v929, 4
      %v1682 = vpop.permute.xlu0 %1681
      %1683 = vrot.lane.b32.xlu0 %v930, 4
      %v1684 = vpop.permute.xlu0 %1683
      %1685 = vrot.lane.b32.xlu0 %v931, 4
      %v1686 = vpop.permute.xlu0 %1685
      %1687 = vrot.lane.b32.xlu0 %v932, 4
      %v1688 = vpop.permute.xlu0 %1687
      %1689 = vrot.lane.b32.xlu0 %v933, 4
      %v1690 = vpop.permute.xlu0 %1689
      %1691 = vrot.lane.b32.xlu0 %v934, 4
      %v1692 = vpop.permute.xlu0 %1691
      %1693 = vrot.lane.b32.xlu0 %v935, 4
      %v1694 = vpop.permute.xlu0 %1693
      %1695 = vrot.lane.b32.xlu0 %v936, 4
      %v1696 = vpop.permute.xlu0 %1695
      %1697 = vrot.lane.b32.xlu0 %v937, 4
      %v1698 = vpop.permute.xlu0 %1697
      %1699 = vrot.lane.b32.xlu0 %v938, 4
      %v1700 = vpop.permute.xlu0 %1699
      %1701 = vrot.lane.b32.xlu0 %v939, 4
      %v1702 = vpop.permute.xlu0 %1701
      %1703 = vrot.lane.b32.xlu0 %v940, 4
      %v1704 = vpop.permute.xlu0 %1703
      %1705 = vrot.lane.b32.xlu0 %v941, 4
      %v1706 = vpop.permute.xlu0 %1705
      %1707 = vrot.lane.b32.xlu0 %v942, 4
      %v1708 = vpop.permute.xlu0 %1707
      %1709 = vrot.lane.b32.xlu0 %v943, 4
      %v1710 = vpop.permute.xlu0 %1709
      %1711 = vrot.lane.b32.xlu0 %v944, 4
      %v1712 = vpop.permute.xlu0 %1711
      %1713 = vrot.lane.b32.xlu0 %v945, 4
      %v1714 = vpop.permute.xlu0 %1713
      %1747 = vrot.lane.b32.xlu0 %v1010, 8
      %v1748 = vpop.permute.xlu0 %1747
      %1749 = vrot.lane.b32.xlu0 %v1011, 8
      %v1750 = vpop.permute.xlu0 %1749
      %1751 = vrot.lane.b32.xlu0 %v1012, 8
      %v1752 = vpop.permute.xlu0 %1751
      %1753 = vrot.lane.b32.xlu0 %v1013, 8
      %v1754 = vpop.permute.xlu0 %1753
      %1755 = vrot.lane.b32.xlu0 %v1014, 8
      %v1756 = vpop.permute.xlu0 %1755
      %1757 = vrot.lane.b32.xlu0 %v1015, 8
      %v1758 = vpop.permute.xlu0 %1757
      %1759 = vrot.lane.b32.xlu0 %v1016, 8
      %v1760 = vpop.permute.xlu0 %1759
      %1761 = vrot.lane.b32.xlu0 %v1017, 8
      %v1762 = vpop.permute.xlu0 %1761
      %1763 = vrot.lane.b32.xlu0 %v1018, 8
      %v1764 = vpop.permute.xlu0 %1763
      %1765 = vrot.lane.b32.xlu0 %v1019, 8
      %v1766 = vpop.permute.xlu0 %1765
      %1767 = vrot.lane.b32.xlu0 %v1020, 8
      %v1768 = vpop.permute.xlu0 %1767
      %1769 = vrot.lane.b32.xlu0 %v1021, 8
      %v1770 = vpop.permute.xlu0 %1769
      %1771 = vrot.lane.b32.xlu0 %v1022, 8
      %v1772 = vpop.permute.xlu0 %1771
      %1773 = vrot.lane.b32.xlu0 %v1023, 8
      %v1774 = vpop.permute.xlu0 %1773
      %1775 = vrot.lane.b32.xlu0 %v1024, 8
      %v1776 = vpop.permute.xlu0 %1775
      %1777 = vrot.lane.b32.xlu0 %v1025, 8
      %v1778 = vpop.permute.xlu0 %1777
      %1779 = vrot.lane.b32.xlu0 %v1026, 8
      %v1780 = vpop.permute.xlu0 %1779
      %1781 = vrot.lane.b32.xlu0 %v1027, 8
      %v1782 = vpop.permute.xlu0 %1781
      %1783 = vrot.lane.b32.xlu0 %v1028, 8
      %v1784 = vpop.permute.xlu0 %1783
      %1785 = vrot.lane.b32.xlu0 %v1029, 8
      %v1786 = vpop.permute.xlu0 %1785
      %1787 = vrot.lane.b32.xlu0 %v1030, 8
      %v1788 = vpop.permute.xlu0 %1787
      %1789 = vrot.lane.b32.xlu0 %v1031, 8
      %v1790 = vpop.permute.xlu0 %1789
      %1791 = vrot.lane.b32.xlu0 %v1032, 8
      %v1792 = vpop.permute.xlu0 %1791
      %1793 = vrot.lane.b32.xlu0 %v1033, 8
      %v1794 = vpop.permute.xlu0 %1793
      %1795 = vrot.lane.b32.xlu0 %v1034, 8
      %v1796 = vpop.permute.xlu0 %1795
      %1797 = vrot.lane.b32.xlu0 %v1035, 8
      %v1798 = vpop.permute.xlu0 %1797
      %1799 = vrot.lane.b32.xlu0 %v1036, 8
      %v1800 = vpop.permute.xlu0 %1799
      %1801 = vrot.lane.b32.xlu0 %v1037, 8
      %v1802 = vpop.permute.xlu0 %1801
      %1803 = vrot.lane.b32.xlu0 %v1038, 8
      %v1804 = vpop.permute.xlu0 %1803
      %1805 = vrot.lane.b32.xlu0 %v1039, 8
      %v1806 = vpop.permute.xlu0 %1805
      %1807 = vrot.lane.b32.xlu0 %v1040, 8
      %v1808 = vpop.permute.xlu0 %1807
      %1809 = vrot.lane.b32.xlu0 %v1041, 8
      %v1810 = vpop.permute.xlu0 %1809
      %1843 = vrot.lane.b32.xlu0 %v1106, 12
      %v1844 = vpop.permute.xlu0 %1843
      %1845 = vrot.lane.b32.xlu0 %v1107, 12
      %v1846 = vpop.permute.xlu0 %1845
      %1847 = vrot.lane.b32.xlu0 %v1108, 12
      %v1848 = vpop.permute.xlu0 %1847
      %1849 = vrot.lane.b32.xlu0 %v1109, 12
      %v1850 = vpop.permute.xlu0 %1849
      %1851 = vrot.lane.b32.xlu0 %v1110, 12
      %v1852 = vpop.permute.xlu0 %1851
      %1853 = vrot.lane.b32.xlu0 %v1111, 12
      %v1854 = vpop.permute.xlu0 %1853
      %1855 = vrot.lane.b32.xlu0 %v1112, 12
      %v1856 = vpop.permute.xlu0 %1855
      %1857 = vrot.lane.b32.xlu0 %v1113, 12
      %v1858 = vpop.permute.xlu0 %1857
      %1859 = vrot.lane.b32.xlu0 %v1114, 12
      %v1860 = vpop.permute.xlu0 %1859
      %1861 = vrot.lane.b32.xlu0 %v1115, 12
      %v1862 = vpop.permute.xlu0 %1861
      %1863 = vrot.lane.b32.xlu0 %v1116, 12
      %v1864 = vpop.permute.xlu0 %1863
      %1865 = vrot.lane.b32.xlu0 %v1117, 12
      %v1866 = vpop.permute.xlu0 %1865
      %1867 = vrot.lane.b32.xlu0 %v1118, 12
      %v1868 = vpop.permute.xlu0 %1867
      %1869 = vrot.lane.b32.xlu0 %v1119, 12
      %v1870 = vpop.permute.xlu0 %1869
      %1871 = vrot.lane.b32.xlu0 %v1120, 12
      %v1872 = vpop.permute.xlu0 %1871
      %1873 = vrot.lane.b32.xlu0 %v1121, 12
      %v1874 = vpop.permute.xlu0 %1873
      %1875 = vrot.lane.b32.xlu0 %v1122, 12
      %v1876 = vpop.permute.xlu0 %1875
      %1877 = vrot.lane.b32.xlu0 %v1123, 12
      %v1878 = vpop.permute.xlu0 %1877
      %1879 = vrot.lane.b32.xlu0 %v1124, 12
      %v1880 = vpop.permute.xlu0 %1879
      %1881 = vrot.lane.b32.xlu0 %v1125, 12
      %v1882 = vpop.permute.xlu0 %1881
      %1883 = vrot.lane.b32.xlu0 %v1126, 12
      %v1884 = vpop.permute.xlu0 %1883
      %1885 = vrot.lane.b32.xlu0 %v1127, 12
      %v1886 = vpop.permute.xlu0 %1885
      %1887 = vrot.lane.b32.xlu0 %v1128, 12
      %v1888 = vpop.permute.xlu0 %1887
      %1889 = vrot.lane.b32.xlu0 %v1129, 12
      %v1890 = vpop.permute.xlu0 %1889
      %1891 = vrot.lane.b32.xlu0 %v1130, 12
      %v1892 = vpop.permute.xlu0 %1891
      %1893 = vrot.lane.b32.xlu0 %v1131, 12
      %v1894 = vpop.permute.xlu0 %1893
      %1895 = vrot.lane.b32.xlu0 %v1132, 12
      %v1896 = vpop.permute.xlu0 %1895
      %1897 = vrot.lane.b32.xlu0 %v1133, 12
      %v1898 = vpop.permute.xlu0 %1897
      %1899 = vrot.lane.b32.xlu0 %v1134, 12
      %v1900 = vpop.permute.xlu0 %1899
      %1901 = vrot.lane.b32.xlu0 %v1135, 12
      %v1902 = vpop.permute.xlu0 %1901
      %1903 = vrot.lane.b32.xlu0 %v1136, 12
      %v1904 = vpop.permute.xlu0 %1903
      %1905 = vrot.lane.b32.xlu0 %v1137, 12
      %v1906 = vpop.permute.xlu0 %1905
      %1939 = vrot.lane.b32.xlu0 %v1202, 16
      %v1940 = vpop.permute.xlu0 %1939
      %1941 = vrot.lane.b32.xlu0 %v1203, 16
      %v1942 = vpop.permute.xlu0 %1941
      %1943 = vrot.lane.b32.xlu0 %v1204, 16
      %v1944 = vpop.permute.xlu0 %1943
      %1945 = vrot.lane.b32.xlu0 %v1205, 16
      %v1946 = vpop.permute.xlu0 %1945
      %1947 = vrot.lane.b32.xlu0 %v1206, 16
      %v1948 = vpop.permute.xlu0 %1947
      %1949 = vrot.lane.b32.xlu0 %v1207, 16
      %v1950 = vpop.permute.xlu0 %1949
      %1951 = vrot.lane.b32.xlu0 %v1208, 16
      %v1952 = vpop.permute.xlu0 %1951
      %1953 = vrot.lane.b32.xlu0 %v1209, 16
      %v1954 = vpop.permute.xlu0 %1953
      %1955 = vrot.lane.b32.xlu0 %v1210, 16
      %v1956 = vpop.permute.xlu0 %1955
      %1957 = vrot.lane.b32.xlu0 %v1211, 16
      %v1958 = vpop.permute.xlu0 %1957
      %1959 = vrot.lane.b32.xlu0 %v1212, 16
      %v1960 = vpop.permute.xlu0 %1959
      %1961 = vrot.lane.b32.xlu0 %v1213, 16
      %v1962 = vpop.permute.xlu0 %1961
      %1963 = vrot.lane.b32.xlu0 %v1214, 16
      %v1964 = vpop.permute.xlu0 %1963
      %1965 = vrot.lane.b32.xlu0 %v1215, 16
      %v1966 = vpop.permute.xlu0 %1965
      %1967 = vrot.lane.b32.xlu0 %v1216, 16
      %v1968 = vpop.permute.xlu0 %1967
      %1969 = vrot.lane.b32.xlu0 %v1217, 16
      %v1970 = vpop.permute.xlu0 %1969
      %1971 = vrot.lane.b32.xlu0 %v1218, 16
      %v1972 = vpop.permute.xlu0 %1971
      %1973 = vrot.lane.b32.xlu0 %v1219, 16
      %v1974 = vpop.permute.xlu0 %1973
      %1975 = vrot.lane.b32.xlu0 %v1220, 16
      %v1976 = vpop.permute.xlu0 %1975
      %1977 = vrot.lane.b32.xlu0 %v1221, 16
      %v1978 = vpop.permute.xlu0 %1977
      %1979 = vrot.lane.b32.xlu0 %v1222, 16
      %v1980 = vpop.permute.xlu0 %1979
      %1981 = vrot.lane.b32.xlu0 %v1223, 16
      %v1982 = vpop.permute.xlu0 %1981
      %1983 = vrot.lane.b32.xlu0 %v1224, 16
      %v1984 = vpop.permute.xlu0 %1983
      %1985 = vrot.lane.b32.xlu0 %v1225, 16
      %v1986 = vpop.permute.xlu0 %1985
      %1987 = vrot.lane.b32.xlu0 %v1226, 16
      %v1988 = vpop.permute.xlu0 %1987
      %1989 = vrot.lane.b32.xlu0 %v1227, 16
      %v1990 = vpop.permute.xlu0 %1989
      %1991 = vrot.lane.b32.xlu0 %v1228, 16
      %v1992 = vpop.permute.xlu0 %1991
      %1993 = vrot.lane.b32.xlu0 %v1229, 16
      %v1994 = vpop.permute.xlu0 %1993
      %1995 = vrot.lane.b32.xlu0 %v1230, 16
      %v1996 = vpop.permute.xlu0 %1995
      %1997 = vrot.lane.b32.xlu0 %v1231, 16
      %v1998 = vpop.permute.xlu0 %1997
      %1999 = vrot.lane.b32.xlu0 %v1232, 16
      %v2000 = vpop.permute.xlu0 %1999
      %2001 = vrot.lane.b32.xlu0 %v1233, 16
      %v2002 = vpop.permute.xlu0 %2001
      %2035 = vrot.lane.b32.xlu0 %v1298, 20
      %v2036 = vpop.permute.xlu0 %2035
      %2037 = vrot.lane.b32.xlu0 %v1299, 20
      %v2038 = vpop.permute.xlu0 %2037
      %2039 = vrot.lane.b32.xlu0 %v1300, 20
      %v2040 = vpop.permute.xlu0 %2039
      %2041 = vrot.lane.b32.xlu0 %v1301, 20
      %v2042 = vpop.permute.xlu0 %2041
      %2043 = vrot.lane.b32.xlu0 %v1302, 20
      %v2044 = vpop.permute.xlu0 %2043
      %2045 = vrot.lane.b32.xlu0 %v1303, 20
      %v2046 = vpop.permute.xlu0 %2045
      %2047 = vrot.lane.b32.xlu0 %v1304, 20
      %v2048 = vpop.permute.xlu0 %2047
      %2049 = vrot.lane.b32.xlu0 %v1305, 20
      %v2050 = vpop.permute.xlu0 %2049
      %2051 = vrot.lane.b32.xlu0 %v1306, 20
      %v2052 = vpop.permute.xlu0 %2051
      %2053 = vrot.lane.b32.xlu0 %v1307, 20
      %v2054 = vpop.permute.xlu0 %2053
      %2055 = vrot.lane.b32.xlu0 %v1308, 20
      %v2056 = vpop.permute.xlu0 %2055
      %2057 = vrot.lane.b32.xlu0 %v1309, 20
      %v2058 = vpop.permute.xlu0 %2057
      %2059 = vrot.lane.b32.xlu0 %v1310, 20
      %v2060 = vpop.permute.xlu0 %2059
      %2061 = vrot.lane.b32.xlu0 %v1311, 20
      %v2062 = vpop.permute.xlu0 %2061
      %2063 = vrot.lane.b32.xlu0 %v1312, 20
      %v2064 = vpop.permute.xlu0 %2063
      %2065 = vrot.lane.b32.xlu0 %v1313, 20
      %v2066 = vpop.permute.xlu0 %2065
      %2067 = vrot.lane.b32.xlu0 %v1314, 20
      %v2068 = vpop.permute.xlu0 %2067
      %2069 = vrot.lane.b32.xlu0 %v1315, 20
      %v2070 = vpop.permute.xlu0 %2069
      %2071 = vrot.lane.b32.xlu0 %v1316, 20
      %v2072 = vpop.permute.xlu0 %2071
      %2073 = vrot.lane.b32.xlu0 %v1317, 20
      %v2074 = vpop.permute.xlu0 %2073
      %2075 = vrot.lane.b32.xlu0 %v1318, 20
      %v2076 = vpop.permute.xlu0 %2075
      %2077 = vrot.lane.b32.xlu0 %v1319, 20
      %v2078 = vpop.permute.xlu0 %2077
      %2079 = vrot.lane.b32.xlu0 %v1320, 20
      %v2080 = vpop.permute.xlu0 %2079
      %2081 = vrot.lane.b32.xlu0 %v1321, 20
      %v2082 = vpop.permute.xlu0 %2081
      %2083 = vrot.lane.b32.xlu0 %v1322, 20
      %v2084 = vpop.permute.xlu0 %2083
      %2085 = vrot.lane.b32.xlu0 %v1323, 20
      %v2086 = vpop.permute.xlu0 %2085
      %2087 = vrot.lane.b32.xlu0 %v1324, 20
      %v2088 = vpop.permute.xlu0 %2087
      %2089 = vrot.lane.b32.xlu0 %v1325, 20
      %v2090 = vpop.permute.xlu0 %2089
      %2091 = vrot.lane.b32.xlu0 %v1326, 20
      %v2092 = vpop.permute.xlu0 %2091
      %2093 = vrot.lane.b32.xlu0 %v1327, 20
      %v2094 = vpop.permute.xlu0 %2093
      %2095 = vrot.lane.b32.xlu0 %v1328, 20
      %v2096 = vpop.permute.xlu0 %2095
      %2097 = vrot.lane.b32.xlu0 %v1329, 20
      %v2098 = vpop.permute.xlu0 %2097
      %2131 = vrot.lane.b32.xlu0 %v1395, 24
      %v2132 = vpop.permute.xlu0 %2131
      %2133 = vrot.lane.b32.xlu0 %v1396, 24
      %v2134 = vpop.permute.xlu0 %2133
      %2135 = vrot.lane.b32.xlu0 %v1397, 24
      %v2136 = vpop.permute.xlu0 %2135
      %2137 = vrot.lane.b32.xlu0 %v1398, 24
      %v2138 = vpop.permute.xlu0 %2137
      %2139 = vrot.lane.b32.xlu0 %v1399, 24
      %v2140 = vpop.permute.xlu0 %2139
      %2141 = vrot.lane.b32.xlu0 %v1400, 24
      %v2142 = vpop.permute.xlu0 %2141
      %2143 = vrot.lane.b32.xlu0 %v1401, 24
      %v2144 = vpop.permute.xlu0 %2143
      %2145 = vrot.lane.b32.xlu0 %v1402, 24
      %v2146 = vpop.permute.xlu0 %2145
      %2147 = vrot.lane.b32.xlu0 %v1403, 24
      %v2148 = vpop.permute.xlu0 %2147
      %2149 = vrot.lane.b32.xlu0 %v1404, 24
      %v2150 = vpop.permute.xlu0 %2149
      %2151 = vrot.lane.b32.xlu0 %v1405, 24
      %v2152 = vpop.permute.xlu0 %2151
      %2153 = vrot.lane.b32.xlu0 %v1406, 24
      %v2154 = vpop.permute.xlu0 %2153
      %2155 = vrot.lane.b32.xlu0 %v1407, 24
      %v2156 = vpop.permute.xlu0 %2155
      %2157 = vrot.lane.b32.xlu0 %v1408, 24
      %v2158 = vpop.permute.xlu0 %2157
      %2159 = vrot.lane.b32.xlu0 %v1409, 24
      %v2160 = vpop.permute.xlu0 %2159
      %2161 = vrot.lane.b32.xlu0 %v1410, 24
      %v2162 = vpop.permute.xlu0 %2161
      %2163 = vrot.lane.b32.xlu0 %v1411, 24
      %v2164 = vpop.permute.xlu0 %2163
      %2165 = vrot.lane.b32.xlu0 %v1412, 24
      %v2166 = vpop.permute.xlu0 %2165
      %2167 = vrot.lane.b32.xlu0 %v1413, 24
      %v2168 = vpop.permute.xlu0 %2167
      %2169 = vrot.lane.b32.xlu0 %v1414, 24
      %v2170 = vpop.permute.xlu0 %2169
      %2171 = vrot.lane.b32.xlu0 %v1415, 24
      %v2172 = vpop.permute.xlu0 %2171
      %2173 = vrot.lane.b32.xlu0 %v1416, 24
      %v2174 = vpop.permute.xlu0 %2173
      %2175 = vrot.lane.b32.xlu0 %v1417, 24
      %v2176 = vpop.permute.xlu0 %2175
      %2177 = vrot.lane.b32.xlu0 %v1418, 24
      %v2178 = vpop.permute.xlu0 %2177
      %2179 = vrot.lane.b32.xlu0 %v1419, 24
      %v2180 = vpop.permute.xlu0 %2179
      %2181 = vrot.lane.b32.xlu0 %v1420, 24
      %v2182 = vpop.permute.xlu0 %2181
      %2183 = vrot.lane.b32.xlu0 %v1421, 24
      %v2184 = vpop.permute.xlu0 %2183
      %2185 = vrot.lane.b32.xlu0 %v1422, 24
      %v2186 = vpop.permute.xlu0 %2185
      %2187 = vrot.lane.b32.xlu0 %v1423, 24
      %v2188 = vpop.permute.xlu0 %2187
      %2189 = vrot.lane.b32.xlu0 %v1424, 24
      %v2190 = vpop.permute.xlu0 %2189
      %2191 = vrot.lane.b32.xlu0 %v1425, 24
      %v2192 = vpop.permute.xlu0 %2191
      %2193 = vrot.lane.b32.xlu0 %v1426, 24
      %v2194 = vpop.permute.xlu0 %2193
      %2227 = vrot.lane.b32.xlu0 %v1491, 28
      %v2228 = vpop.permute.xlu0 %2227
      %2229 = vrot.lane.b32.xlu0 %v1492, 28
      %v2230 = vpop.permute.xlu0 %2229
      %2231 = vrot.lane.b32.xlu0 %v1493, 28
      %v2232 = vpop.permute.xlu0 %2231
      %2233 = vrot.lane.b32.xlu0 %v1494, 28
      %v2234 = vpop.permute.xlu0 %2233
      %2235 = vrot.lane.b32.xlu0 %v1495, 28
      %v2236 = vpop.permute.xlu0 %2235
      %2237 = vrot.lane.b32.xlu0 %v1496, 28
      %v2238 = vpop.permute.xlu0 %2237
      %2239 = vrot.lane.b32.xlu0 %v1497, 28
      %v2240 = vpop.permute.xlu0 %2239
      %2241 = vrot.lane.b32.xlu0 %v1498, 28
      %v2242 = vpop.permute.xlu0 %2241
      %2243 = vrot.lane.b32.xlu0 %v1499, 28
      %v2244 = vpop.permute.xlu0 %2243
      %2245 = vrot.lane.b32.xlu0 %v1500, 28
      %v2246 = vpop.permute.xlu0 %2245
      %2247 = vrot.lane.b32.xlu0 %v1501, 28
      %v2248 = vpop.permute.xlu0 %2247
      %2249 = vrot.lane.b32.xlu0 %v1502, 28
      %v2250 = vpop.permute.xlu0 %2249
      %2251 = vrot.lane.b32.xlu0 %v1503, 28
      %v2252 = vpop.permute.xlu0 %2251
      %2253 = vrot.lane.b32.xlu0 %v1504, 28
      %v2254 = vpop.permute.xlu0 %2253
      %2255 = vrot.lane.b32.xlu0 %v1505, 28
      %v2256 = vpop.permute.xlu0 %2255
      %2257 = vrot.lane.b32.xlu0 %v1506, 28
      %v2258 = vpop.permute.xlu0 %2257
      %2259 = vrot.lane.b32.xlu0 %v1507, 28
      %v2260 = vpop.permute.xlu0 %2259
      %2261 = vrot.lane.b32.xlu0 %v1508, 28
      %v2262 = vpop.permute.xlu0 %2261
      %2263 = vrot.lane.b32.xlu0 %v1509, 28
      %v2264 = vpop.permute.xlu0 %2263
      %2265 = vrot.lane.b32.xlu0 %v1510, 28
      %v2266 = vpop.permute.xlu0 %2265
      %2267 = vrot.lane.b32.xlu0 %v1511, 28
      %v2268 = vpop.permute.xlu0 %2267
      %2269 = vrot.lane.b32.xlu0 %v1512, 28
      %v2270 = vpop.permute.xlu0 %2269
      %2271 = vrot.lane.b32.xlu0 %v1513, 28
      %v2272 = vpop.permute.xlu0 %2271
      %2273 = vrot.lane.b32.xlu0 %v1514, 28
      %v2274 = vpop.permute.xlu0 %2273
      %2275 = vrot.lane.b32.xlu0 %v1515, 28
      %v2276 = vpop.permute.xlu0 %2275
      %2277 = vrot.lane.b32.xlu0 %v1516, 28
      %v2278 = vpop.permute.xlu0 %2277
      %2279 = vrot.lane.b32.xlu0 %v1517, 28
      %v2280 = vpop.permute.xlu0 %2279
      %2281 = vrot.lane.b32.xlu0 %v1518, 28
      %v2282 = vpop.permute.xlu0 %2281
      %2283 = vrot.lane.b32.xlu0 %v1519, 28
      %v2284 = vpop.permute.xlu0 %2283
      %2285 = vrot.lane.b32.xlu0 %v1520, 28
      %v2286 = vpop.permute.xlu0 %2285
      %2287 = vrot.lane.b32.xlu0 %v1521, 28
      %v2288 = vpop.permute.xlu0 %2287
      %2289 = vrot.lane.b32.xlu0 %v1522, 28
      %v2290 = vpop.permute.xlu0 %2289
      %2323 = vrot.lane.b32.xlu0 %v1587, 32
      %v2324 = vpop.permute.xlu0 %2323
      %2325 = vrot.lane.b32.xlu0 %v1588, 32
      %v2326 = vpop.permute.xlu0 %2325
      %2327 = vrot.lane.b32.xlu0 %v1589, 32
      %v2328 = vpop.permute.xlu0 %2327
      %2329 = vrot.lane.b32.xlu0 %v1590, 32
      %v2330 = vpop.permute.xlu0 %2329
      %2331 = vrot.lane.b32.xlu0 %v1591, 32
      %v2332 = vpop.permute.xlu0 %2331
      %2333 = vrot.lane.b32.xlu0 %v1592, 32
      %v2334 = vpop.permute.xlu0 %2333
      %2335 = vrot.lane.b32.xlu0 %v1593, 32
      %v2336 = vpop.permute.xlu0 %2335
      %2337 = vrot.lane.b32.xlu0 %v1594, 32
      %v2338 = vpop.permute.xlu0 %2337
      %2339 = vrot.lane.b32.xlu0 %v1595, 32
      %v2340 = vpop.permute.xlu0 %2339
      %2341 = vrot.lane.b32.xlu0 %v1596, 32
      %v2342 = vpop.permute.xlu0 %2341
      %2343 = vrot.lane.b32.xlu0 %v1597, 32
      %v2344 = vpop.permute.xlu0 %2343
      %2345 = vrot.lane.b32.xlu0 %v1598, 32
      %v2346 = vpop.permute.xlu0 %2345
      %2347 = vrot.lane.b32.xlu0 %v1599, 32
      %v2348 = vpop.permute.xlu0 %2347
      %2349 = vrot.lane.b32.xlu0 %v1600, 32
      %v2350 = vpop.permute.xlu0 %2349
      %2351 = vrot.lane.b32.xlu0 %v1601, 32
      %v2352 = vpop.permute.xlu0 %2351
      %2353 = vrot.lane.b32.xlu0 %v1602, 32
      %v2354 = vpop.permute.xlu0 %2353
      %2355 = vrot.lane.b32.xlu0 %v1603, 32
      %v2356 = vpop.permute.xlu0 %2355
      %2357 = vrot.lane.b32.xlu0 %v1604, 32
      %v2358 = vpop.permute.xlu0 %2357
      %2359 = vrot.lane.b32.xlu0 %v1605, 32
      %v2360 = vpop.permute.xlu0 %2359
      %2361 = vrot.lane.b32.xlu0 %v1606, 32
      %v2362 = vpop.permute.xlu0 %2361
      %2363 = vrot.lane.b32.xlu0 %v1607, 32
      %v2364 = vpop.permute.xlu0 %2363
      %2365 = vrot.lane.b32.xlu0 %v1608, 32
      %v2366 = vpop.permute.xlu0 %2365
      %2367 = vrot.lane.b32.xlu0 %v1609, 32
      %v2368 = vpop.permute.xlu0 %2367
      %2369 = vrot.lane.b32.xlu0 %v1610, 32
      %v2370 = vpop.permute.xlu0 %2369
      %2371 = vrot.lane.b32.xlu0 %v1611, 32
      %v2372 = vpop.permute.xlu0 %2371
      %2373 = vrot.lane.b32.xlu0 %v1612, 32
      %v2374 = vpop.permute.xlu0 %2373
      %2375 = vrot.lane.b32.xlu0 %v1613, 32
      %v2376 = vpop.permute.xlu0 %2375
      %2377 = vrot.lane.b32.xlu0 %v1614, 32
      %v2378 = vpop.permute.xlu0 %2377
      %2379 = vrot.lane.b32.xlu0 %v1615, 32
      %v2380 = vpop.permute.xlu0 %2379
      %2381 = vrot.lane.b32.xlu0 %v1616, 32
      %v2382 = vpop.permute.xlu0 %2381
      %2383 = vrot.lane.b32.xlu0 %v1617, 32
      %v2384 = vpop.permute.xlu0 %2383
      %2385 = vrot.lane.b32.xlu0 %v1618, 32
      %v2386 = vpop.permute.xlu0 %2385
      %v2389 = vsel %vm602, %v818, %v1652
      %v2392 = vsel %vm602, %v819, %v1654
      %v2395 = vsel %vm602, %v820, %v1656
      %v2398 = vsel %vm602, %v821, %v1658
      %v2401 = vsel %vm602, %v822, %v1660
      %v2404 = vsel %vm602, %v823, %v1662
      %v2407 = vsel %vm602, %v824, %v1664
      %v2410 = vsel %vm602, %v825, %v1666
      %v2413 = vsel %vm602, %v826, %v1668
      %v2416 = vsel %vm602, %v827, %v1670
      %v2419 = vsel %vm602, %v828, %v1672
      %v2422 = vsel %vm602, %v829, %v1674
      %v2425 = vsel %vm602, %v830, %v1676
      %v2428 = vsel %vm602, %v831, %v1678
      %v2431 = vsel %vm602, %v832, %v1680
      %v2434 = vsel %vm602, %v833, %v1682
      %v2437 = vsel %vm602, %v834, %v1684
      %v2440 = vsel %vm602, %v835, %v1686
      %v2443 = vsel %vm602, %v836, %v1688
      %v2446 = vsel %vm602, %v837, %v1690
      %v2449 = vsel %vm602, %v838, %v1692
      %v2452 = vsel %vm602, %v839, %v1694
      %v2455 = vsel %vm602, %v840, %v1696
      %v2458 = vsel %vm602, %v841, %v1698
      %v2461 = vsel %vm602, %v842, %v1700
      %v2464 = vsel %vm602, %v843, %v1702
      %v2467 = vsel %vm602, %v844, %v1704
      %v2470 = vsel %vm602, %v845, %v1706
      %v2473 = vsel %vm602, %v846, %v1708
      %v2476 = vsel %vm602, %v847, %v1710
      %v2479 = vsel %vm602, %v848, %v1712
      %v2482 = vsel %vm602, %v849, %v1714
      %vm2483 = vcmask 64512
      %v2485 = vsel %vm2483, %v2389, %v1748
      %v2487 = vsel %vm2483, %v2392, %v1750
      %v2489 = vsel %vm2483, %v2395, %v1752
      %v2491 = vsel %vm2483, %v2398, %v1754
      %v2493 = vsel %vm2483, %v2401, %v1756
      %v2495 = vsel %vm2483, %v2404, %v1758
      %v2497 = vsel %vm2483, %v2407, %v1760
      %v2499 = vsel %vm2483, %v2410, %v1762
      %v2501 = vsel %vm2483, %v2413, %v1764
      %v2503 = vsel %vm2483, %v2416, %v1766
      %v2505 = vsel %vm2483, %v2419, %v1768
      %v2507 = vsel %vm2483, %v2422, %v1770
      %v2509 = vsel %vm2483, %v2425, %v1772
      %v2511 = vsel %vm2483, %v2428, %v1774
      %v2513 = vsel %vm2483, %v2431, %v1776
      %v2515 = vsel %vm2483, %v2434, %v1778
      %v2517 = vsel %vm2483, %v2437, %v1780
      %v2519 = vsel %vm2483, %v2440, %v1782
      %v2521 = vsel %vm2483, %v2443, %v1784
      %v2523 = vsel %vm2483, %v2446, %v1786
      %v2525 = vsel %vm2483, %v2449, %v1788
      %v2527 = vsel %vm2483, %v2452, %v1790
      %v2529 = vsel %vm2483, %v2455, %v1792
      %v2531 = vsel %vm2483, %v2458, %v1794
      %v2533 = vsel %vm2483, %v2461, %v1796
      %v2535 = vsel %vm2483, %v2464, %v1798
      %v2537 = vsel %vm2483, %v2467, %v1800
      %v2539 = vsel %vm2483, %v2470, %v1802
      %v2541 = vsel %vm2483, %v2473, %v1804
      %v2543 = vsel %vm2483, %v2476, %v1806
      %v2545 = vsel %vm2483, %v2479, %v1808
      %v2547 = vsel %vm2483, %v2482, %v1810
      %vm2548 = vcmask 97280
      %v2550 = vsel %vm2548, %v2485, %v1844
      %v2552 = vsel %vm2548, %v2487, %v1846
      %v2554 = vsel %vm2548, %v2489, %v1848
      %v2556 = vsel %vm2548, %v2491, %v1850
      %v2558 = vsel %vm2548, %v2493, %v1852
      %v2560 = vsel %vm2548, %v2495, %v1854
      %v2562 = vsel %vm2548, %v2497, %v1856
      %v2564 = vsel %vm2548, %v2499, %v1858
      %v2566 = vsel %vm2548, %v2501, %v1860
      %v2568 = vsel %vm2548, %v2503, %v1862
      %v2570 = vsel %vm2548, %v2505, %v1864
      %v2572 = vsel %vm2548, %v2507, %v1866
      %v2574 = vsel %vm2548, %v2509, %v1868
      %v2576 = vsel %vm2548, %v2511, %v1870
      %v2578 = vsel %vm2548, %v2513, %v1872
      %v2580 = vsel %vm2548, %v2515, %v1874
      %v2582 = vsel %vm2548, %v2517, %v1876
      %v2584 = vsel %vm2548, %v2519, %v1878
      %v2586 = vsel %vm2548, %v2521, %v1880
      %v2588 = vsel %vm2548, %v2523, %v1882
      %v2590 = vsel %vm2548, %v2525, %v1884
      %v2592 = vsel %vm2548, %v2527, %v1886
      %v2594 = vsel %vm2548, %v2529, %v1888
      %v2596 = vsel %vm2548, %v2531, %v1890
      %v2598 = vsel %vm2548, %v2533, %v1892
      %v2600 = vsel %vm2548, %v2535, %v1894
      %v2602 = vsel %vm2548, %v2537, %v1896
      %v2604 = vsel %vm2548, %v2539, %v1898
      %v2606 = vsel %vm2548, %v2541, %v1900
      %v2608 = vsel %vm2548, %v2543, %v1902
      %v2610 = vsel %vm2548, %v2545, %v1904
      %v2612 = vsel %vm2548, %v2547, %v1906
      %vm2613 = vcmask 130048
      %v2615 = vsel %vm2613, %v2550, %v1940
      %v2617 = vsel %vm2613, %v2552, %v1942
      %v2619 = vsel %vm2613, %v2554, %v1944
      %v2621 = vsel %vm2613, %v2556, %v1946
      %v2623 = vsel %vm2613, %v2558, %v1948
      %v2625 = vsel %vm2613, %v2560, %v1950
      %v2627 = vsel %vm2613, %v2562, %v1952
      %v2629 = vsel %vm2613, %v2564, %v1954
      %v2631 = vsel %vm2613, %v2566, %v1956
      %v2633 = vsel %vm2613, %v2568, %v1958
      %v2635 = vsel %vm2613, %v2570, %v1960
      %v2637 = vsel %vm2613, %v2572, %v1962
      %v2639 = vsel %vm2613, %v2574, %v1964
      %v2641 = vsel %vm2613, %v2576, %v1966
      %v2643 = vsel %vm2613, %v2578, %v1968
      %v2645 = vsel %vm2613, %v2580, %v1970
      %v2647 = vsel %vm2613, %v2582, %v1972
      %v2649 = vsel %vm2613, %v2584, %v1974
      %v2651 = vsel %vm2613, %v2586, %v1976
      %v2653 = vsel %vm2613, %v2588, %v1978
      %v2655 = vsel %vm2613, %v2590, %v1980
      %v2657 = vsel %vm2613, %v2592, %v1982
      %v2659 = vsel %vm2613, %v2594, %v1984
      %v2661 = vsel %vm2613, %v2596, %v1986
      %v2663 = vsel %vm2613, %v2598, %v1988
      %v2665 = vsel %vm2613, %v2600, %v1990
      %v2667 = vsel %vm2613, %v2602, %v1992
      %v2669 = vsel %vm2613, %v2604, %v1994
      %v2671 = vsel %vm2613, %v2606, %v1996
      %v2673 = vsel %vm2613, %v2608, %v1998
      %v2675 = vsel %vm2613, %v2610, %v2000
      %v2677 = vsel %vm2613, %v2612, %v2002
      %vm2678 = vcmask 162816
      %v2680 = vsel %vm2678, %v2615, %v2036
      %v2682 = vsel %vm2678, %v2617, %v2038
      %v2684 = vsel %vm2678, %v2619, %v2040
      %v2686 = vsel %vm2678, %v2621, %v2042
      %v2688 = vsel %vm2678, %v2623, %v2044
      %v2690 = vsel %vm2678, %v2625, %v2046
      %v2692 = vsel %vm2678, %v2627, %v2048
      %v2694 = vsel %vm2678, %v2629, %v2050
      %v2696 = vsel %vm2678, %v2631, %v2052
      %v2698 = vsel %vm2678, %v2633, %v2054
      %v2700 = vsel %vm2678, %v2635, %v2056
      %v2702 = vsel %vm2678, %v2637, %v2058
      %v2704 = vsel %vm2678, %v2639, %v2060
      %v2706 = vsel %vm2678, %v2641, %v2062
      %v2708 = vsel %vm2678, %v2643, %v2064
      %v2710 = vsel %vm2678, %v2645, %v2066
      %v2712 = vsel %vm2678, %v2647, %v2068
      %v2714 = vsel %vm2678, %v2649, %v2070
      %v2716 = vsel %vm2678, %v2651, %v2072
      %v2718 = vsel %vm2678, %v2653, %v2074
      %v2720 = vsel %vm2678, %v2655, %v2076
      %v2722 = vsel %vm2678, %v2657, %v2078
      %v2724 = vsel %vm2678, %v2659, %v2080
      %v2726 = vsel %vm2678, %v2661, %v2082
      %v2728 = vsel %vm2678, %v2663, %v2084
      %v2730 = vsel %vm2678, %v2665, %v2086
      %v2732 = vsel %vm2678, %v2667, %v2088
      %v2734 = vsel %vm2678, %v2669, %v2090
      %v2736 = vsel %vm2678, %v2671, %v2092
      %v2738 = vsel %vm2678, %v2673, %v2094
      %v2740 = vsel %vm2678, %v2675, %v2096
      %v2742 = vsel %vm2678, %v2677, %v2098
      %vm2743 = vcmask 195584
      %v2745 = vsel %vm2743, %v2680, %v2132
      %v2747 = vsel %vm2743, %v2682, %v2134
      %v2749 = vsel %vm2743, %v2684, %v2136
      %v2751 = vsel %vm2743, %v2686, %v2138
      %v2753 = vsel %vm2743, %v2688, %v2140
      %v2755 = vsel %vm2743, %v2690, %v2142
      %v2757 = vsel %vm2743, %v2692, %v2144
      %v2759 = vsel %vm2743, %v2694, %v2146
      %v2761 = vsel %vm2743, %v2696, %v2148
      %v2763 = vsel %vm2743, %v2698, %v2150
      %v2765 = vsel %vm2743, %v2700, %v2152
      %v2767 = vsel %vm2743, %v2702, %v2154
      %v2769 = vsel %vm2743, %v2704, %v2156
      %v2771 = vsel %vm2743, %v2706, %v2158
      %v2773 = vsel %vm2743, %v2708, %v2160
      %v2775 = vsel %vm2743, %v2710, %v2162
      %v2777 = vsel %vm2743, %v2712, %v2164
      %v2779 = vsel %vm2743, %v2714, %v2166
      %v2781 = vsel %vm2743, %v2716, %v2168
      %v2783 = vsel %vm2743, %v2718, %v2170
      %v2785 = vsel %vm2743, %v2720, %v2172
      %v2787 = vsel %vm2743, %v2722, %v2174
      %v2789 = vsel %vm2743, %v2724, %v2176
      %v2791 = vsel %vm2743, %v2726, %v2178
      %v2793 = vsel %vm2743, %v2728, %v2180
      %v2795 = vsel %vm2743, %v2730, %v2182
      %v2797 = vsel %vm2743, %v2732, %v2184
      %v2799 = vsel %vm2743, %v2734, %v2186
      %v2801 = vsel %vm2743, %v2736, %v2188
      %v2803 = vsel %vm2743, %v2738, %v2190
      %v2805 = vsel %vm2743, %v2740, %v2192
      %v2807 = vsel %vm2743, %v2742, %v2194
      %vm2808 = vcmask 228352
      %v2810 = vsel %vm2808, %v2745, %v2228
      %v2812 = vsel %vm2808, %v2747, %v2230
      %v2814 = vsel %vm2808, %v2749, %v2232
      %v2816 = vsel %vm2808, %v2751, %v2234
      %v2818 = vsel %vm2808, %v2753, %v2236
      %v2820 = vsel %vm2808, %v2755, %v2238
      %v2822 = vsel %vm2808, %v2757, %v2240
      %v2824 = vsel %vm2808, %v2759, %v2242
      %v2826 = vsel %vm2808, %v2761, %v2244
      %v2828 = vsel %vm2808, %v2763, %v2246
      %v2830 = vsel %vm2808, %v2765, %v2248
      %v2832 = vsel %vm2808, %v2767, %v2250
      %v2834 = vsel %vm2808, %v2769, %v2252
      %v2836 = vsel %vm2808, %v2771, %v2254
      %v2838 = vsel %vm2808, %v2773, %v2256
      %v2840 = vsel %vm2808, %v2775, %v2258
      %v2842 = vsel %vm2808, %v2777, %v2260
      %v2844 = vsel %vm2808, %v2779, %v2262
      %v2846 = vsel %vm2808, %v2781, %v2264
      %v2848 = vsel %vm2808, %v2783, %v2266
      %v2850 = vsel %vm2808, %v2785, %v2268
      %v2852 = vsel %vm2808, %v2787, %v2270
      %v2854 = vsel %vm2808, %v2789, %v2272
      %v2856 = vsel %vm2808, %v2791, %v2274
      %v2858 = vsel %vm2808, %v2793, %v2276
      %v2860 = vsel %vm2808, %v2795, %v2278
      %v2862 = vsel %vm2808, %v2797, %v2280
      %v2864 = vsel %vm2808, %v2799, %v2282
      %v2866 = vsel %vm2808, %v2801, %v2284
      %v2868 = vsel %vm2808, %v2803, %v2286
      %v2870 = vsel %vm2808, %v2805, %v2288
      %v2872 = vsel %vm2808, %v2807, %v2290
      %vm2873 = vcmask 261120
      %v2875 = vsel %vm2873, %v2810, %v2324
      %v2877 = vsel %vm2873, %v2812, %v2326
      %v2879 = vsel %vm2873, %v2814, %v2328
      %v2881 = vsel %vm2873, %v2816, %v2330
      %v2883 = vsel %vm2873, %v2818, %v2332
      %v2885 = vsel %vm2873, %v2820, %v2334
      %v2887 = vsel %vm2873, %v2822, %v2336
      %v2889 = vsel %vm2873, %v2824, %v2338
      %v2891 = vsel %vm2873, %v2826, %v2340
      %v2893 = vsel %vm2873, %v2828, %v2342
      %v2895 = vsel %vm2873, %v2830, %v2344
      %v2897 = vsel %vm2873, %v2832, %v2346
      %v2899 = vsel %vm2873, %v2834, %v2348
      %v2901 = vsel %vm2873, %v2836, %v2350
      %v2903 = vsel %vm2873, %v2838, %v2352
      %v2905 = vsel %vm2873, %v2840, %v2354
      %v2907 = vsel %vm2873, %v2842, %v2356
      %v2909 = vsel %vm2873, %v2844, %v2358
      %v2911 = vsel %vm2873, %v2846, %v2360
      %v2913 = vsel %vm2873, %v2848, %v2362
      %v2915 = vsel %vm2873, %v2850, %v2364
      %v2917 = vsel %vm2873, %v2852, %v2366
      %v2919 = vsel %vm2873, %v2854, %v2368
      %v2921 = vsel %vm2873, %v2856, %v2370
      %v2923 = vsel %vm2873, %v2858, %v2372
      %v2925 = vsel %vm2873, %v2860, %v2374
      %v2927 = vsel %vm2873, %v2862, %v2376
      %v2929 = vsel %vm2873, %v2864, %v2378
      %v2931 = vsel %vm2873, %v2866, %v2380
      %v2933 = vsel %vm2873, %v2868, %v2382
      %v2935 = vsel %vm2873, %v2870, %v2384
      %v2937 = vsel %vm2873, %v2872, %v2386
      %v2938 = vld [vmem:[%s3] sm:$0xf]
      %v2939 = vld [vmem:[%s3 + $0x4] sm:$0xf]
      %v2940 = vld [vmem:[%s3 + $0x8] sm:$0xf]
      %v2941 = vld [vmem:[%s3 + $0xc] sm:$0xf]
      %v2942 = vld [vmem:[%s3 + $0x10] sm:$0x3]
      %v2948 = vunpack.c.l.b16 %v2938
      %v2949 = vunpack.c.l.b16 %v2939
      %v2950 = vunpack.c.l.b16 %v2940
      %v2951 = vunpack.c.l.b16 %v2941
      %v2952 = vunpack.c.l.b16 %v2942
      %v2953 = vpack.c.b16 %v2949, %v2948
      %v2954 = vpack.c.b16 %v2951, %v2950
      %v2955 = vpack.c.b16 %v2952, %v2952
      %vm2958 = vcmask 293888
      %v2959 = vsel %vm2958, %v2875, 0
      %v2961 = vsel %vm2958, %v2877, 0
      %v2963 = vsel %vm2958, %v2879, 0
      %v2965 = vsel %vm2958, %v2881, 0
      %v2967 = vsel %vm2958, %v2883, 0
      %v2969 = vsel %vm2958, %v2885, 0
      %v2971 = vsel %vm2958, %v2887, 0
      %v2973 = vsel %vm2958, %v2889, 0
      %v2975 = vsel %vm2958, %v2891, 0
      %v2977 = vsel %vm2958, %v2893, 0
      %v2979 = vsel %vm2958, %v2895, 0
      %v2981 = vsel %vm2958, %v2897, 0
      %v2983 = vsel %vm2958, %v2899, 0
      %v2985 = vsel %vm2958, %v2901, 0
      %v2987 = vsel %vm2958, %v2903, 0
      %v2989 = vsel %vm2958, %v2905, 0
      %v2991 = vsel %vm2958, %v2907, 0
      %v2993 = vsel %vm2958, %v2909, 0
      %v2995 = vsel %vm2958, %v2911, 0
      %v2997 = vsel %vm2958, %v2913, 0
      %v2999 = vsel %vm2958, %v2915, 0
      %v3001 = vsel %vm2958, %v2917, 0
      %v3003 = vsel %vm2958, %v2919, 0
      %v3005 = vsel %vm2958, %v2921, 0
      %v3007 = vsel %vm2958, %v2923, 0
      %v3009 = vsel %vm2958, %v2925, 0
      %v3011 = vsel %vm2958, %v2927, 0
      %v3013 = vsel %vm2958, %v2929, 0
      %v3015 = vsel %vm2958, %v2931, 0
      %v3017 = vsel %vm2958, %v2933, 0
      %v3019 = vsel %vm2958, %v2935, 0
      %v3021 = vsel %vm2958, %v2937, 0
      %vm3023 = vcmask 1041408
      %v3025 = vsel %vm3023, %v2955, 0
      %3027 = vmatprep.subr.bf16.mxu0 0
      %3028 = vmatpush1.bf16.msra.mxu0 %v2953
      %3029 = vmatprep.subr.bf16.mxu0 0
      %3030 = vmatpush1.bf16.msra.mxu0 %v2954
      %3031 = vmatprep.subr.bf16.mxu0 0
      %3032 = vmatpush1.bf16.msra.mxu0 %v3025
      %3033 = vmatprep.subr.bf16.mxu0 0
      %3034 = vmatpush1.bf16.msra.mxu0 0
      %3035 = vmatprep.subr.bf16.mxu0 0
      %3036 = vmatpush1.bf16.msra.mxu0 0
      %3037 = vmatprep.subr.bf16.mxu0 0
      %3038 = vmatpush1.bf16.msra.mxu0 0
      %3039 = vmatprep.subr.bf16.mxu0 0
      %3040 = vmatpush1.bf16.msra.mxu0 0
      %3041 = vmatprep.subr.bf16.mxu0 0
      %3042 = vmatpush1.bf16.msra.mxu0 0
      %3043 = vmatprep.subr.bf16.mxu0 0
      %3044 = vmatpush1.bf16.msra.mxu0 0
      %3045 = vmatprep.subr.bf16.mxu0 0
      %3046 = vmatpush1.bf16.msra.mxu0 0
      %3047 = vmatprep.subr.bf16.mxu0 0
      %3048 = vmatpush1.bf16.msra.mxu0 0
      %3049 = vmatprep.subr.bf16.mxu0 0
      %3050 = vmatpush1.bf16.msra.mxu0 0
      %3051 = vmatprep.subr.bf16.mxu0 0
      %3052 = vmatpush1.bf16.msra.mxu0 0
      %3053 = vmatprep.subr.bf16.mxu0 0
      %3054 = vmatpush1.bf16.msra.mxu0 0
      %3055 = vmatprep.subr.bf16.mxu0 0
      %3056 = vmatpush1.bf16.msra.mxu0 0
      %3057 = vmatprep.subr.bf16.mxu0 0
      %3058 = vmatpush1.bf16.msra.mxu0 0
      %3059 = vmatprep.mubr.bf16.mxu0 0
      %3060 = vmatmul.mubr.bf16.gmra.mrb[0].mxu0 %v2959
      %v3061 = vpop.f32.mrb[0].mxu0
      %v3062 = vadd.f32 0.0, %v3061
      %v3063 = vpop.f32.mrb[0].mxu0
      %v3064 = vpop.f32.mrb[0].mxu0
      %v3065 = vadd.f32 0.0, %v3064
      %v3066 = vpop.f32.mrb[0].mxu0
      %3067 = vmatprep.mubr.bf16.mxu0 0
      %3068 = vmatmul.mubr.bf16.gmra.mrb[0].mxu0 %v2961
      %v3069 = vpop.f32.mrb[0].mxu0
      %v3070 = vadd.f32 0.0, %v3069
      %v3071 = vpop.f32.mrb[0].mxu0
      %v3072 = vpop.f32.mrb[0].mxu0
      %v3073 = vadd.f32 0.0, %v3072
      %v3074 = vpop.f32.mrb[0].mxu0
      %3075 = vmatprep.mubr.bf16.mxu0 0
      %3076 = vmatmul.mubr.bf16.gmra.mrb[0].mxu0 %v2963
      %v3077 = vpop.f32.mrb[0].mxu0
      %v3078 = vadd.f32 0.0, %v3077
      %v3079 = vpop.f32.mrb[0].mxu0
      %v3080 = vpop.f32.mrb[0].mxu0
      %v3081 = vadd.f32 0.0, %v3080
      %v3082 = vpop.f32.mrb[0].mxu0
      %3083 = vmatprep.mubr.bf16.mxu0 0
      %3084 = vmatmul.mubr.bf16.gmra.mrb[0].mxu0 %v2965
      %v3085 = vpop.f32.mrb[0].mxu0
      %v3086 = vadd.f32 0.0, %v3085
      %v3087 = vpop.f32.mrb[0].mxu0
      %v3088 = vpop.f32.mrb[0].mxu0
      %v3089 = vadd.f32 0.0, %v3088
      %v3090 = vpop.f32.mrb[0].mxu0
      %3091 = vmatprep.mubr.bf16.mxu0 0
      %3092 = vmatmul.mubr.bf16.gmra.mrb[0].mxu0 %v2967
      %v3093 = vpop.f32.mrb[0].mxu0
      %v3094 = vadd.f32 0.0, %v3093
      %v3095 = vpop.f32.mrb[0].mxu0
      %v3096 = vpop.f32.mrb[0].mxu0
      %v3097 = vadd.f32 0.0, %v3096
      %v3098 = vpop.f32.mrb[0].mxu0
      %3099 = vmatprep.mubr.bf16.mxu0 0
      %3100 = vmatmul.mubr.bf16.gmra.mrb[0].mxu0 %v2969
      %v3101 = vpop.f32.mrb[0].mxu0
      %v3102 = vadd.f32 0.0, %v3101
      %v3103 = vpop.f32.mrb[0].mxu0
      %v3104 = vpop.f32.mrb[0].mxu0
      %v3105 = vadd.f32 0.0, %v3104
      %v3106 = vpop.f32.mrb[0].mxu0
      %3107 = vmatprep.mubr.bf16.mxu0 0
      %3108 = vmatmul.mubr.bf16.gmra.mrb[0].mxu0 %v2971
      %v3109 = vpop.f32.mrb[0].mxu0
      %v3110 = vadd.f32 0.0, %v3109
      %v3111 = vpop.f32.mrb[0].mxu0
      %v3112 = vpop.f32.mrb[0].mxu0
      %v3113 = vadd.f32 0.0, %v3112
      %v3114 = vpop.f32.mrb[0].mxu0
      %3115 = vmatprep.mubr.bf16.mxu0 0
      %3116 = vmatmul.mubr.bf16.gmra.mrb[0].mxu0 %v2973
      %v3117 = vpop.f32.mrb[0].mxu0
      %v3118 = vadd.f32 0.0, %v3117
      %v3119 = vpop.f32.mrb[0].mxu0
      %v3120 = vpop.f32.mrb[0].mxu0
      %v3121 = vadd.f32 0.0, %v3120
      %v3122 = vpop.f32.mrb[0].mxu0
      %3123 = vmatprep.mubr.bf16.mxu0 0
      %3124 = vmatmul.mubr.bf16.gmra.mrb[0].mxu0 %v2975
      %v3125 = vpop.f32.mrb[0].mxu0
      %v3126 = vadd.f32 0.0, %v3125
      %v3127 = vpop.f32.mrb[0].mxu0
      %v3128 = vpop.f32.mrb[0].mxu0
      %v3129 = vadd.f32 0.0, %v3128
      %v3130 = vpop.f32.mrb[0].mxu0
      %3131 = vmatprep.mubr.bf16.mxu0 0
      %3132 = vmatmul.mubr.bf16.gmra.mrb[0].mxu0 %v2977
      %v3133 = vpop.f32.mrb[0].mxu0
      %v3134 = vadd.f32 0.0, %v3133
      %v3135 = vpop.f32.mrb[0].mxu0
      %v3136 = vpop.f32.mrb[0].mxu0
      %v3137 = vadd.f32 0.0, %v3136
      %v3138 = vpop.f32.mrb[0].mxu0
      %3139 = vmatprep.mubr.bf16.mxu0 0
      %3140 = vmatmul.mubr.bf16.gmra.mrb[0].mxu0 %v2979
      %v3141 = vpop.f32.mrb[0].mxu0
      %v3142 = vadd.f32 0.0, %v3141
      %v3143 = vpop.f32.mrb[0].mxu0
      %v3144 = vpop.f32.mrb[0].mxu0
      %v3145 = vadd.f32 0.0, %v3144
      %v3146 = vpop.f32.mrb[0].mxu0
      %3147 = vmatprep.mubr.bf16.mxu0 0
      %3148 = vmatmul.mubr.bf16.gmra.mrb[0].mxu0 %v2981
      %v3149 = vpop.f32.mrb[0].mxu0
      %v3150 = vadd.f32 0.0, %v3149
      %v3151 = vpop.f32.mrb[0].mxu0
      %v3152 = vpop.f32.mrb[0].mxu0
      %v3153 = vadd.f32 0.0, %v3152
      %v3154 = vpop.f32.mrb[0].mxu0
      %3155 = vmatprep.mubr.bf16.mxu0 0
      %3156 = vmatmul.mubr.bf16.gmra.mrb[0].mxu0 %v2983
      %v3157 = vpop.f32.mrb[0].mxu0
      %v3158 = vadd.f32 0.0, %v3157
      %v3159 = vpop.f32.mrb[0].mxu0
      %v3160 = vpop.f32.mrb[0].mxu0
      %v3161 = vadd.f32 0.0, %v3160
      %v3162 = vpop.f32.mrb[0].mxu0
      %3163 = vmatprep.mubr.bf16.mxu0 0
      %3164 = vmatmul.mubr.bf16.gmra.mrb[0].mxu0 %v2985
      %v3165 = vpop.f32.mrb[0].mxu0
      %v3166 = vadd.f32 0.0, %v3165
      %v3167 = vpop.f32.mrb[0].mxu0
      %v3168 = vpop.f32.mrb[0].mxu0
      %v3169 = vadd.f32 0.0, %v3168
      %v3170 = vpop.f32.mrb[0].mxu0
      %3171 = vmatprep.mubr.bf16.mxu0 0
      %3172 = vmatmul.mubr.bf16.gmra.mrb[0].mxu0 %v2987
      %v3173 = vpop.f32.mrb[0].mxu0
      %v3174 = vadd.f32 0.0, %v3173
      %v3175 = vpop.f32.mrb[0].mxu0
      %v3176 = vpop.f32.mrb[0].mxu0
      %v3177 = vadd.f32 0.0, %v3176
      %v3178 = vpop.f32.mrb[0].mxu0
      %3179 = vmatprep.mubr.bf16.mxu0 0
      %3180 = vmatmul.mubr.bf16.gmra.mrb[0].mxu0 %v2989
      %v3181 = vpop.f32.mrb[0].mxu0
      %v3182 = vadd.f32 0.0, %v3181
      %v3183 = vpop.f32.mrb[0].mxu0
      %v3184 = vpop.f32.mrb[0].mxu0
      %v3185 = vadd.f32 0.0, %v3184
      %v3186 = vpop.f32.mrb[0].mxu0
      %3187 = vmatprep.mubr.bf16.mxu0 0
      %3188 = vmatmul.mubr.bf16.gmra.mrb[0].mxu0 %v2991
      %v3189 = vpop.f32.mrb[0].mxu0
      %v3190 = vadd.f32 0.0, %v3189
      %v3191 = vpop.f32.mrb[0].mxu0
      %v3192 = vpop.f32.mrb[0].mxu0
      %v3193 = vadd.f32 0.0, %v3192
      %v3194 = vpop.f32.mrb[0].mxu0
      %3195 = vmatprep.mubr.bf16.mxu0 0
      %3196 = vmatmul.mubr.bf16.gmra.mrb[0].mxu0 %v2993
      %v3197 = vpop.f32.mrb[0].mxu0
      %v3198 = vadd.f32 0.0, %v3197
      %v3199 = vpop.f32.mrb[0].mxu0
      %v3200 = vpop.f32.mrb[0].mxu0
      %v3201 = vadd.f32 0.0, %v3200
      %v3202 = vpop.f32.mrb[0].mxu0
      %3203 = vmatprep.mubr.bf16.mxu0 0
      %3204 = vmatmul.mubr.bf16.gmra.mrb[0].mxu0 %v2995
      %v3205 = vpop.f32.mrb[0].mxu0
      %v3206 = vadd.f32 0.0, %v3205
      %v3207 = vpop.f32.mrb[0].mxu0
      %v3208 = vpop.f32.mrb[0].mxu0
      %v3209 = vadd.f32 0.0, %v3208
      %v3210 = vpop.f32.mrb[0].mxu0
      %3211 = vmatprep.mubr.bf16.mxu0 0
      %3212 = vmatmul.mubr.bf16.gmra.mrb[0].mxu0 %v2997
      %v3213 = vpop.f32.mrb[0].mxu0
      %v3214 = vadd.f32 0.0, %v3213
      %v3215 = vpop.f32.mrb[0].mxu0
      %v3216 = vpop.f32.mrb[0].mxu0
      %v3217 = vadd.f32 0.0, %v3216
      %v3218 = vpop.f32.mrb[0].mxu0
      %3219 = vmatprep.mubr.bf16.mxu0 0
      %3220 = vmatmul.mubr.bf16.gmra.mrb[0].mxu0 %v2999
      %v3221 = vpop.f32.mrb[0].mxu0
      %v3222 = vadd.f32 0.0, %v3221
      %v3223 = vpop.f32.mrb[0].mxu0
      %v3224 = vpop.f32.mrb[0].mxu0
      %v3225 = vadd.f32 0.0, %v3224
      %v3226 = vpop.f32.mrb[0].mxu0
      %3227 = vmatprep.mubr.bf16.mxu0 0
      %3228 = vmatmul.mubr.bf16.gmra.mrb[0].mxu0 %v3001
      %v3229 = vpop.f32.mrb[0].mxu0
      %v3230 = vadd.f32 0.0, %v3229
      %v3231 = vpop.f32.mrb[0].mxu0
      %v3232 = vpop.f32.mrb[0].mxu0
      %v3233 = vadd.f32 0.0, %v3232
      %v3234 = vpop.f32.mrb[0].mxu0
      %3235 = vmatprep.mubr.bf16.mxu0 0
      %3236 = vmatmul.mubr.bf16.gmra.mrb[0].mxu0 %v3003
      %v3237 = vpop.f32.mrb[0].mxu0
      %v3238 = vadd.f32 0.0, %v3237
      %v3239 = vpop.f32.mrb[0].mxu0
      %v3240 = vpop.f32.mrb[0].mxu0
      %v3241 = vadd.f32 0.0, %v3240
      %v3242 = vpop.f32.mrb[0].mxu0
      %3243 = vmatprep.mubr.bf16.mxu0 0
      %3244 = vmatmul.mubr.bf16.gmra.mrb[0].mxu0 %v3005
      %v3245 = vpop.f32.mrb[0].mxu0
      %v3246 = vadd.f32 0.0, %v3245
      %v3247 = vpop.f32.mrb[0].mxu0
      %v3248 = vpop.f32.mrb[0].mxu0
      %v3249 = vadd.f32 0.0, %v3248
      %v3250 = vpop.f32.mrb[0].mxu0
      %3251 = vmatprep.mubr.bf16.mxu0 0
      %3252 = vmatmul.mubr.bf16.gmra.mrb[0].mxu0 %v3007
      %v3253 = vpop.f32.mrb[0].mxu0
      %v3254 = vadd.f32 0.0, %v3253
      %v3255 = vpop.f32.mrb[0].mxu0
      %v3256 = vpop.f32.mrb[0].mxu0
      %v3257 = vadd.f32 0.0, %v3256
      %v3258 = vpop.f32.mrb[0].mxu0
      %3259 = vmatprep.mubr.bf16.mxu0 0
      %3260 = vmatmul.mubr.bf16.gmra.mrb[0].mxu0 %v3009
      %v3261 = vpop.f32.mrb[0].mxu0
      %v3262 = vadd.f32 0.0, %v3261
      %v3263 = vpop.f32.mrb[0].mxu0
      %v3264 = vpop.f32.mrb[0].mxu0
      %v3265 = vadd.f32 0.0, %v3264
      %v3266 = vpop.f32.mrb[0].mxu0
      %3267 = vmatprep.mubr.bf16.mxu0 0
      %3268 = vmatmul.mubr.bf16.gmra.mrb[0].mxu0 %v3011
      %v3269 = vpop.f32.mrb[0].mxu0
      %v3270 = vadd.f32 0.0, %v3269
      %v3271 = vpop.f32.mrb[0].mxu0
      %v3272 = vpop.f32.mrb[0].mxu0
      %v3273 = vadd.f32 0.0, %v3272
      %v3274 = vpop.f32.mrb[0].mxu0
      %3275 = vmatprep.mubr.bf16.mxu0 0
      %3276 = vmatmul.mubr.bf16.gmra.mrb[0].mxu0 %v3013
      %v3277 = vpop.f32.mrb[0].mxu0
      %v3278 = vadd.f32 0.0, %v3277
      %v3279 = vpop.f32.mrb[0].mxu0
      %v3280 = vpop.f32.mrb[0].mxu0
      %v3281 = vadd.f32 0.0, %v3280
      %v3282 = vpop.f32.mrb[0].mxu0
      %3283 = vmatprep.mubr.bf16.mxu0 0
      %3284 = vmatmul.mubr.bf16.gmra.mrb[0].mxu0 %v3015
      %v3285 = vpop.f32.mrb[0].mxu0
      %v3286 = vadd.f32 0.0, %v3285
      %v3287 = vpop.f32.mrb[0].mxu0
      %v3288 = vpop.f32.mrb[0].mxu0
      %v3289 = vadd.f32 0.0, %v3288
      %v3290 = vpop.f32.mrb[0].mxu0
      %3291 = vmatprep.mubr.bf16.mxu0 0
      %3292 = vmatmul.mubr.bf16.gmra.mrb[0].mxu0 %v3017
      %v3293 = vpop.f32.mrb[0].mxu0
      %v3294 = vadd.f32 0.0, %v3293
      %v3295 = vpop.f32.mrb[0].mxu0
      %v3296 = vpop.f32.mrb[0].mxu0
      %v3297 = vadd.f32 0.0, %v3296
      %v3298 = vpop.f32.mrb[0].mxu0
      %3299 = vmatprep.mubr.bf16.mxu0 0
      %3300 = vmatmul.mubr.bf16.gmra.mrb[0].mxu0 %v3019
      %v3301 = vpop.f32.mrb[0].mxu0
      %v3302 = vadd.f32 0.0, %v3301
      %v3303 = vpop.f32.mrb[0].mxu0
      %v3304 = vpop.f32.mrb[0].mxu0
      %v3305 = vadd.f32 0.0, %v3304
      %v3306 = vpop.f32.mrb[0].mxu0
      %3307 = vmatprep.mubr.bf16.mxu0 0
      %3308 = vmatmul.mubr.bf16.gmra.mrb[0].mxu0 %v3021
      %v3309 = vpop.f32.mrb[0].mxu0
      %v3310 = vadd.f32 0.0, %v3309
      %v3311 = vpop.f32.mrb[0].mxu0
      %v3312 = vpop.f32.mrb[0].mxu0
      %v3313 = vadd.f32 0.0, %v3312
      %v3314 = vpop.f32.mrb[0].mxu0
      %3315 = vdwg.mxu0
      %vm3316 = vcmp.gt.f32.partialorder %v3062, 0.0
      %vm3317 = vcmp.gt.f32.partialorder %v3065, 0.0
      %vm3318 = vcmp.gt.f32.partialorder %v3070, 0.0
      %vm3319 = vcmp.gt.f32.partialorder %v3073, 0.0
      %vm3320 = vcmp.gt.f32.partialorder %v3078, 0.0
      %vm3321 = vcmp.gt.f32.partialorder %v3081, 0.0
      %vm3322 = vcmp.gt.f32.partialorder %v3086, 0.0
      %vm3323 = vcmp.gt.f32.partialorder %v3089, 0.0
      %vm3324 = vcmp.gt.f32.partialorder %v3094, 0.0
      %vm3325 = vcmp.gt.f32.partialorder %v3097, 0.0
      %vm3326 = vcmp.gt.f32.partialorder %v3102, 0.0
      %vm3327 = vcmp.gt.f32.partialorder %v3105, 0.0
      %vm3328 = vcmp.gt.f32.partialorder %v3110, 0.0
      %vm3329 = vcmp.gt.f32.partialorder %v3113, 0.0
      %vm3330 = vcmp.gt.f32.partialorder %v3118, 0.0
      %vm3331 = vcmp.gt.f32.partialorder %v3121, 0.0
      %vm3332 = vcmp.gt.f32.partialorder %v3126, 0.0
      %vm3333 = vcmp.gt.f32.partialorder %v3129, 0.0
      %vm3334 = vcmp.gt.f32.partialorder %v3134, 0.0
      %vm3335 = vcmp.gt.f32.partialorder %v3137, 0.0
      %vm3336 = vcmp.gt.f32.partialorder %v3142, 0.0
      %vm3337 = vcmp.gt.f32.partialorder %v3145, 0.0
      %vm3338 = vcmp.gt.f32.partialorder %v3150, 0.0
      %vm3339 = vcmp.gt.f32.partialorder %v3153, 0.0
      %vm3340 = vcmp.gt.f32.partialorder %v3158, 0.0
      %vm3341 = vcmp.gt.f32.partialorder %v3161, 0.0
      %vm3342 = vcmp.gt.f32.partialorder %v3166, 0.0
      %vm3343 = vcmp.gt.f32.partialorder %v3169, 0.0
      %vm3344 = vcmp.gt.f32.partialorder %v3174, 0.0
      %vm3345 = vcmp.gt.f32.partialorder %v3177, 0.0
      %vm3346 = vcmp.gt.f32.partialorder %v3182, 0.0
      %vm3347 = vcmp.gt.f32.partialorder %v3185, 0.0
      %vm3348 = vcmp.gt.f32.partialorder %v3190, 0.0
      %vm3349 = vcmp.gt.f32.partialorder %v3193, 0.0
      %vm3350 = vcmp.gt.f32.partialorder %v3198, 0.0
      %vm3351 = vcmp.gt.f32.partialorder %v3201, 0.0
      %vm3352 = vcmp.gt.f32.partialorder %v3206, 0.0
      %vm3353 = vcmp.gt.f32.partialorder %v3209, 0.0
      %vm3354 = vcmp.gt.f32.partialorder %v3214, 0.0
      %vm3355 = vcmp.gt.f32.partialorder %v3217, 0.0
      %vm3356 = vcmp.gt.f32.partialorder %v3222, 0.0
      %vm3357 = vcmp.gt.f32.partialorder %v3225, 0.0
      %vm3358 = vcmp.gt.f32.partialorder %v3230, 0.0
      %vm3359 = vcmp.gt.f32.partialorder %v3233, 0.0
      %vm3360 = vcmp.gt.f32.partialorder %v3238, 0.0
      %vm3361 = vcmp.gt.f32.partialorder %v3241, 0.0
      %vm3362 = vcmp.gt.f32.partialorder %v3246, 0.0
      %vm3363 = vcmp.gt.f32.partialorder %v3249, 0.0
      %vm3364 = vcmp.gt.f32.partialorder %v3254, 0.0
      %vm3365 = vcmp.gt.f32.partialorder %v3257, 0.0
      %vm3366 = vcmp.gt.f32.partialorder %v3262, 0.0
      %vm3367 = vcmp.gt.f32.partialorder %v3265, 0.0
      %vm3368 = vcmp.gt.f32.partialorder %v3270, 0.0
      %vm3369 = vcmp.gt.f32.partialorder %v3273, 0.0
      %vm3370 = vcmp.gt.f32.partialorder %v3278, 0.0
      %vm3371 = vcmp.gt.f32.partialorder %v3281, 0.0
      %vm3372 = vcmp.gt.f32.partialorder %v3286, 0.0
      %vm3373 = vcmp.gt.f32.partialorder %v3289, 0.0
      %vm3374 = vcmp.gt.f32.partialorder %v3294, 0.0
      %vm3375 = vcmp.gt.f32.partialorder %v3297, 0.0
      %vm3376 = vcmp.gt.f32.partialorder %v3302, 0.0
      %vm3377 = vcmp.gt.f32.partialorder %v3305, 0.0
      %vm3378 = vcmp.gt.f32.partialorder %v3310, 0.0
      %vm3379 = vcmp.gt.f32.partialorder %v3313, 0.0
      %v3380 = vld [vmem:[%s4] sm:$0x1]
      %v3382 = vlaneseq
      %v3383 = vshrl.u32 %v3382, 7
      %v3384 = vsub.s32 0, %v3383
      %v3385 = vrot.slane %v3380, %v3384
      %v3387 = vmul.f32 %v3062, %v3385
      %v3388 = vmul.f32 %v3065, %v3385
      %v3389 = vmul.f32 %v3070, %v3385
      %v3390 = vmul.f32 %v3073, %v3385
      %v3391 = vmul.f32 %v3078, %v3385
      %v3392 = vmul.f32 %v3081, %v3385
      %v3393 = vmul.f32 %v3086, %v3385
      %v3394 = vmul.f32 %v3089, %v3385
      %v3395 = vmul.f32 %v3094, %v3385
      %v3396 = vmul.f32 %v3097, %v3385
      %v3397 = vmul.f32 %v3102, %v3385
      %v3398 = vmul.f32 %v3105, %v3385
      %v3399 = vmul.f32 %v3110, %v3385
      %v3400 = vmul.f32 %v3113, %v3385
      %v3401 = vmul.f32 %v3118, %v3385
      %v3402 = vmul.f32 %v3121, %v3385
      %v3403 = vmul.f32 %v3126, %v3385
      %v3404 = vmul.f32 %v3129, %v3385
      %v3405 = vmul.f32 %v3134, %v3385
      %v3406 = vmul.f32 %v3137, %v3385
      %v3407 = vmul.f32 %v3142, %v3385
      %v3408 = vmul.f32 %v3145, %v3385
      %v3409 = vmul.f32 %v3150, %v3385
      %v3410 = vmul.f32 %v3153, %v3385
      %v3411 = vmul.f32 %v3158, %v3385
      %v3412 = vmul.f32 %v3161, %v3385
      %v3413 = vmul.f32 %v3166, %v3385
      %v3414 = vmul.f32 %v3169, %v3385
      %v3415 = vmul.f32 %v3174, %v3385
      %v3416 = vmul.f32 %v3177, %v3385
      %v3417 = vmul.f32 %v3182, %v3385
      %v3418 = vmul.f32 %v3185, %v3385
      %v3419 = vmul.f32 %v3190, %v3385
      %v3420 = vmul.f32 %v3193, %v3385
      %v3421 = vmul.f32 %v3198, %v3385
      %v3422 = vmul.f32 %v3201, %v3385
      %v3423 = vmul.f32 %v3206, %v3385
      %v3424 = vmul.f32 %v3209, %v3385
      %v3425 = vmul.f32 %v3214, %v3385
      %v3426 = vmul.f32 %v3217, %v3385
      %v3427 = vmul.f32 %v3222, %v3385
      %v3428 = vmul.f32 %v3225, %v3385
      %v3429 = vmul.f32 %v3230, %v3385
      %v3430 = vmul.f32 %v3233, %v3385
      %v3431 = vmul.f32 %v3238, %v3385
      %v3432 = vmul.f32 %v3241, %v3385
      %v3433 = vmul.f32 %v3246, %v3385
      %v3434 = vmul.f32 %v3249, %v3385
      %v3435 = vmul.f32 %v3254, %v3385
      %v3436 = vmul.f32 %v3257, %v3385
      %v3437 = vmul.f32 %v3262, %v3385
      %v3438 = vmul.f32 %v3265, %v3385
      %v3439 = vmul.f32 %v3270, %v3385
      %v3440 = vmul.f32 %v3273, %v3385
      %v3441 = vmul.f32 %v3278, %v3385
      %v3442 = vmul.f32 %v3281, %v3385
      %v3443 = vmul.f32 %v3286, %v3385
      %v3444 = vmul.f32 %v3289, %v3385
      %v3445 = vmul.f32 %v3294, %v3385
      %v3446 = vmul.f32 %v3297, %v3385
      %v3447 = vmul.f32 %v3302, %v3385
      %v3448 = vmul.f32 %v3305, %v3385
      %v3449 = vmul.f32 %v3310, %v3385
      %v3450 = vmul.f32 %v3313, %v3385
      %v3451 = vsel %vm3316, %v3062, %v3387
      %v3452 = vsel %vm3317, %v3065, %v3388
      %v3453 = vsel %vm3318, %v3070, %v3389
      %v3454 = vsel %vm3319, %v3073, %v3390
      %v3455 = vsel %vm3320, %v3078, %v3391
      %v3456 = vsel %vm3321, %v3081, %v3392
      %v3457 = vsel %vm3322, %v3086, %v3393
      %v3458 = vsel %vm3323, %v3089, %v3394
      %v3459 = vsel %vm3324, %v3094, %v3395
      %v3460 = vsel %vm3325, %v3097, %v3396
      %v3461 = vsel %vm3326, %v3102, %v3397
      %v3462 = vsel %vm3327, %v3105, %v3398
      %v3463 = vsel %vm3328, %v3110, %v3399
      %v3464 = vsel %vm3329, %v3113, %v3400
      %v3465 = vsel %vm3330, %v3118, %v3401
      %v3466 = vsel %vm3331, %v3121, %v3402
      %v3467 = vsel %vm3332, %v3126, %v3403
      %v3468 = vsel %vm3333, %v3129, %v3404
      %v3469 = vsel %vm3334, %v3134, %v3405
      %v3470 = vsel %vm3335, %v3137, %v3406
      %v3471 = vsel %vm3336, %v3142, %v3407
      %v3472 = vsel %vm3337, %v3145, %v3408
      %v3473 = vsel %vm3338, %v3150, %v3409
      %v3474 = vsel %vm3339, %v3153, %v3410
      %v3475 = vsel %vm3340, %v3158, %v3411
      %v3476 = vsel %vm3341, %v3161, %v3412
      %v3477 = vsel %vm3342, %v3166, %v3413
      %v3478 = vsel %vm3343, %v3169, %v3414
      %v3479 = vsel %vm3344, %v3174, %v3415
      %v3480 = vsel %vm3345, %v3177, %v3416
      %v3481 = vsel %vm3346, %v3182, %v3417
      %v3482 = vsel %vm3347, %v3185, %v3418
      %v3483 = vsel %vm3348, %v3190, %v3419
      %v3484 = vsel %vm3349, %v3193, %v3420
      %v3485 = vsel %vm3350, %v3198, %v3421
      %v3486 = vsel %vm3351, %v3201, %v3422
      %v3487 = vsel %vm3352, %v3206, %v3423
      %v3488 = vsel %vm3353, %v3209, %v3424
      %v3489 = vsel %vm3354, %v3214, %v3425
      %v3490 = vsel %vm3355, %v3217, %v3426
      %v3491 = vsel %vm3356, %v3222, %v3427
      %v3492 = vsel %vm3357, %v3225, %v3428
      %v3493 = vsel %vm3358, %v3230, %v3429
      %v3494 = vsel %vm3359, %v3233, %v3430
      %v3495 = vsel %vm3360, %v3238, %v3431
      %v3496 = vsel %vm3361, %v3241, %v3432
      %v3497 = vsel %vm3362, %v3246, %v3433
      %v3498 = vsel %vm3363, %v3249, %v3434
      %v3499 = vsel %vm3364, %v3254, %v3435
      %v3500 = vsel %vm3365, %v3257, %v3436
      %v3501 = vsel %vm3366, %v3262, %v3437
      %v3502 = vsel %vm3367, %v3265, %v3438
      %v3503 = vsel %vm3368, %v3270, %v3439
      %v3504 = vsel %vm3369, %v3273, %v3440
      %v3505 = vsel %vm3370, %v3278, %v3441
      %v3506 = vsel %vm3371, %v3281, %v3442
      %v3507 = vsel %vm3372, %v3286, %v3443
      %v3508 = vsel %vm3373, %v3289, %v3444
      %v3509 = vsel %vm3374, %v3294, %v3445
      %v3510 = vsel %vm3375, %v3297, %v3446
      %v3511 = vsel %vm3376, %v3302, %v3447
      %v3512 = vsel %vm3377, %v3305, %v3448
      %v3513 = vsel %vm3378, %v3310, %v3449
      %v3514 = vsel %vm3379, %v3313, %v3450
      %3515 = vst [vmem:[#allocation3] sm:$0xff] 0.0
      %3516 = vst [vmem:[#allocation3 + $0x8] sm:$0xff] 0.0
      %3517 = vst [vmem:[#allocation3 + $0x10] sm:$0xff] 0.0
      %3518 = vst [vmem:[#allocation3 + $0x1b0] sm:$0xff] 0.0
      %3519 = vst [vmem:[#allocation3 + $0x1b8] sm:$0xff] 0.0
      %3520 = vst [vmem:[#allocation3 + $0x1c0] sm:$0xff] 0.0
      %s3521 = scalar_lea.vmem [#allocation3], 408
      %3522 = vst [vmem:[%s3521] sm:$0xff] 0.0
      %3523 = vst [vmem:[%s3521 + $0x8] sm:$0xff] 0.0
      %3524 = vst [vmem:[%s3521 + $0x10] sm:$0xff] 0.0
      %3525 = vst [vmem:[%s3521 + $0x1b0] sm:$0xff] 0.0
      %3526 = vst [vmem:[%s3521 + $0x1b8] sm:$0xff] 0.0
      %3527 = vst [vmem:[%s3521 + $0x1c0] sm:$0xff] 0.0
      %3528 = vst [vmem:[#allocation3] sm:$0x1] 0.0
      %3529 = vst [vmem:[#allocation3 + $0x18] sm:$0x1] 0.0
      %3530 = vst [vmem:[#allocation3 + $0x30] sm:$0x1] 0.0
      %3531 = vst [vmem:[#allocation3 + $0x48] sm:$0x1] 0.0
      %3532 = vst [vmem:[#allocation3 + $0x60] sm:$0x1] 0.0
      %3533 = vst [vmem:[#allocation3 + $0x78] sm:$0x1] 0.0
      %3534 = vst [vmem:[#allocation3 + $0x90] sm:$0x1] 0.0
      %3535 = vst [vmem:[#allocation3 + $0xa8] sm:$0x1] 0.0
      %3536 = vst [vmem:[#allocation3 + $0xc0] sm:$0x1] 0.0
      %3537 = vst [vmem:[#allocation3 + $0xd8] sm:$0x1] 0.0
      %3538 = vst [vmem:[#allocation3 + $0xf0] sm:$0x1] 0.0
      %3539 = vst [vmem:[#allocation3 + $0x108] sm:$0x1] 0.0
      %3540 = vst [vmem:[#allocation3 + $0x120] sm:$0x1] 0.0
      %3541 = vst [vmem:[#allocation3 + $0x138] sm:$0x1] 0.0
      %3542 = vst [vmem:[#allocation3 + $0x150] sm:$0x1] 0.0
      %3543 = vst [vmem:[#allocation3 + $0x168] sm:$0x1] 0.0
      %3544 = vst [vmem:[#allocation3 + $0x180] sm:$0x1] 0.0
      %3545 = vst [vmem:[#allocation3 + $0x198] sm:$0x1] 0.0
      %3546 = vst [vmem:[#allocation3 + $0x1b0] sm:$0x1] 0.0
      %3547 = vst [vmem:[#allocation3 + $0x1c8] sm:$0x1] 0.0
      %3548 = vst [vmem:[#allocation3 + $0x1e0] sm:$0x1] 0.0
      %3549 = vst [vmem:[#allocation3 + $0x1f8] sm:$0x1] 0.0
      %3550 = vst [vmem:[#allocation3 + $0x210] sm:$0x1] 0.0
      %3551 = vst [vmem:[#allocation3 + $0x228] sm:$0x1] 0.0
      %3552 = vst [vmem:[#allocation3 + $0x240] sm:$0x1] 0.0
      %3553 = vst [vmem:[#allocation3 + $0x258] sm:$0x1] 0.0
      %3554 = vst [vmem:[#allocation3 + $0x270] sm:$0x1] 0.0
      %3555 = vst [vmem:[#allocation3 + $0x288] sm:$0x1] 0.0
      %3556 = vst [vmem:[#allocation3 + $0x2a0] sm:$0x1] 0.0
      %3557 = vst [vmem:[#allocation3 + $0x2b8] sm:$0x1] 0.0
      %3558 = vst [vmem:[#allocation3 + $0x2d0] sm:$0x1] 0.0
      %3559 = vst [vmem:[#allocation3 + $0x2e8] sm:$0x1] 0.0
      %3560 = vst [vmem:[#allocation3 + $0x300] sm:$0x1] 0.0
      %3561 = vst [vmem:[#allocation3 + $0x318] sm:$0x1] 0.0
      %3562 = vst [vmem:[#allocation3 + $0x330] sm:$0x1] 0.0
      %3563 = vst [vmem:[#allocation3 + $0x348] sm:$0x1] 0.0
      %3564 = vst [vmem:[#allocation3 + $0x11] sm:$0x1] 0.0
      %3565 = vst [vmem:[#allocation3 + $0x29] sm:$0x1] 0.0
      %3566 = vst [vmem:[#allocation3 + $0x41] sm:$0x1] 0.0
      %3567 = vst [vmem:[#allocation3 + $0x59] sm:$0x1] 0.0
      %3568 = vst [vmem:[#allocation3 + $0x71] sm:$0x1] 0.0
      %3569 = vst [vmem:[#allocation3 + $0x89] sm:$0x1] 0.0
      %3570 = vst [vmem:[#allocation3 + $0xa1] sm:$0x1] 0.0
      %3571 = vst [vmem:[#allocation3 + $0xb9] sm:$0x1] 0.0
      %3572 = vst [vmem:[#allocation3 + $0xd1] sm:$0x1] 0.0
      %3573 = vst [vmem:[#allocation3 + $0xe9] sm:$0x1] 0.0
      %3574 = vst [vmem:[#allocation3 + $0x101] sm:$0x1] 0.0
      %3575 = vst [vmem:[#allocation3 + $0x119] sm:$0x1] 0.0
      %3576 = vst [vmem:[#allocation3 + $0x131] sm:$0x1] 0.0
      %3577 = vst [vmem:[#allocation3 + $0x149] sm:$0x1] 0.0
      %3578 = vst [vmem:[#allocation3 + $0x161] sm:$0x1] 0.0
      %3579 = vst [vmem:[#allocation3 + $0x179] sm:$0x1] 0.0
      %3580 = vst [vmem:[#allocation3 + $0x191] sm:$0x1] 0.0
      %3581 = vst [vmem:[#allocation3 + $0x1a9] sm:$0x1] 0.0
      %3582 = vst [vmem:[#allocation3 + $0x1c1] sm:$0x1] 0.0
      %3583 = vst [vmem:[#allocation3 + $0x1d9] sm:$0x1] 0.0
      %3584 = vst [vmem:[#allocation3 + $0x1f1] sm:$0x1] 0.0
      %3585 = vst [vmem:[#allocation3 + $0x209] sm:$0x1] 0.0
      %3586 = vst [vmem:[#allocation3 + $0x221] sm:$0x1] 0.0
      %3587 = vst [vmem:[#allocation3 + $0x239] sm:$0x1] 0.0
      %3588 = vst [vmem:[#allocation3 + $0x251] sm:$0x1] 0.0
      %3589 = vst [vmem:[#allocation3 + $0x269] sm:$0x1] 0.0
      %3590 = vst [vmem:[#allocation3 + $0x281] sm:$0x1] 0.0
      %3591 = vst [vmem:[#allocation3 + $0x299] sm:$0x1] 0.0
      %3592 = vst [vmem:[#allocation3 + $0x2b1] sm:$0x1] 0.0
      %3593 = vst [vmem:[#allocation3 + $0x2c9] sm:$0x1] 0.0
      %3594 = vst [vmem:[#allocation3 + $0x2e1] sm:$0x1] 0.0
      %3595 = vst [vmem:[#allocation3 + $0x2f9] sm:$0x1] 0.0
      %3596 = vst [vmem:[#allocation3 + $0x311] sm:$0x1] 0.0
      %3597 = vst [vmem:[#allocation3 + $0x329] sm:$0x1] 0.0
      %3598 = vst [vmem:[#allocation3 + $0x341] sm:$0x1] 0.0
      %3599 = vst [vmem:[#allocation3 + $0x359] sm:$0x1] 0.0
      %s3600 = scalar_lea.vmem [#allocation3], 24
      %3601 = vst [vmem:[%s3600 + $0x1] sm:$0xff] %v3451
      %3602 = vst [vmem:[%s3600 + $0x9] sm:$0xff] %v3452
      %3603 = vst [vmem:[%s3600 + $0x19] sm:$0xff] %v3453
      %3604 = vst [vmem:[%s3600 + $0x21] sm:$0xff] %v3454
      %3605 = vst [vmem:[%s3600 + $0x31] sm:$0xff] %v3455
      %3606 = vst [vmem:[%s3600 + $0x39] sm:$0xff] %v3456
      %3607 = vst [vmem:[%s3600 + $0x49] sm:$0xff] %v3457
      %3608 = vst [vmem:[%s3600 + $0x51] sm:$0xff] %v3458
      %3609 = vst [vmem:[%s3600 + $0x61] sm:$0xff] %v3459
      %3610 = vst [vmem:[%s3600 + $0x69] sm:$0xff] %v3460
      %3611 = vst [vmem:[%s3600 + $0x79] sm:$0xff] %v3461
      %3612 = vst [vmem:[%s3600 + $0x81] sm:$0xff] %v3462
      %3613 = vst [vmem:[%s3600 + $0x91] sm:$0xff] %v3463
      %3614 = vst [vmem:[%s3600 + $0x99] sm:$0xff] %v3464
      %3615 = vst [vmem:[%s3600 + $0xa9] sm:$0xff] %v3465
      %3616 = vst [vmem:[%s3600 + $0xb1] sm:$0xff] %v3466
      %3617 = vst [vmem:[%s3600 + $0xc1] sm:$0xff] %v3467
      %3618 = vst [vmem:[%s3600 + $0xc9] sm:$0xff] %v3468
      %3619 = vst [vmem:[%s3600 + $0xd9] sm:$0xff] %v3469
      %3620 = vst [vmem:[%s3600 + $0xe1] sm:$0xff] %v3470
      %3621 = vst [vmem:[%s3600 + $0xf1] sm:$0xff] %v3471
      %3622 = vst [vmem:[%s3600 + $0xf9] sm:$0xff] %v3472
      %3623 = vst [vmem:[%s3600 + $0x109] sm:$0xff] %v3473
      %3624 = vst [vmem:[%s3600 + $0x111] sm:$0xff] %v3474
      %3625 = vst [vmem:[%s3600 + $0x121] sm:$0xff] %v3475
      %3626 = vst [vmem:[%s3600 + $0x129] sm:$0xff] %v3476
      %3627 = vst [vmem:[%s3600 + $0x139] sm:$0xff] %v3477
      %3628 = vst [vmem:[%s3600 + $0x141] sm:$0xff] %v3478
      %3629 = vst [vmem:[%s3600 + $0x151] sm:$0xff] %v3479
      %3630 = vst [vmem:[%s3600 + $0x159] sm:$0xff] %v3480
      %3631 = vst [vmem:[%s3600 + $0x169] sm:$0xff] %v3481
      %3632 = vst [vmem:[%s3600 + $0x171] sm:$0xff] %v3482
      %3633 = vst [vmem:[%s3600 + $0x1b1] sm:$0xff] %v3483
      %3634 = vst [vmem:[%s3600 + $0x1b9] sm:$0xff] %v3484
      %3635 = vst [vmem:[%s3600 + $0x1c9] sm:$0xff] %v3485
      %3636 = vst [vmem:[%s3600 + $0x1d1] sm:$0xff] %v3486
      %3637 = vst [vmem:[%s3600 + $0x1e1] sm:$0xff] %v3487
      %3638 = vst [vmem:[%s3600 + $0x1e9] sm:$0xff] %v3488
      %3639 = vst [vmem:[%s3600 + $0x1f9] sm:$0xff] %v3489
      %3640 = vst [vmem:[%s3600 + $0x201] sm:$0xff] %v3490
      %3641 = vst [vmem:[%s3600 + $0x211] sm:$0xff] %v3491
      %3642 = vst [vmem:[%s3600 + $0x219] sm:$0xff] %v3492
      %3643 = vst [vmem:[%s3600 + $0x229] sm:$0xff] %v3493
      %3644 = vst [vmem:[%s3600 + $0x231] sm:$0xff] %v3494
      %3645 = vst [vmem:[%s3600 + $0x241] sm:$0xff] %v3495
      %3646 = vst [vmem:[%s3600 + $0x249] sm:$0xff] %v3496
      %3647 = vst [vmem:[%s3600 + $0x259] sm:$0xff] %v3497
      %3648 = vst [vmem:[%s3600 + $0x261] sm:$0xff] %v3498
      %3649 = vst [vmem:[%s3600 + $0x271] sm:$0xff] %v3499
      %3650 = vst [vmem:[%s3600 + $0x279] sm:$0xff] %v3500
      %3651 = vst [vmem:[%s3600 + $0x289] sm:$0xff] %v3501
      %3652 = vst [vmem:[%s3600 + $0x291] sm:$0xff] %v3502
      %3653 = vst [vmem:[%s3600 + $0x2a1] sm:$0xff] %v3503
      %3654 = vst [vmem:[%s3600 + $0x2a9] sm:$0xff] %v3504
      %3655 = vst [vmem:[%s3600 + $0x2b9] sm:$0xff] %v3505
      %3656 = vst [vmem:[%s3600 + $0x2c1] sm:$0xff] %v3506
      %3657 = vst [vmem:[%s3600 + $0x2d1] sm:$0xff] %v3507
      %3658 = vst [vmem:[%s3600 + $0x2d9] sm:$0xff] %v3508
      %3659 = vst [vmem:[%s3600 + $0x2e9] sm:$0xff] %v3509
      %3660 = vst [vmem:[%s3600 + $0x2f1] sm:$0xff] %v3510
      %3661 = vst [vmem:[%s3600 + $0x301] sm:$0xff] %v3511
      %3662 = vst [vmem:[%s3600 + $0x309] sm:$0xff] %v3512
      %3663 = vst [vmem:[%s3600 + $0x319] sm:$0xff] %v3513
      %3664 = vst [vmem:[%s3600 + $0x321] sm:$0xff] %v3514
      %v3665 = vld [vmem:[#allocation3] ss:$2 sm:$0xff]
      %s3666 = scalar_lea.vmem [#allocation3], 48
      %v3667 = vld [vmem:[%s3666] ss:$2 sm:$0xff]
      %s3668 = scalar_lea.vmem [#allocation3], 96
      %v3669 = vld [vmem:[%s3668] ss:$2 sm:$0xff]
      %s3670 = scalar_lea.vmem [#allocation3], 144
      %v3671 = vld [vmem:[%s3670] ss:$2 sm:$0xff]
      %s3672 = scalar_lea.vmem [#allocation3], 192
      %v3673 = vld [vmem:[%s3672] ss:$2 sm:$0xff]
      %s3674 = scalar_lea.vmem [#allocation3], 240
      %v3675 = vld [vmem:[%s3674] ss:$2 sm:$0xff]
      %s3676 = scalar_lea.vmem [#allocation3], 288
      %v3677 = vld [vmem:[%s3676] ss:$2 sm:$0xff]
      %s3678 = scalar_lea.vmem [#allocation3], 336
      %v3679 = vld [vmem:[%s3678] ss:$2 sm:$0xff]
      %s3680 = scalar_lea.vmem [#allocation3], 432
      %v3681 = vld [vmem:[%s3680] ss:$2 sm:$0xff]
      %s3682 = scalar_lea.vmem [#allocation3], 480
      %v3683 = vld [vmem:[%s3682] ss:$2 sm:$0xff]
      %s3684 = scalar_lea.vmem [#allocation3], 528
      %v3685 = vld [vmem:[%s3684] ss:$2 sm:$0xff]
      %s3686 = scalar_lea.vmem [#allocation3], 576
      %v3687 = vld [vmem:[%s3686] ss:$2 sm:$0xff]
      %s3688 = scalar_lea.vmem [#allocation3], 624
      %v3689 = vld [vmem:[%s3688] ss:$2 sm:$0xff]
      %s3690 = scalar_lea.vmem [#allocation3], 672
      %v3691 = vld [vmem:[%s3690] ss:$2 sm:$0xff]
      %s3692 = scalar_lea.vmem [#allocation3], 720
      %v3693 = vld [vmem:[%s3692] ss:$2 sm:$0xff]
      %s3694 = scalar_lea.vmem [#allocation3], 768
      %v3695 = vld [vmem:[%s3694] ss:$2 sm:$0xff]
      %v3696 = vpack.c.bf16 %v3667, %v3665
      %v3697 = vpack.c.bf16 %v3671, %v3669
      %v3698 = vpack.c.bf16 %v3675, %v3673
      %v3699 = vpack.c.bf16 %v3679, %v3677
      %v3700 = vpack.c.bf16 %v3683, %v3681
      %v3701 = vpack.c.bf16 %v3687, %v3685
      %v3702 = vpack.c.bf16 %v3691, %v3689
      %v3703 = vpack.c.bf16 %v3695, %v3693
      %s3704 = scalar_lea.vmem [#allocation3], 1
      %v3705 = vld [vmem:[%s3704] ss:$2 sm:$0xff]
      %s3706 = scalar_lea.vmem [#allocation3], 49
      %v3707 = vld [vmem:[%s3706] ss:$2 sm:$0xff]
      %s3708 = scalar_lea.vmem [#allocation3], 97
      %v3709 = vld [vmem:[%s3708] ss:$2 sm:$0xff]
      %s3710 = scalar_lea.vmem [#allocation3], 145
      %v3711 = vld [vmem:[%s3710] ss:$2 sm:$0xff]
      %s3712 = scalar_lea.vmem [#allocation3], 193
      %v3713 = vld [vmem:[%s3712] ss:$2 sm:$0xff]
      %s3714 = scalar_lea.vmem [#allocation3], 241
      %v3715 = vld [vmem:[%s3714] ss:$2 sm:$0xff]
      %s3716 = scalar_lea.vmem [#allocation3], 289
      %v3717 = vld [vmem:[%s3716] ss:$2 sm:$0xff]
      %s3718 = scalar_lea.vmem [#allocation3], 337
      %v3719 = vld [vmem:[%s3718] ss:$2 sm:$0xff]
      %s3720 = scalar_lea.vmem [#allocation3], 433
      %v3721 = vld [vmem:[%s3720] ss:$2 sm:$0xff]
      %s3722 = scalar_lea.vmem [#allocation3], 481
      %v3723 = vld [vmem:[%s3722] ss:$2 sm:$0xff]
      %s3724 = scalar_lea.vmem [#allocation3], 529
      %v3725 = vld [vmem:[%s3724] ss:$2 sm:$0xff]
      %s3726 = scalar_lea.vmem [#allocation3], 577
      %v3727 = vld [vmem:[%s3726] ss:$2 sm:$0xff]
      %s3728 = scalar_lea.vmem [#allocation3], 625
      %v3729 = vld [vmem:[%s3728] ss:$2 sm:$0xff]
      %s3730 = scalar_lea.vmem [#allocation3], 673
      %v3731 = vld [vmem:[%s3730] ss:$2 sm:$0xff]
      %s3732 = scalar_lea.vmem [#allocation3], 721
      %v3733 = vld [vmem:[%s3732] ss:$2 sm:$0xff]
      %s3734 = scalar_lea.vmem [#allocation3], 769
      %v3735 = vld [vmem:[%s3734] ss:$2 sm:$0xff]
      %v3736 = vpack.c.bf16 %v3707, %v3705
      %v3737 = vpack.c.bf16 %v3711, %v3709
      %v3738 = vpack.c.bf16 %v3715, %v3713
      %v3739 = vpack.c.bf16 %v3719, %v3717
      %v3740 = vpack.c.bf16 %v3723, %v3721
      %v3741 = vpack.c.bf16 %v3727, %v3725
      %v3742 = vpack.c.bf16 %v3731, %v3729
      %v3743 = vpack.c.bf16 %v3735, %v3733
      %s3744 = scalar_lea.vmem [#allocation3], 2
      %v3745 = vld [vmem:[%s3744] ss:$2 sm:$0xff]
      %s3746 = scalar_lea.vmem [#allocation3], 50
      %v3747 = vld [vmem:[%s3746] ss:$2 sm:$0xff]
      %s3748 = scalar_lea.vmem [#allocation3], 98
      %v3749 = vld [vmem:[%s3748] ss:$2 sm:$0xff]
      %s3750 = scalar_lea.vmem [#allocation3], 146
      %v3751 = vld [vmem:[%s3750] ss:$2 sm:$0xff]
      %s3752 = scalar_lea.vmem [#allocation3], 194
      %v3753 = vld [vmem:[%s3752] ss:$2 sm:$0xff]
      %s3754 = scalar_lea.vmem [#allocation3], 242
      %v3755 = vld [vmem:[%s3754] ss:$2 sm:$0xff]
      %s3756 = scalar_lea.vmem [#allocation3], 290
      %v3757 = vld [vmem:[%s3756] ss:$2 sm:$0xff]
      %s3758 = scalar_lea.vmem [#allocation3], 338
      %v3759 = vld [vmem:[%s3758] ss:$2 sm:$0xff]
      %s3760 = scalar_lea.vmem [#allocation3], 434
      %v3761 = vld [vmem:[%s3760] ss:$2 sm:$0xff]
      %s3762 = scalar_lea.vmem [#allocation3], 482
      %v3763 = vld [vmem:[%s3762] ss:$2 sm:$0xff]
      %s3764 = scalar_lea.vmem [#allocation3], 530
      %v3765 = vld [vmem:[%s3764] ss:$2 sm:$0xff]
      %s3766 = scalar_lea.vmem [#allocation3], 578
      %v3767 = vld [vmem:[%s3766] ss:$2 sm:$0xff]
      %s3768 = scalar_lea.vmem [#allocation3], 626
      %v3769 = vld [vmem:[%s3768] ss:$2 sm:$0xff]
      %s3770 = scalar_lea.vmem [#allocation3], 674
      %v3771 = vld [vmem:[%s3770] ss:$2 sm:$0xff]
      %s3772 = scalar_lea.vmem [#allocation3], 722
      %v3773 = vld [vmem:[%s3772] ss:$2 sm:$0xff]
      %s3774 = scalar_lea.vmem [#allocation3], 770
      %v3775 = vld [vmem:[%s3774] ss:$2 sm:$0xff]
      %v3776 = vpack.c.bf16 %v3747, %v3745
      %v3777 = vpack.c.bf16 %v3751, %v3749
      %v3778 = vpack.c.bf16 %v3755, %v3753
      %v3779 = vpack.c.bf16 %v3759, %v3757
      %v3780 = vpack.c.bf16 %v3763, %v3761
      %v3781 = vpack.c.bf16 %v3767, %v3765
      %v3782 = vpack.c.bf16 %v3771, %v3769
      %v3783 = vpack.c.bf16 %v3775, %v3773
      %v3784 = vld [vmem:[%s3600] ss:$2 sm:$0xff]
      %s3785 = scalar_lea.vmem %s3600, 48 [#allocation3]
      %v3786 = vld [vmem:[%s3785] ss:$2 sm:$0xff]
      %s3787 = scalar_lea.vmem %s3600, 96 [#allocation3]
      %v3788 = vld [vmem:[%s3787] ss:$2 sm:$0xff]
      %s3789 = scalar_lea.vmem %s3600, 144 [#allocation3]
      %v3790 = vld [vmem:[%s3789] ss:$2 sm:$0xff]
      %s3791 = scalar_lea.vmem %s3600, 192 [#allocation3]
      %v3792 = vld [vmem:[%s3791] ss:$2 sm:$0xff]
      %s3793 = scalar_lea.vmem %s3600, 240 [#allocation3]
      %v3794 = vld [vmem:[%s3793] ss:$2 sm:$0xff]
      %s3795 = scalar_lea.vmem %s3600, 288 [#allocation3]
      %v3796 = vld [vmem:[%s3795] ss:$2 sm:$0xff]
      %s3797 = scalar_lea.vmem %s3600, 336 [#allocation3]
      %v3798 = vld [vmem:[%s3797] ss:$2 sm:$0xff]
      %s3799 = scalar_lea.vmem %s3600, 432 [#allocation3]
      %v3800 = vld [vmem:[%s3799] ss:$2 sm:$0xff]
      %s3801 = scalar_lea.vmem %s3600, 480 [#allocation3]
      %v3802 = vld [vmem:[%s3801] ss:$2 sm:$0xff]
      %s3803 = scalar_lea.vmem %s3600, 528 [#allocation3]
      %v3804 = vld [vmem:[%s3803] ss:$2 sm:$0xff]
      %s3805 = scalar_lea.vmem %s3600, 576 [#allocation3]
      %v3806 = vld [vmem:[%s3805] ss:$2 sm:$0xff]
      %s3807 = scalar_lea.vmem %s3600, 624 [#allocation3]
      %v3808 = vld [vmem:[%s3807] ss:$2 sm:$0xff]
      %s3809 = scalar_lea.vmem %s3600, 672 [#allocation3]
      %v3810 = vld [vmem:[%s3809] ss:$2 sm:$0xff]
      %s3811 = scalar_lea.vmem %s3600, 720 [#allocation3]
      %v3812 = vld [vmem:[%s3811] ss:$2 sm:$0xff]
      %s3813 = scalar_lea.vmem %s3600, 768 [#allocation3]
      %v3814 = vld [vmem:[%s3813] ss:$2 sm:$0xff]
      %v3815 = vpack.c.bf16 %v3786, %v3784
      %v3816 = vpack.c.bf16 %v3790, %v3788
      %v3817 = vpack.c.bf16 %v3794, %v3792
      %v3818 = vpack.c.bf16 %v3798, %v3796
      %v3819 = vpack.c.bf16 %v3802, %v3800
      %v3820 = vpack.c.bf16 %v3806, %v3804
      %v3821 = vpack.c.bf16 %v3810, %v3808
      %v3822 = vpack.c.bf16 %v3814, %v3812
      %s3823 = scalar_lea.vmem %s3600, 1 [#allocation3]
      %v3824 = vld [vmem:[%s3823] ss:$2 sm:$0xff]
      %s3825 = scalar_lea.vmem %s3600, 49 [#allocation3]
      %v3826 = vld [vmem:[%s3825] ss:$2 sm:$0xff]
      %s3827 = scalar_lea.vmem %s3600, 97 [#allocation3]
      %v3828 = vld [vmem:[%s3827] ss:$2 sm:$0xff]
      %s3829 = scalar_lea.vmem %s3600, 145 [#allocation3]
      %v3830 = vld [vmem:[%s3829] ss:$2 sm:$0xff]
      %s3831 = scalar_lea.vmem %s3600, 193 [#allocation3]
      %v3832 = vld [vmem:[%s3831] ss:$2 sm:$0xff]
      %s3833 = scalar_lea.vmem %s3600, 241 [#allocation3]
      %v3834 = vld [vmem:[%s3833] ss:$2 sm:$0xff]
      %s3835 = scalar_lea.vmem %s3600, 289 [#allocation3]
      %v3836 = vld [vmem:[%s3835] ss:$2 sm:$0xff]
      %s3837 = scalar_lea.vmem %s3600, 337 [#allocation3]
      %v3838 = vld [vmem:[%s3837] ss:$2 sm:$0xff]
      %s3839 = scalar_lea.vmem %s3600, 433 [#allocation3]
      %v3840 = vld [vmem:[%s3839] ss:$2 sm:$0xff]
      %s3841 = scalar_lea.vmem %s3600, 481 [#allocation3]
      %v3842 = vld [vmem:[%s3841] ss:$2 sm:$0xff]
      %s3843 = scalar_lea.vmem %s3600, 529 [#allocation3]
      %v3844 = vld [vmem:[%s3843] ss:$2 sm:$0xff]
      %s3845 = scalar_lea.vmem %s3600, 577 [#allocation3]
      %v3846 = vld [vmem:[%s3845] ss:$2 sm:$0xff]
      %s3847 = scalar_lea.vmem %s3600, 625 [#allocation3]
      %v3848 = vld [vmem:[%s3847] ss:$2 sm:$0xff]
      %s3849 = scalar_lea.vmem %s3600, 673 [#allocation3]
      %v3850 = vld [vmem:[%s3849] ss:$2 sm:$0xff]
      %s3851 = scalar_lea.vmem %s3600, 721 [#allocation3]
      %v3852 = vld [vmem:[%s3851] ss:$2 sm:$0xff]
      %s3853 = scalar_lea.vmem %s3600, 769 [#allocation3]
      %v3854 = vld [vmem:[%s3853] ss:$2 sm:$0xff]
      %v3855 = vpack.c.bf16 %v3826, %v3824
      %v3856 = vpack.c.bf16 %v3830, %v3828
      %v3857 = vpack.c.bf16 %v3834, %v3832
      %v3858 = vpack.c.bf16 %v3838, %v3836
      %v3859 = vpack.c.bf16 %v3842, %v3840
      %v3860 = vpack.c.bf16 %v3846, %v3844
      %v3861 = vpack.c.bf16 %v3850, %v3848
      %v3862 = vpack.c.bf16 %v3854, %v3852
      %s3863 = scalar_lea.vmem %s3600, 2 [#allocation3]
      %v3864 = vld [vmem:[%s3863] ss:$2 sm:$0xff]
      %s3865 = scalar_lea.vmem %s3600, 50 [#allocation3]
      %v3866 = vld [vmem:[%s3865] ss:$2 sm:$0xff]
      %s3867 = scalar_lea.vmem %s3600, 98 [#allocation3]
      %v3868 = vld [vmem:[%s3867] ss:$2 sm:$0xff]
      %s3869 = scalar_lea.vmem %s3600, 146 [#allocation3]
      %v3870 = vld [vmem:[%s3869] ss:$2 sm:$0xff]
      %s3871 = scalar_lea.vmem %s3600, 194 [#allocation3]
      %v3872 = vld [vmem:[%s3871] ss:$2 sm:$0xff]
      %s3873 = scalar_lea.vmem %s3600, 242 [#allocation3]
      %v3874 = vld [vmem:[%s3873] ss:$2 sm:$0xff]
      %s3875 = scalar_lea.vmem %s3600, 290 [#allocation3]
      %v3876 = vld [vmem:[%s3875] ss:$2 sm:$0xff]
      %s3877 = scalar_lea.vmem %s3600, 338 [#allocation3]
      %v3878 = vld [vmem:[%s3877] ss:$2 sm:$0xff]
      %s3879 = scalar_lea.vmem %s3600, 434 [#allocation3]
      %v3880 = vld [vmem:[%s3879] ss:$2 sm:$0xff]
      %s3881 = scalar_lea.vmem %s3600, 482 [#allocation3]
      %v3882 = vld [vmem:[%s3881] ss:$2 sm:$0xff]
      %s3883 = scalar_lea.vmem %s3600, 530 [#allocation3]
      %v3884 = vld [vmem:[%s3883] ss:$2 sm:$0xff]
      %s3885 = scalar_lea.vmem %s3600, 578 [#allocation3]
      %v3886 = vld [vmem:[%s3885] ss:$2 sm:$0xff]
      %s3887 = scalar_lea.vmem %s3600, 626 [#allocation3]
      %v3888 = vld [vmem:[%s3887] ss:$2 sm:$0xff]
      %s3889 = scalar_lea.vmem %s3600, 674 [#allocation3]
      %v3890 = vld [vmem:[%s3889] ss:$2 sm:$0xff]
      %s3891 = scalar_lea.vmem %s3600, 722 [#allocation3]
      %v3892 = vld [vmem:[%s3891] ss:$2 sm:$0xff]
      %s3893 = scalar_lea.vmem %s3600, 770 [#allocation3]
      %v3894 = vld [vmem:[%s3893] ss:$2 sm:$0xff]
      %v3895 = vpack.c.bf16 %v3866, %v3864
      %v3896 = vpack.c.bf16 %v3870, %v3868
      %v3897 = vpack.c.bf16 %v3874, %v3872
      %v3898 = vpack.c.bf16 %v3878, %v3876
      %v3899 = vpack.c.bf16 %v3882, %v3880
      %v3900 = vpack.c.bf16 %v3886, %v3884
      %v3901 = vpack.c.bf16 %v3890, %v3888
      %v3902 = vpack.c.bf16 %v3894, %v3892
      %s3903 = scalar_lea.vmem [#allocation3], 48
      %v3904 = vld [vmem:[%s3903] ss:$2 sm:$0xff]
      %s3905 = scalar_lea.vmem %s3903, 48 [#allocation3]
      %v3906 = vld [vmem:[%s3905] ss:$2 sm:$0xff]
      %s3907 = scalar_lea.vmem %s3903, 96 [#allocation3]
      %v3908 = vld [vmem:[%s3907] ss:$2 sm:$0xff]
      %s3909 = scalar_lea.vmem %s3903, 144 [#allocation3]
      %v3910 = vld [vmem:[%s3909] ss:$2 sm:$0xff]
      %s3911 = scalar_lea.vmem %s3903, 192 [#allocation3]
      %v3912 = vld [vmem:[%s3911] ss:$2 sm:$0xff]
      %s3913 = scalar_lea.vmem %s3903, 240 [#allocation3]
      %v3914 = vld [vmem:[%s3913] ss:$2 sm:$0xff]
      %s3915 = scalar_lea.vmem %s3903, 288 [#allocation3]
      %v3916 = vld [vmem:[%s3915] ss:$2 sm:$0xff]
      %s3917 = scalar_lea.vmem %s3903, 336 [#allocation3]
      %v3918 = vld [vmem:[%s3917] ss:$2 sm:$0xff]
      %s3919 = scalar_lea.vmem %s3903, 432 [#allocation3]
      %v3920 = vld [vmem:[%s3919] ss:$2 sm:$0xff]
      %s3921 = scalar_lea.vmem %s3903, 480 [#allocation3]
      %v3922 = vld [vmem:[%s3921] ss:$2 sm:$0xff]
      %s3923 = scalar_lea.vmem %s3903, 528 [#allocation3]
      %v3924 = vld [vmem:[%s3923] ss:$2 sm:$0xff]
      %s3925 = scalar_lea.vmem %s3903, 576 [#allocation3]
      %v3926 = vld [vmem:[%s3925] ss:$2 sm:$0xff]
      %s3927 = scalar_lea.vmem %s3903, 624 [#allocation3]
      %v3928 = vld [vmem:[%s3927] ss:$2 sm:$0xff]
      %s3929 = scalar_lea.vmem %s3903, 672 [#allocation3]
      %v3930 = vld [vmem:[%s3929] ss:$2 sm:$0xff]
      %s3931 = scalar_lea.vmem %s3903, 720 [#allocation3]
      %v3932 = vld [vmem:[%s3931] ss:$2 sm:$0xff]
      %s3933 = scalar_lea.vmem %s3903, 768 [#allocation3]
      %v3934 = vld [vmem:[%s3933] ss:$2 sm:$0xff]
      %v3935 = vpack.c.bf16 %v3906, %v3904
      %v3936 = vpack.c.bf16 %v3910, %v3908
      %v3937 = vpack.c.bf16 %v3914, %v3912
      %v3938 = vpack.c.bf16 %v3918, %v3916
      %v3939 = vpack.c.bf16 %v3922, %v3920
      %v3940 = vpack.c.bf16 %v3926, %v3924
      %v3941 = vpack.c.bf16 %v3930, %v3928
      %v3942 = vpack.c.bf16 %v3934, %v3932
      %s3943 = scalar_lea.vmem %s3903, 1 [#allocation3]
      %v3944 = vld [vmem:[%s3943] ss:$2 sm:$0xff]
      %s3945 = scalar_lea.vmem %s3903, 49 [#allocation3]
      %v3946 = vld [vmem:[%s3945] ss:$2 sm:$0xff]
      %s3947 = scalar_lea.vmem %s3903, 97 [#allocation3]
      %v3948 = vld [vmem:[%s3947] ss:$2 sm:$0xff]
      %s3949 = scalar_lea.vmem %s3903, 145 [#allocation3]
      %v3950 = vld [vmem:[%s3949] ss:$2 sm:$0xff]
      %s3951 = scalar_lea.vmem %s3903, 193 [#allocation3]
      %v3952 = vld [vmem:[%s3951] ss:$2 sm:$0xff]
      %s3953 = scalar_lea.vmem %s3903, 241 [#allocation3]
      %v3954 = vld [vmem:[%s3953] ss:$2 sm:$0xff]
      %s3955 = scalar_lea.vmem %s3903, 289 [#allocation3]
      %v3956 = vld [vmem:[%s3955] ss:$2 sm:$0xff]
      %s3957 = scalar_lea.vmem %s3903, 337 [#allocation3]
      %v3958 = vld [vmem:[%s3957] ss:$2 sm:$0xff]
      %s3959 = scalar_lea.vmem %s3903, 433 [#allocation3]
      %v3960 = vld [vmem:[%s3959] ss:$2 sm:$0xff]
      %s3961 = scalar_lea.vmem %s3903, 481 [#allocation3]
      %v3962 = vld [vmem:[%s3961] ss:$2 sm:$0xff]
      %s3963 = scalar_lea.vmem %s3903, 529 [#allocation3]
      %v3964 = vld [vmem:[%s3963] ss:$2 sm:$0xff]
      %s3965 = scalar_lea.vmem %s3903, 577 [#allocation3]
      %v3966 = vld [vmem:[%s3965] ss:$2 sm:$0xff]
      %s3967 = scalar_lea.vmem %s3903, 625 [#allocation3]
      %v3968 = vld [vmem:[%s3967] ss:$2 sm:$0xff]
      %s3969 = scalar_lea.vmem %s3903, 673 [#allocation3]
      %v3970 = vld [vmem:[%s3969] ss:$2 sm:$0xff]
      %s3971 = scalar_lea.vmem %s3903, 721 [#allocation3]
      %v3972 = vld [vmem:[%s3971] ss:$2 sm:$0xff]
      %s3973 = scalar_lea.vmem %s3903, 769 [#allocation3]
      %v3974 = vld [vmem:[%s3973] ss:$2 sm:$0xff]
      %v3975 = vpack.c.bf16 %v3946, %v3944
      %v3976 = vpack.c.bf16 %v3950, %v3948
      %v3977 = vpack.c.bf16 %v3954, %v3952
      %v3978 = vpack.c.bf16 %v3958, %v3956
      %v3979 = vpack.c.bf16 %v3962, %v3960
      %v3980 = vpack.c.bf16 %v3966, %v3964
      %v3981 = vpack.c.bf16 %v3970, %v3968
      %v3982 = vpack.c.bf16 %v3974, %v3972
      %s3983 = scalar_lea.vmem %s3903, 2 [#allocation3]
      %v3984 = vld [vmem:[%s3983] ss:$2 sm:$0xff]
      %s3985 = scalar_lea.vmem %s3903, 50 [#allocation3]
      %v3986 = vld [vmem:[%s3985] ss:$2 sm:$0xff]
      %s3987 = scalar_lea.vmem %s3903, 98 [#allocation3]
      %v3988 = vld [vmem:[%s3987] ss:$2 sm:$0xff]
      %s3989 = scalar_lea.vmem %s3903, 146 [#allocation3]
      %v3990 = vld [vmem:[%s3989] ss:$2 sm:$0xff]
      %s3991 = scalar_lea.vmem %s3903, 194 [#allocation3]
      %v3992 = vld [vmem:[%s3991] ss:$2 sm:$0xff]
      %s3993 = scalar_lea.vmem %s3903, 242 [#allocation3]
      %v3994 = vld [vmem:[%s3993] ss:$2 sm:$0xff]
      %s3995 = scalar_lea.vmem %s3903, 290 [#allocation3]
      %v3996 = vld [vmem:[%s3995] ss:$2 sm:$0xff]
      %s3997 = scalar_lea.vmem %s3903, 338 [#allocation3]
      %v3998 = vld [vmem:[%s3997] ss:$2 sm:$0xff]
      %s3999 = scalar_lea.vmem %s3903, 434 [#allocation3]
      %v4000 = vld [vmem:[%s3999] ss:$2 sm:$0xff]
      %s4001 = scalar_lea.vmem %s3903, 482 [#allocation3]
      %v4002 = vld [vmem:[%s4001] ss:$2 sm:$0xff]
      %s4003 = scalar_lea.vmem %s3903, 530 [#allocation3]
      %v4004 = vld [vmem:[%s4003] ss:$2 sm:$0xff]
      %s4005 = scalar_lea.vmem %s3903, 578 [#allocation3]
      %v4006 = vld [vmem:[%s4005] ss:$2 sm:$0xff]
      %s4007 = scalar_lea.vmem %s3903, 626 [#allocation3]
      %v4008 = vld [vmem:[%s4007] ss:$2 sm:$0xff]
      %s4009 = scalar_lea.vmem %s3903, 674 [#allocation3]
      %v4010 = vld [vmem:[%s4009] ss:$2 sm:$0xff]
      %s4011 = scalar_lea.vmem %s3903, 722 [#allocation3]
      %v4012 = vld [vmem:[%s4011] ss:$2 sm:$0xff]
      %s4013 = scalar_lea.vmem %s3903, 770 [#allocation3]
      %v4014 = vld [vmem:[%s4013] ss:$2 sm:$0xff]
      %v4015 = vpack.c.bf16 %v3986, %v3984
      %v4016 = vpack.c.bf16 %v3990, %v3988
      %v4017 = vpack.c.bf16 %v3994, %v3992
      %v4018 = vpack.c.bf16 %v3998, %v3996
      %v4019 = vpack.c.bf16 %v4002, %v4000
      %v4020 = vpack.c.bf16 %v4006, %v4004
      %v4021 = vpack.c.bf16 %v4010, %v4008
      %v4022 = vpack.c.bf16 %v4014, %v4012
      %v4023 = vld [vmem:[%s5] sm:$0xf]
      %v4024 = vld [vmem:[%s5 + $0x4] sm:$0xf]
      %v4025 = vld [vmem:[%s5 + $0x8] sm:$0xf]
      %v4026 = vld [vmem:[%s5 + $0xc] sm:$0xf]
      %v4027 = vld [vmem:[%s5 + $0x10] sm:$0xf]
      %v4028 = vld [vmem:[%s5 + $0x14] sm:$0xf]
      %v4029 = vld [vmem:[%s5 + $0x18] sm:$0xf]
      %v4030 = vld [vmem:[%s5 + $0x1c] sm:$0xf]
      %v4031 = vld [vmem:[%s5 + $0x20] sm:$0xf]
      %v4032 = vld [vmem:[%s5 + $0x24] sm:$0xf]
      %v4033 = vld [vmem:[%s5 + $0x28] sm:$0xf]
      %v4034 = vld [vmem:[%s5 + $0x2c] sm:$0xf]
      %v4035 = vld [vmem:[%s5 + $0x30] sm:$0xf]
      %v4036 = vld [vmem:[%s5 + $0x34] sm:$0xf]
      %v4037 = vld [vmem:[%s5 + $0x38] sm:$0xf]
      %v4038 = vld [vmem:[%s5 + $0x3c] sm:$0xf]
      %v4039 = vld [vmem:[%s5 + $0x40] sm:$0xf]
      %v4040 = vld [vmem:[%s5 + $0x44] sm:$0xf]
      %v4041 = vld [vmem:[%s5 + $0x48] sm:$0xf]
      %v4042 = vld [vmem:[%s5 + $0x4c] sm:$0xf]
      %v4043 = vld [vmem:[%s5 + $0x50] sm:$0xf]
      %v4044 = vld [vmem:[%s5 + $0x54] sm:$0xf]
      %v4045 = vld [vmem:[%s5 + $0x58] sm:$0xf]
      %v4046 = vld [vmem:[%s5 + $0x5c] sm:$0xf]
      %v4047 = vld [vmem:[%s5 + $0x60] sm:$0xf]
      %v4048 = vld [vmem:[%s5 + $0x64] sm:$0xf]
      %v4049 = vld [vmem:[%s5 + $0x68] sm:$0xf]
      %v4050 = vld [vmem:[%s5 + $0x6c] sm:$0xf]
      %v4051 = vld [vmem:[%s5 + $0x70] sm:$0xf]
      %v4052 = vld [vmem:[%s5 + $0x74] sm:$0xf]
      %v4053 = vld [vmem:[%s5 + $0x78] sm:$0xf]
      %v4054 = vld [vmem:[%s5 + $0x7c] sm:$0xf]
      %v4055 = vld [vmem:[%s5 + $0x80] sm:$0xf]
      %v4056 = vld [vmem:[%s5 + $0x84] sm:$0xf]
      %v4057 = vld [vmem:[%s5 + $0x88] sm:$0xf]
      %v4058 = vld [vmem:[%s5 + $0x8c] sm:$0xf]
      %v4059 = vld [vmem:[%s5 + $0x90] sm:$0xf]
      %v4060 = vld [vmem:[%s5 + $0x94] sm:$0xf]
      %v4061 = vld [vmem:[%s5 + $0x98] sm:$0xf]
      %v4062 = vld [vmem:[%s5 + $0x9c] sm:$0xf]
      %v4063 = vld [vmem:[%s5 + $0xa0] sm:$0xf]
      %v4064 = vld [vmem:[%s5 + $0xa4] sm:$0xf]
      %v4065 = vld [vmem:[%s5 + $0xa8] sm:$0xf]
      %v4066 = vld [vmem:[%s5 + $0xac] sm:$0xf]
      %v4067 = vld [vmem:[%s5 + $0xb0] sm:$0xf]
      %v4068 = vld [vmem:[%s5 + $0xb4] sm:$0xf]
      %v4069 = vld [vmem:[%s5 + $0xb8] sm:$0xf]
      %v4070 = vld [vmem:[%s5 + $0xbc] sm:$0xf]
      %v4071 = vld [vmem:[%s5 + $0xc0] sm:$0xf]
      %v4072 = vld [vmem:[%s5 + $0xc4] sm:$0xf]
      %v4073 = vld [vmem:[%s5 + $0xc8] sm:$0xf]
      %v4074 = vld [vmem:[%s5 + $0xcc] sm:$0xf]
      %v4075 = vld [vmem:[%s5 + $0xd0] sm:$0xf]
      %v4076 = vld [vmem:[%s5 + $0xd4] sm:$0xf]
      %v4077 = vld [vmem:[%s5 + $0xd8] sm:$0xf]
      %v4078 = vld [vmem:[%s5 + $0xdc] sm:$0xf]
      %v4079 = vld [vmem:[%s5 + $0xe0] sm:$0xf]
      %v4080 = vld [vmem:[%s5 + $0xe4] sm:$0xf]
      %v4081 = vld [vmem:[%s5 + $0xe8] sm:$0xf]
      %v4082 = vld [vmem:[%s5 + $0xec] sm:$0xf]
      %v4083 = vld [vmem:[%s5 + $0xf0] sm:$0xf]
      %v4084 = vld [vmem:[%s5 + $0xf4] sm:$0xf]
      %v4085 = vld [vmem:[%s5 + $0xf8] sm:$0xf]
      %v4086 = vld [vmem:[%s5 + $0xfc] sm:$0xf]
      %v4087 = vld [vmem:[%s5 + $0x100] sm:$0xf]
      %v4088 = vld [vmem:[%s5 + $0x104] sm:$0xf]
      %v4089 = vld [vmem:[%s5 + $0x108] sm:$0xf]
      %v4090 = vld [vmem:[%s5 + $0x10c] sm:$0xf]
      %v4091 = vld [vmem:[%s5 + $0x110] sm:$0xf]
      %v4092 = vld [vmem:[%s5 + $0x114] sm:$0xf]
      %v4093 = vld [vmem:[%s5 + $0x118] sm:$0xf]
      %v4094 = vld [vmem:[%s5 + $0x11c] sm:$0xf]
      %v4095 = vld [vmem:[%s5 + $0x120] sm:$0xf]
      %v4096 = vld [vmem:[%s5 + $0x124] sm:$0xf]
      %v4097 = vld [vmem:[%s5 + $0x128] sm:$0xf]
      %v4098 = vld [vmem:[%s5 + $0x12c] sm:$0xf]
      %v4099 = vld [vmem:[%s5 + $0x130] sm:$0xf]
      %v4100 = vld [vmem:[%s5 + $0x134] sm:$0xf]
      %v4101 = vld [vmem:[%s5 + $0x138] sm:$0xf]
      %v4102 = vld [vmem:[%s5 + $0x13c] sm:$0xf]
      %v4103 = vld [vmem:[%s5 + $0x140] sm:$0xf]
      %v4104 = vld [vmem:[%s5 + $0x144] sm:$0xf]
      %v4105 = vld [vmem:[%s5 + $0x148] sm:$0xf]
      %v4106 = vld [vmem:[%s5 + $0x14c] sm:$0xf]
      %v4107 = vld [vmem:[%s5 + $0x150] sm:$0xf]
      %v4108 = vld [vmem:[%s5 + $0x154] sm:$0xf]
      %v4109 = vld [vmem:[%s5 + $0x158] sm:$0xf]
      %v4110 = vld [vmem:[%s5 + $0x15c] sm:$0xf]
      %v4111 = vld [vmem:[%s5 + $0x160] sm:$0xf]
      %v4112 = vld [vmem:[%s5 + $0x164] sm:$0xf]
      %v4113 = vld [vmem:[%s5 + $0x168] sm:$0xf]
      %v4114 = vld [vmem:[%s5 + $0x16c] sm:$0xf]
      %v4115 = vld [vmem:[%s5 + $0x170] sm:$0xf]
      %v4116 = vld [vmem:[%s5 + $0x174] sm:$0xf]
      %v4117 = vld [vmem:[%s5 + $0x178] sm:$0xf]
      %v4118 = vld [vmem:[%s5 + $0x17c] sm:$0xf]
      %v4119 = vld [vmem:[%s5 + $0x180] sm:$0xf]
      %v4120 = vld [vmem:[%s5 + $0x184] sm:$0xf]
      %v4121 = vld [vmem:[%s5 + $0x188] sm:$0xf]
      %v4122 = vld [vmem:[%s5 + $0x18c] sm:$0xf]
      %v4123 = vld [vmem:[%s5 + $0x190] sm:$0xf]
      %v4124 = vld [vmem:[%s5 + $0x194] sm:$0xf]
      %v4125 = vld [vmem:[%s5 + $0x198] sm:$0xf]
      %v4126 = vld [vmem:[%s5 + $0x19c] sm:$0xf]
      %v4127 = vld [vmem:[%s5 + $0x1a0] sm:$0xf]
      %v4128 = vld [vmem:[%s5 + $0x1a4] sm:$0xf]
      %v4129 = vld [vmem:[%s5 + $0x1a8] sm:$0xf]
      %v4130 = vld [vmem:[%s5 + $0x1ac] sm:$0xf]
      %v4131 = vld [vmem:[%s5 + $0x1b0] sm:$0xf]
      %v4132 = vld [vmem:[%s5 + $0x1b4] sm:$0xf]
      %v4133 = vld [vmem:[%s5 + $0x1b8] sm:$0xf]
      %v4134 = vld [vmem:[%s5 + $0x1bc] sm:$0xf]
      %v4135 = vld [vmem:[%s5 + $0x1c0] sm:$0xf]
      %v4136 = vld [vmem:[%s5 + $0x1c4] sm:$0xf]
      %v4137 = vld [vmem:[%s5 + $0x1c8] sm:$0xf]
      %v4138 = vld [vmem:[%s5 + $0x1cc] sm:$0xf]
      %v4139 = vld [vmem:[%s5 + $0x1d0] sm:$0xf]
      %v4140 = vld [vmem:[%s5 + $0x1d4] sm:$0xf]
      %v4141 = vld [vmem:[%s5 + $0x1d8] sm:$0xf]
      %v4142 = vld [vmem:[%s5 + $0x1dc] sm:$0xf]
      %v4143 = vld [vmem:[%s5 + $0x1e0] sm:$0xf]
      %v4144 = vld [vmem:[%s5 + $0x1e4] sm:$0xf]
      %v4145 = vld [vmem:[%s5 + $0x1e8] sm:$0xf]
      %v4146 = vld [vmem:[%s5 + $0x1ec] sm:$0xf]
      %v4147 = vld [vmem:[%s5 + $0x1f0] sm:$0xf]
      %v4148 = vld [vmem:[%s5 + $0x1f4] sm:$0xf]
      %v4149 = vld [vmem:[%s5 + $0x1f8] sm:$0xf]
      %v4150 = vld [vmem:[%s5 + $0x1fc] sm:$0xf]
      %v4151 = vld [vmem:[%s5 + $0x200] sm:$0xf]
      %v4152 = vld [vmem:[%s5 + $0x204] sm:$0xf]
      %v4153 = vld [vmem:[%s5 + $0x208] sm:$0xf]
      %v4154 = vld [vmem:[%s5 + $0x20c] sm:$0xf]
      %v4155 = vld [vmem:[%s5 + $0x210] sm:$0xf]
      %v4156 = vld [vmem:[%s5 + $0x214] sm:$0xf]
      %v4157 = vld [vmem:[%s5 + $0x218] sm:$0xf]
      %v4158 = vld [vmem:[%s5 + $0x21c] sm:$0xf]
      %v4159 = vld [vmem:[%s5 + $0x220] sm:$0xf]
      %v4160 = vld [vmem:[%s5 + $0x224] sm:$0xf]
      %v4161 = vld [vmem:[%s5 + $0x228] sm:$0xf]
      %v4162 = vld [vmem:[%s5 + $0x22c] sm:$0xf]
      %v4163 = vld [vmem:[%s5 + $0x230] sm:$0xf]
      %v4164 = vld [vmem:[%s5 + $0x234] sm:$0xf]
      %v4165 = vld [vmem:[%s5 + $0x238] sm:$0xf]
      %v4166 = vld [vmem:[%s5 + $0x23c] sm:$0xf]
      %v4311 = vunpack.c.l.b16 %v4023
      %v4312 = vunpack.c.l.b16 %v4024
      %v4313 = vunpack.c.l.b16 %v4025
      %v4314 = vunpack.c.l.b16 %v4026
      %v4315 = vunpack.c.l.b16 %v4027
      %v4316 = vunpack.c.l.b16 %v4028
      %v4317 = vunpack.c.l.b16 %v4029
      %v4318 = vunpack.c.l.b16 %v4030
      %v4319 = vunpack.c.l.b16 %v4031
      %v4320 = vunpack.c.l.b16 %v4032
      %v4321 = vunpack.c.l.b16 %v4033
      %v4322 = vunpack.c.l.b16 %v4034
      %v4323 = vunpack.c.l.b16 %v4035
      %v4324 = vunpack.c.l.b16 %v4036
      %v4325 = vunpack.c.l.b16 %v4037
      %v4326 = vunpack.c.l.b16 %v4038
      %v4327 = vunpack.c.l.b16 %v4039
      %v4328 = vunpack.c.l.b16 %v4040
      %v4329 = vunpack.c.l.b16 %v4041
      %v4330 = vunpack.c.l.b16 %v4042
      %v4331 = vunpack.c.l.b16 %v4043
      %v4332 = vunpack.c.l.b16 %v4044
      %v4333 = vunpack.c.l.b16 %v4045
      %v4334 = vunpack.c.l.b16 %v4046
      %v4335 = vunpack.c.l.b16 %v4047
      %v4336 = vunpack.c.l.b16 %v4048
      %v4337 = vunpack.c.l.b16 %v4049
      %v4338 = vunpack.c.l.b16 %v4050
      %v4339 = vunpack.c.l.b16 %v4051
      %v4340 = vunpack.c.l.b16 %v4052
      %v4341 = vunpack.c.l.b16 %v4053
      %v4342 = vunpack.c.l.b16 %v4054
      %v4343 = vunpack.c.l.b16 %v4055
      %v4344 = vunpack.c.l.b16 %v4056
      %v4345 = vunpack.c.l.b16 %v4057
      %v4346 = vunpack.c.l.b16 %v4058
      %v4347 = vunpack.c.l.b16 %v4059
      %v4348 = vunpack.c.l.b16 %v4060
      %v4349 = vunpack.c.l.b16 %v4061
      %v4350 = vunpack.c.l.b16 %v4062
      %v4351 = vunpack.c.l.b16 %v4063
      %v4352 = vunpack.c.l.b16 %v4064
      %v4353 = vunpack.c.l.b16 %v4065
      %v4354 = vunpack.c.l.b16 %v4066
      %v4355 = vunpack.c.l.b16 %v4067
      %v4356 = vunpack.c.l.b16 %v4068
      %v4357 = vunpack.c.l.b16 %v4069
      %v4358 = vunpack.c.l.b16 %v4070
      %v4359 = vunpack.c.l.b16 %v4071
      %v4360 = vunpack.c.l.b16 %v4072
      %v4361 = vunpack.c.l.b16 %v4073
      %v4362 = vunpack.c.l.b16 %v4074
      %v4363 = vunpack.c.l.b16 %v4075
      %v4364 = vunpack.c.l.b16 %v4076
      %v4365 = vunpack.c.l.b16 %v4077
      %v4366 = vunpack.c.l.b16 %v4078
      %v4367 = vunpack.c.l.b16 %v4079
      %v4368 = vunpack.c.l.b16 %v4080
      %v4369 = vunpack.c.l.b16 %v4081
      %v4370 = vunpack.c.l.b16 %v4082
      %v4371 = vunpack.c.l.b16 %v4083
      %v4372 = vunpack.c.l.b16 %v4084
      %v4373 = vunpack.c.l.b16 %v4085
      %v4374 = vunpack.c.l.b16 %v4086
      %v4375 = vunpack.c.l.b16 %v4087
      %v4376 = vunpack.c.l.b16 %v4088
      %v4377 = vunpack.c.l.b16 %v4089
      %v4378 = vunpack.c.l.b16 %v4090
      %v4379 = vunpack.c.l.b16 %v4091
      %v4380 = vunpack.c.l.b16 %v4092
      %v4381 = vunpack.c.l.b16 %v4093
      %v4382 = vunpack.c.l.b16 %v4094
      %v4383 = vunpack.c.l.b16 %v4095
      %v4384 = vunpack.c.l.b16 %v4096
      %v4385 = vunpack.c.l.b16 %v4097
      %v4386 = vunpack.c.l.b16 %v4098
      %v4387 = vunpack.c.l.b16 %v4099
      %v4388 = vunpack.c.l.b16 %v4100
      %v4389 = vunpack.c.l.b16 %v4101
      %v4390 = vunpack.c.l.b16 %v4102
      %v4391 = vunpack.c.l.b16 %v4103
      %v4392 = vunpack.c.l.b16 %v4104
      %v4393 = vunpack.c.l.b16 %v4105
      %v4394 = vunpack.c.l.b16 %v4106
      %v4395 = vunpack.c.l.b16 %v4107
      %v4396 = vunpack.c.l.b16 %v4108
      %v4397 = vunpack.c.l.b16 %v4109
      %v4398 = vunpack.c.l.b16 %v4110
      %v4399 = vunpack.c.l.b16 %v4111
      %v4400 = vunpack.c.l.b16 %v4112
      %v4401 = vunpack.c.l.b16 %v4113
      %v4402 = vunpack.c.l.b16 %v4114
      %v4403 = vunpack.c.l.b16 %v4115
      %v4404 = vunpack.c.l.b16 %v4116
      %v4405 = vunpack.c.l.b16 %v4117
      %v4406 = vunpack.c.l.b16 %v4118
      %v4407 = vunpack.c.l.b16 %v4119
      %v4408 = vunpack.c.l.b16 %v4120
      %v4409 = vunpack.c.l.b16 %v4121
      %v4410 = vunpack.c.l.b16 %v4122
      %v4411 = vunpack.c.l.b16 %v4123
      %v4412 = vunpack.c.l.b16 %v4124
      %v4413 = vunpack.c.l.b16 %v4125
      %v4414 = vunpack.c.l.b16 %v4126
      %v4415 = vunpack.c.l.b16 %v4127
      %v4416 = vunpack.c.l.b16 %v4128
      %v4417 = vunpack.c.l.b16 %v4129
      %v4418 = vunpack.c.l.b16 %v4130
      %v4419 = vunpack.c.l.b16 %v4131
      %v4420 = vunpack.c.l.b16 %v4132
      %v4421 = vunpack.c.l.b16 %v4133
      %v4422 = vunpack.c.l.b16 %v4134
      %v4423 = vunpack.c.l.b16 %v4135
      %v4424 = vunpack.c.l.b16 %v4136
      %v4425 = vunpack.c.l.b16 %v4137
      %v4426 = vunpack.c.l.b16 %v4138
      %v4427 = vunpack.c.l.b16 %v4139
      %v4428 = vunpack.c.l.b16 %v4140
      %v4429 = vunpack.c.l.b16 %v4141
      %v4430 = vunpack.c.l.b16 %v4142
      %v4431 = vunpack.c.l.b16 %v4143
      %v4432 = vunpack.c.l.b16 %v4144
      %v4433 = vunpack.c.l.b16 %v4145
      %v4434 = vunpack.c.l.b16 %v4146
      %v4435 = vunpack.c.l.b16 %v4147
      %v4436 = vunpack.c.l.b16 %v4148
      %v4437 = vunpack.c.l.b16 %v4149
      %v4438 = vunpack.c.l.b16 %v4150
      %v4439 = vunpack.c.l.b16 %v4151
      %v4440 = vunpack.c.l.b16 %v4152
      %v4441 = vunpack.c.l.b16 %v4153
      %v4442 = vunpack.c.l.b16 %v4154
      %v4443 = vunpack.c.l.b16 %v4155
      %v4444 = vunpack.c.l.b16 %v4156
      %v4445 = vunpack.c.l.b16 %v4157
      %v4446 = vunpack.c.l.b16 %v4158
      %v4447 = vunpack.c.l.b16 %v4159
      %v4448 = vunpack.c.l.b16 %v4160
      %v4449 = vunpack.c.l.b16 %v4161
      %v4450 = vunpack.c.l.b16 %v4162
      %v4451 = vunpack.c.l.b16 %v4163
      %v4452 = vunpack.c.l.b16 %v4164
      %v4453 = vunpack.c.l.b16 %v4165
      %v4454 = vunpack.c.l.b16 %v4166
      %v4455 = vpack.c.b16 %v4312, %v4311
      %v4456 = vpack.c.b16 %v4314, %v4313
      %v4457 = vpack.c.b16 %v4316, %v4315
      %v4458 = vpack.c.b16 %v4318, %v4317
      %v4459 = vpack.c.b16 %v4320, %v4319
      %v4460 = vpack.c.b16 %v4322, %v4321
      %v4461 = vpack.c.b16 %v4324, %v4323
      %v4462 = vpack.c.b16 %v4326, %v4325
      %v4463 = vpack.c.b16 %v4328, %v4327
      %v4464 = vpack.c.b16 %v4330, %v4329
      %v4465 = vpack.c.b16 %v4332, %v4331
      %v4466 = vpack.c.b16 %v4334, %v4333
      %v4467 = vpack.c.b16 %v4336, %v4335
      %v4468 = vpack.c.b16 %v4338, %v4337
      %v4469 = vpack.c.b16 %v4340, %v4339
      %v4470 = vpack.c.b16 %v4342, %v4341
      %v4471 = vpack.c.b16 %v4344, %v4343
      %v4472 = vpack.c.b16 %v4346, %v4345
      %v4473 = vpack.c.b16 %v4348, %v4347
      %v4474 = vpack.c.b16 %v4350, %v4349
      %v4475 = vpack.c.b16 %v4352, %v4351
      %v4476 = vpack.c.b16 %v4354, %v4353
      %v4477 = vpack.c.b16 %v4356, %v4355
      %v4478 = vpack.c.b16 %v4358, %v4357
      %v4479 = vpack.c.b16 %v4360, %v4359
      %v4480 = vpack.c.b16 %v4362, %v4361
      %v4481 = vpack.c.b16 %v4364, %v4363
      %v4482 = vpack.c.b16 %v4366, %v4365
      %v4483 = vpack.c.b16 %v4368, %v4367
      %v4484 = vpack.c.b16 %v4370, %v4369
      %v4485 = vpack.c.b16 %v4372, %v4371
      %v4486 = vpack.c.b16 %v4374, %v4373
      %v4487 = vpack.c.b16 %v4376, %v4375
      %v4488 = vpack.c.b16 %v4378, %v4377
      %v4489 = vpack.c.b16 %v4380, %v4379
      %v4490 = vpack.c.b16 %v4382, %v4381
      %v4491 = vpack.c.b16 %v4384, %v4383
      %v4492 = vpack.c.b16 %v4386, %v4385
      %v4493 = vpack.c.b16 %v4388, %v4387
      %v4494 = vpack.c.b16 %v4390, %v4389
      %v4495 = vpack.c.b16 %v4392, %v4391
      %v4496 = vpack.c.b16 %v4394, %v4393
      %v4497 = vpack.c.b16 %v4396, %v4395
      %v4498 = vpack.c.b16 %v4398, %v4397
      %v4499 = vpack.c.b16 %v4400, %v4399
      %v4500 = vpack.c.b16 %v4402, %v4401
      %v4501 = vpack.c.b16 %v4404, %v4403
      %v4502 = vpack.c.b16 %v4406, %v4405
      %v4503 = vpack.c.b16 %v4408, %v4407
      %v4504 = vpack.c.b16 %v4410, %v4409
      %v4505 = vpack.c.b16 %v4412, %v4411
      %v4506 = vpack.c.b16 %v4414, %v4413
      %v4507 = vpack.c.b16 %v4416, %v4415
      %v4508 = vpack.c.b16 %v4418, %v4417
      %v4509 = vpack.c.b16 %v4420, %v4419
      %v4510 = vpack.c.b16 %v4422, %v4421
      %v4511 = vpack.c.b16 %v4424, %v4423
      %v4512 = vpack.c.b16 %v4426, %v4425
      %v4513 = vpack.c.b16 %v4428, %v4427
      %v4514 = vpack.c.b16 %v4430, %v4429
      %v4515 = vpack.c.b16 %v4432, %v4431
      %v4516 = vpack.c.b16 %v4434, %v4433
      %v4517 = vpack.c.b16 %v4436, %v4435
      %v4518 = vpack.c.b16 %v4438, %v4437
      %v4519 = vpack.c.b16 %v4440, %v4439
      %v4520 = vpack.c.b16 %v4442, %v4441
      %v4521 = vpack.c.b16 %v4444, %v4443
      %v4522 = vpack.c.b16 %v4446, %v4445
      %v4523 = vpack.c.b16 %v4448, %v4447
      %v4524 = vpack.c.b16 %v4450, %v4449
      %v4525 = vpack.c.b16 %v4452, %v4451
      %v4526 = vpack.c.b16 %v4454, %v4453
      %4599 = vmatprep.subr.bf16.mxu0 0
      %4600 = vmatpush1.bf16.msra.mxu0 %v4455
      %4601 = vmatprep.subr.bf16.mxu0 0
      %4602 = vmatpush1.bf16.msra.mxu0 %v4456
      %4603 = vmatprep.subr.bf16.mxu0 0
      %4604 = vmatpush1.bf16.msra.mxu0 %v4457
      %4605 = vmatprep.subr.bf16.mxu0 0
      %4606 = vmatpush1.bf16.msra.mxu0 %v4458
      %4607 = vmatprep.subr.bf16.mxu0 0
      %4608 = vmatpush1.bf16.msra.mxu0 %v4459
      %4609 = vmatprep.subr.bf16.mxu0 0
      %4610 = vmatpush1.bf16.msra.mxu0 %v4460
      %4611 = vmatprep.subr.bf16.mxu0 0
      %4612 = vmatpush1.bf16.msra.mxu0 %v4461
      %4613 = vmatprep.subr.bf16.mxu0 0
      %4614 = vmatpush1.bf16.msra.mxu0 %v4462
      %4615 = vmatprep.subr.bf16.mxu0 0
      %4616 = vmatpush1.bf16.msra.mxu0 %v4463
      %4617 = vmatprep.subr.bf16.mxu0 0
      %4618 = vmatpush1.bf16.msra.mxu0 %v4464
      %4619 = vmatprep.subr.bf16.mxu0 0
      %4620 = vmatpush1.bf16.msra.mxu0 %v4465
      %4621 = vmatprep.subr.bf16.mxu0 0
      %4622 = vmatpush1.bf16.msra.mxu0 %v4466
      %4623 = vmatprep.subr.bf16.mxu0 0
      %4624 = vmatpush1.bf16.msra.mxu0 %v4467
      %4625 = vmatprep.subr.bf16.mxu0 0
      %4626 = vmatpush1.bf16.msra.mxu0 %v4468
      %4627 = vmatprep.subr.bf16.mxu0 0
      %4628 = vmatpush1.bf16.msra.mxu0 %v4469
      %4629 = vmatprep.subr.bf16.mxu0 0
      %4630 = vmatpush1.bf16.msra.mxu0 %v4470
      %4631 = vmatprep.mubr.bf16.mxu0 %v3736
      %4632 = vmatmul.mubr.bf16.gmra.mrb[0].mxu0 %v3696
      %v4633 = vpop.f32.mrb[0].mxu0
      %v4634 = vadd.f32 0.0, %v4633
      %v4635 = vpop.f32.mrb[0].mxu0
      %v4636 = vpop.f32.mrb[0].mxu0
      %v4637 = vadd.f32 0.0, %v4636
      %v4638 = vpop.f32.mrb[0].mxu0
      %4639 = vmatprep.mubr.bf16.mxu0 %v3737
      %4640 = vmatmul.mubr.bf16.gmra.mrb[0].mxu0 %v3697
      %v4641 = vpop.f32.mrb[0].mxu0
      %v4642 = vadd.f32 0.0, %v4641
      %v4643 = vpop.f32.mrb[0].mxu0
      %v4644 = vpop.f32.mrb[0].mxu0
      %v4645 = vadd.f32 0.0, %v4644
      %v4646 = vpop.f32.mrb[0].mxu0
      %4647 = vmatprep.mubr.bf16.mxu0 %v3738
      %4648 = vmatmul.mubr.bf16.gmra.mrb[0].mxu0 %v3698
      %v4649 = vpop.f32.mrb[0].mxu0
      %v4650 = vadd.f32 0.0, %v4649
      %v4651 = vpop.f32.mrb[0].mxu0
      %v4652 = vpop.f32.mrb[0].mxu0
      %v4653 = vadd.f32 0.0, %v4652
      %v4654 = vpop.f32.mrb[0].mxu0
      %4655 = vmatprep.mubr.bf16.mxu0 %v3739
      %4656 = vmatmul.mubr.bf16.gmra.mrb[0].mxu0 %v3699
      %v4657 = vpop.f32.mrb[0].mxu0
      %v4658 = vadd.f32 0.0, %v4657
      %v4659 = vpop.f32.mrb[0].mxu0
      %v4660 = vpop.f32.mrb[0].mxu0
      %v4661 = vadd.f32 0.0, %v4660
      %v4662 = vpop.f32.mrb[0].mxu0
      %4663 = vmatprep.mubr.bf16.mxu0 %v3740
      %4664 = vmatmul.mubr.bf16.gmra.mrb[0].mxu0 %v3700
      %v4665 = vpop.f32.mrb[0].mxu0
      %v4666 = vadd.f32 0.0, %v4665
      %v4667 = vpop.f32.mrb[0].mxu0
      %v4668 = vpop.f32.mrb[0].mxu0
      %v4669 = vadd.f32 0.0, %v4668
      %v4670 = vpop.f32.mrb[0].mxu0
      %4671 = vmatprep.mubr.bf16.mxu0 %v3741
      %4672 = vmatmul.mubr.bf16.gmra.mrb[0].mxu0 %v3701
      %v4673 = vpop.f32.mrb[0].mxu0
      %v4674 = vadd.f32 0.0, %v4673
      %v4675 = vpop.f32.mrb[0].mxu0
      %v4676 = vpop.f32.mrb[0].mxu0
      %v4677 = vadd.f32 0.0, %v4676
      %v4678 = vpop.f32.mrb[0].mxu0
      %4679 = vmatprep.mubr.bf16.mxu0 %v3742
      %4680 = vmatmul.mubr.bf16.gmra.mrb[0].mxu0 %v3702
      %v4681 = vpop.f32.mrb[0].mxu0
      %v4682 = vadd.f32 0.0, %v4681
      %v4683 = vpop.f32.mrb[0].mxu0
      %v4684 = vpop.f32.mrb[0].mxu0
      %v4685 = vadd.f32 0.0, %v4684
      %v4686 = vpop.f32.mrb[0].mxu0
      %4687 = vmatprep.mubr.bf16.mxu0 %v3743
      %4688 = vmatmul.mubr.bf16.gmra.mrb[0].mxu0 %v3703
      %v4689 = vpop.f32.mrb[0].mxu0
      %v4690 = vadd.f32 0.0, %v4689
      %v4691 = vpop.f32.mrb[0].mxu0
      %v4692 = vpop.f32.mrb[0].mxu0
      %v4693 = vadd.f32 0.0, %v4692
      %v4694 = vpop.f32.mrb[0].mxu0
      %4695 = vdwg.mxu0
      %4696 = vmatprep.subr.bf16.mxu0 0
      %4697 = vmatpush1.bf16.msra.mxu0 %v4471
      %4698 = vmatprep.subr.bf16.mxu0 0
      %4699 = vmatpush1.bf16.msra.mxu0 %v4472
      %4700 = vmatprep.subr.bf16.mxu0 0
      %4701 = vmatpush1.bf16.msra.mxu0 %v4473
      %4702 = vmatprep.subr.bf16.mxu0 0
      %4703 = vmatpush1.bf16.msra.mxu0 %v4474
      %4704 = vmatprep.subr.bf16.mxu0 0
      %4705 = vmatpush1.bf16.msra.mxu0 %v4475
      %4706 = vmatprep.subr.bf16.mxu0 0
      %4707 = vmatpush1.bf16.msra.mxu0 %v4476
      %4708 = vmatprep.subr.bf16.mxu0 0
      %4709 = vmatpush1.bf16.msra.mxu0 %v4477
      %4710 = vmatprep.subr.bf16.mxu0 0
      %4711 = vmatpush1.bf16.msra.mxu0 %v4478
      %4712 = vmatprep.subr.bf16.mxu0 0
      %4713 = vmatpush1.bf16.msra.mxu0 %v4479
      %4714 = vmatprep.subr.bf16.mxu0 0
      %4715 = vmatpush1.bf16.msra.mxu0 %v4480
      %4716 = vmatprep.subr.bf16.mxu0 0
      %4717 = vmatpush1.bf16.msra.mxu0 %v4481
      %4718 = vmatprep.subr.bf16.mxu0 0
      %4719 = vmatpush1.bf16.msra.mxu0 %v4482
      %4720 = vmatprep.subr.bf16.mxu0 0
      %4721 = vmatpush1.bf16.msra.mxu0 %v4483
      %4722 = vmatprep.subr.bf16.mxu0 0
      %4723 = vmatpush1.bf16.msra.mxu0 %v4484
      %4724 = vmatprep.subr.bf16.mxu0 0
      %4725 = vmatpush1.bf16.msra.mxu0 %v4485
      %4726 = vmatprep.subr.bf16.mxu0 0
      %4727 = vmatpush1.bf16.msra.mxu0 %v4486
      %4728 = vmatprep.mubr.bf16.mxu0 %v3815
      %4729 = vmatmul.mubr.bf16.gmra.mrb[0].mxu0 %v3776
      %v4730 = vpop.f32.mrb[0].mxu0
      %v4731 = vadd.f32 %v4634, %v4730
      %v4732 = vpop.f32.mrb[0].mxu0
      %v4733 = vpop.f32.mrb[0].mxu0
      %v4734 = vadd.f32 %v4637, %v4733
      %v4735 = vpop.f32.mrb[0].mxu0
      %4736 = vmatprep.mubr.bf16.mxu0 %v3816
      %4737 = vmatmul.mubr.bf16.gmra.mrb[0].mxu0 %v3777
      %v4738 = vpop.f32.mrb[0].mxu0
      %v4739 = vadd.f32 %v4642, %v4738
      %v4740 = vpop.f32.mrb[0].mxu0
      %v4741 = vpop.f32.mrb[0].mxu0
      %v4742 = vadd.f32 %v4645, %v4741
      %v4743 = vpop.f32.mrb[0].mxu0
      %4744 = vmatprep.mubr.bf16.mxu0 %v3817
      %4745 = vmatmul.mubr.bf16.gmra.mrb[0].mxu0 %v3778
      %v4746 = vpop.f32.mrb[0].mxu0
      %v4747 = vadd.f32 %v4650, %v4746
      %v4748 = vpop.f32.mrb[0].mxu0
      %v4749 = vpop.f32.mrb[0].mxu0
      %v4750 = vadd.f32 %v4653, %v4749
      %v4751 = vpop.f32.mrb[0].mxu0
      %4752 = vmatprep.mubr.bf16.mxu0 %v3818
      %4753 = vmatmul.mubr.bf16.gmra.mrb[0].mxu0 %v3779
      %v4754 = vpop.f32.mrb[0].mxu0
      %v4755 = vadd.f32 %v4658, %v4754
      %v4756 = vpop.f32.mrb[0].mxu0
      %v4757 = vpop.f32.mrb[0].mxu0
      %v4758 = vadd.f32 %v4661, %v4757
      %v4759 = vpop.f32.mrb[0].mxu0
      %4760 = vmatprep.mubr.bf16.mxu0 %v3819
      %4761 = vmatmul.mubr.bf16.gmra.mrb[0].mxu0 %v3780
      %v4762 = vpop.f32.mrb[0].mxu0
      %v4763 = vadd.f32 %v4666, %v4762
      %v4764 = vpop.f32.mrb[0].mxu0
      %v4765 = vpop.f32.mrb[0].mxu0
      %v4766 = vadd.f32 %v4669, %v4765
      %v4767 = vpop.f32.mrb[0].mxu0
      %4768 = vmatprep.mubr.bf16.mxu0 %v3820
      %4769 = vmatmul.mubr.bf16.gmra.mrb[0].mxu0 %v3781
      %v4770 = vpop.f32.mrb[0].mxu0
      %v4771 = vadd.f32 %v4674, %v4770
      %v4772 = vpop.f32.mrb[0].mxu0
      %v4773 = vpop.f32.mrb[0].mxu0
      %v4774 = vadd.f32 %v4677, %v4773
      %v4775 = vpop.f32.mrb[0].mxu0
      %4776 = vmatprep.mubr.bf16.mxu0 %v3821
      %4777 = vmatmul.mubr.bf16.gmra.mrb[0].mxu0 %v3782
      %v4778 = vpop.f32.mrb[0].mxu0
      %v4779 = vadd.f32 %v4682, %v4778
      %v4780 = vpop.f32.mrb[0].mxu0
      %v4781 = vpop.f32.mrb[0].mxu0
      %v4782 = vadd.f32 %v4685, %v4781
      %v4783 = vpop.f32.mrb[0].mxu0
      %4784 = vmatprep.mubr.bf16.mxu0 %v3822
      %4785 = vmatmul.mubr.bf16.gmra.mrb[0].mxu0 %v3783
      %v4786 = vpop.f32.mrb[0].mxu0
      %v4787 = vadd.f32 %v4690, %v4786
      %v4788 = vpop.f32.mrb[0].mxu0
      %v4789 = vpop.f32.mrb[0].mxu0
      %v4790 = vadd.f32 %v4693, %v4789
      %v4791 = vpop.f32.mrb[0].mxu0
      %4792 = vdwg.mxu0
      %4793 = vmatprep.subr.bf16.mxu0 0
      %4794 = vmatpush1.bf16.msra.mxu0 %v4487
      %4795 = vmatprep.subr.bf16.mxu0 0
      %4796 = vmatpush1.bf16.msra.mxu0 %v4488
      %4797 = vmatprep.subr.bf16.mxu0 0
      %4798 = vmatpush1.bf16.msra.mxu0 %v4489
      %4799 = vmatprep.subr.bf16.mxu0 0
      %4800 = vmatpush1.bf16.msra.mxu0 %v4490
      %4801 = vmatprep.subr.bf16.mxu0 0
      %4802 = vmatpush1.bf16.msra.mxu0 %v4491
      %4803 = vmatprep.subr.bf16.mxu0 0
      %4804 = vmatpush1.bf16.msra.mxu0 %v4492
      %4805 = vmatprep.subr.bf16.mxu0 0
      %4806 = vmatpush1.bf16.msra.mxu0 %v4493
      %4807 = vmatprep.subr.bf16.mxu0 0
      %4808 = vmatpush1.bf16.msra.mxu0 %v4494
      %4809 = vmatprep.subr.bf16.mxu0 0
      %4810 = vmatpush1.bf16.msra.mxu0 %v4495
      %4811 = vmatprep.subr.bf16.mxu0 0
      %4812 = vmatpush1.bf16.msra.mxu0 %v4496
      %4813 = vmatprep.subr.bf16.mxu0 0
      %4814 = vmatpush1.bf16.msra.mxu0 %v4497
      %4815 = vmatprep.subr.bf16.mxu0 0
      %4816 = vmatpush1.bf16.msra.mxu0 %v4498
      %4817 = vmatprep.subr.bf16.mxu0 0
      %4818 = vmatpush1.bf16.msra.mxu0 %v4499
      %4819 = vmatprep.subr.bf16.mxu0 0
      %4820 = vmatpush1.bf16.msra.mxu0 %v4500
      %4821 = vmatprep.subr.bf16.mxu0 0
      %4822 = vmatpush1.bf16.msra.mxu0 %v4501
      %4823 = vmatprep.subr.bf16.mxu0 0
      %4824 = vmatpush1.bf16.msra.mxu0 %v4502
      %4825 = vmatprep.mubr.bf16.mxu0 %v3895
      %4826 = vmatmul.mubr.bf16.gmra.mrb[0].mxu0 %v3855
      %v4827 = vpop.f32.mrb[0].mxu0
      %v4828 = vadd.f32 %v4731, %v4827
      %v4829 = vpop.f32.mrb[0].mxu0
      %v4830 = vpop.f32.mrb[0].mxu0
      %v4831 = vadd.f32 %v4734, %v4830
      %v4832 = vpop.f32.mrb[0].mxu0
      %4833 = vmatprep.mubr.bf16.mxu0 %v3896
      %4834 = vmatmul.mubr.bf16.gmra.mrb[0].mxu0 %v3856
      %v4835 = vpop.f32.mrb[0].mxu0
      %v4836 = vadd.f32 %v4739, %v4835
      %v4837 = vpop.f32.mrb[0].mxu0
      %v4838 = vpop.f32.mrb[0].mxu0
      %v4839 = vadd.f32 %v4742, %v4838
      %v4840 = vpop.f32.mrb[0].mxu0
      %4841 = vmatprep.mubr.bf16.mxu0 %v3897
      %4842 = vmatmul.mubr.bf16.gmra.mrb[0].mxu0 %v3857
      %v4843 = vpop.f32.mrb[0].mxu0
      %v4844 = vadd.f32 %v4747, %v4843
      %v4845 = vpop.f32.mrb[0].mxu0
      %v4846 = vpop.f32.mrb[0].mxu0
      %v4847 = vadd.f32 %v4750, %v4846
      %v4848 = vpop.f32.mrb[0].mxu0
      %4849 = vmatprep.mubr.bf16.mxu0 %v3898
      %4850 = vmatmul.mubr.bf16.gmra.mrb[0].mxu0 %v3858
      %v4851 = vpop.f32.mrb[0].mxu0
      %v4852 = vadd.f32 %v4755, %v4851
      %v4853 = vpop.f32.mrb[0].mxu0
      %v4854 = vpop.f32.mrb[0].mxu0
      %v4855 = vadd.f32 %v4758, %v4854
      %v4856 = vpop.f32.mrb[0].mxu0
      %4857 = vmatprep.mubr.bf16.mxu0 %v3899
      %4858 = vmatmul.mubr.bf16.gmra.mrb[0].mxu0 %v3859
      %v4859 = vpop.f32.mrb[0].mxu0
      %v4860 = vadd.f32 %v4763, %v4859
      %v4861 = vpop.f32.mrb[0].mxu0
      %v4862 = vpop.f32.mrb[0].mxu0
      %v4863 = vadd.f32 %v4766, %v4862
      %v4864 = vpop.f32.mrb[0].mxu0
      %4865 = vmatprep.mubr.bf16.mxu0 %v3900
      %4866 = vmatmul.mubr.bf16.gmra.mrb[0].mxu0 %v3860
      %v4867 = vpop.f32.mrb[0].mxu0
      %v4868 = vadd.f32 %v4771, %v4867
      %v4869 = vpop.f32.mrb[0].mxu0
      %v4870 = vpop.f32.mrb[0].mxu0
      %v4871 = vadd.f32 %v4774, %v4870
      %v4872 = vpop.f32.mrb[0].mxu0
      %4873 = vmatprep.mubr.bf16.mxu0 %v3901
      %4874 = vmatmul.mubr.bf16.gmra.mrb[0].mxu0 %v3861
      %v4875 = vpop.f32.mrb[0].mxu0
      %v4876 = vadd.f32 %v4779, %v4875
      %v4877 = vpop.f32.mrb[0].mxu0
      %v4878 = vpop.f32.mrb[0].mxu0
      %v4879 = vadd.f32 %v4782, %v4878
      %v4880 = vpop.f32.mrb[0].mxu0
      %4881 = vmatprep.mubr.bf16.mxu0 %v3902
      %4882 = vmatmul.mubr.bf16.gmra.mrb[0].mxu0 %v3862
      %v4883 = vpop.f32.mrb[0].mxu0
      %v4884 = vadd.f32 %v4787, %v4883
      %v4885 = vpop.f32.mrb[0].mxu0
      %v4886 = vpop.f32.mrb[0].mxu0
      %v4887 = vadd.f32 %v4790, %v4886
      %v4888 = vpop.f32.mrb[0].mxu0
      %4889 = vdwg.mxu0
      %4890 = vmatprep.subr.bf16.mxu0 0
      %4891 = vmatpush1.bf16.msra.mxu0 %v4503
      %4892 = vmatprep.subr.bf16.mxu0 0
      %4893 = vmatpush1.bf16.msra.mxu0 %v4504
      %4894 = vmatprep.subr.bf16.mxu0 0
      %4895 = vmatpush1.bf16.msra.mxu0 %v4505
      %4896 = vmatprep.subr.bf16.mxu0 0
      %4897 = vmatpush1.bf16.msra.mxu0 %v4506
      %4898 = vmatprep.subr.bf16.mxu0 0
      %4899 = vmatpush1.bf16.msra.mxu0 %v4507
      %4900 = vmatprep.subr.bf16.mxu0 0
      %4901 = vmatpush1.bf16.msra.mxu0 %v4508
      %4902 = vmatprep.subr.bf16.mxu0 0
      %4903 = vmatpush1.bf16.msra.mxu0 %v4509
      %4904 = vmatprep.subr.bf16.mxu0 0
      %4905 = vmatpush1.bf16.msra.mxu0 %v4510
      %4906 = vmatprep.subr.bf16.mxu0 0
      %4907 = vmatpush1.bf16.msra.mxu0 %v4511
      %4908 = vmatprep.subr.bf16.mxu0 0
      %4909 = vmatpush1.bf16.msra.mxu0 %v4512
      %4910 = vmatprep.subr.bf16.mxu0 0
      %4911 = vmatpush1.bf16.msra.mxu0 %v4513
      %4912 = vmatprep.subr.bf16.mxu0 0
      %4913 = vmatpush1.bf16.msra.mxu0 %v4514
      %4914 = vmatprep.subr.bf16.mxu0 0
      %4915 = vmatpush1.bf16.msra.mxu0 %v4515
      %4916 = vmatprep.subr.bf16.mxu0 0
      %4917 = vmatpush1.bf16.msra.mxu0 %v4516
      %4918 = vmatprep.subr.bf16.mxu0 0
      %4919 = vmatpush1.bf16.msra.mxu0 %v4517
      %4920 = vmatprep.subr.bf16.mxu0 0
      %4921 = vmatpush1.bf16.msra.mxu0 %v4518
      %4922 = vmatprep.mubr.bf16.mxu0 %v3975
      %4923 = vmatmul.mubr.bf16.gmra.mrb[0].mxu0 %v3935
      %v4924 = vpop.f32.mrb[0].mxu0
      %v4925 = vadd.f32 %v4828, %v4924
      %v4926 = vpop.f32.mrb[0].mxu0
      %v4927 = vpop.f32.mrb[0].mxu0
      %v4928 = vadd.f32 %v4831, %v4927
      %v4929 = vpop.f32.mrb[0].mxu0
      %4930 = vmatprep.mubr.bf16.mxu0 %v3976
      %4931 = vmatmul.mubr.bf16.gmra.mrb[0].mxu0 %v3936
      %v4932 = vpop.f32.mrb[0].mxu0
      %v4933 = vadd.f32 %v4836, %v4932
      %v4934 = vpop.f32.mrb[0].mxu0
      %v4935 = vpop.f32.mrb[0].mxu0
      %v4936 = vadd.f32 %v4839, %v4935
      %v4937 = vpop.f32.mrb[0].mxu0
      %4938 = vmatprep.mubr.bf16.mxu0 %v3977
      %4939 = vmatmul.mubr.bf16.gmra.mrb[0].mxu0 %v3937
      %v4940 = vpop.f32.mrb[0].mxu0
      %v4941 = vadd.f32 %v4844, %v4940
      %v4942 = vpop.f32.mrb[0].mxu0
      %v4943 = vpop.f32.mrb[0].mxu0
      %v4944 = vadd.f32 %v4847, %v4943
      %v4945 = vpop.f32.mrb[0].mxu0
      %4946 = vmatprep.mubr.bf16.mxu0 %v3978
      %4947 = vmatmul.mubr.bf16.gmra.mrb[0].mxu0 %v3938
      %v4948 = vpop.f32.mrb[0].mxu0
      %v4949 = vadd.f32 %v4852, %v4948
      %v4950 = vpop.f32.mrb[0].mxu0
      %v4951 = vpop.f32.mrb[0].mxu0
      %v4952 = vadd.f32 %v4855, %v4951
      %v4953 = vpop.f32.mrb[0].mxu0
      %4954 = vmatprep.mubr.bf16.mxu0 %v3979
      %4955 = vmatmul.mubr.bf16.gmra.mrb[0].mxu0 %v3939
      %v4956 = vpop.f32.mrb[0].mxu0
      %v4957 = vadd.f32 %v4860, %v4956
      %v4958 = vpop.f32.mrb[0].mxu0
      %v4959 = vpop.f32.mrb[0].mxu0
      %v4960 = vadd.f32 %v4863, %v4959
      %v4961 = vpop.f32.mrb[0].mxu0
      %4962 = vmatprep.mubr.bf16.mxu0 %v3980
      %4963 = vmatmul.mubr.bf16.gmra.mrb[0].mxu0 %v3940
      %v4964 = vpop.f32.mrb[0].mxu0
      %v4965 = vadd.f32 %v4868, %v4964
      %v4966 = vpop.f32.mrb[0].mxu0
      %v4967 = vpop.f32.mrb[0].mxu0
      %v4968 = vadd.f32 %v4871, %v4967
      %v4969 = vpop.f32.mrb[0].mxu0
      %4970 = vmatprep.mubr.bf16.mxu0 %v3981
      %4971 = vmatmul.mubr.bf16.gmra.mrb[0].mxu0 %v3941
      %v4972 = vpop.f32.mrb[0].mxu0
      %v4973 = vadd.f32 %v4876, %v4972
      %v4974 = vpop.f32.mrb[0].mxu0
      %v4975 = vpop.f32.mrb[0].mxu0
      %v4976 = vadd.f32 %v4879, %v4975
      %v4977 = vpop.f32.mrb[0].mxu0
      %4978 = vmatprep.mubr.bf16.mxu0 %v3982
      %4979 = vmatmul.mubr.bf16.gmra.mrb[0].mxu0 %v3942
      %v4980 = vpop.f32.mrb[0].mxu0
      %v4981 = vadd.f32 %v4884, %v4980
      %v4982 = vpop.f32.mrb[0].mxu0
      %v4983 = vpop.f32.mrb[0].mxu0
      %v4984 = vadd.f32 %v4887, %v4983
      %v4985 = vpop.f32.mrb[0].mxu0
      %4986 = vdwg.mxu0
      %4987 = vmatprep.subr.bf16.mxu0 0
      %4988 = vmatpush1.bf16.msra.mxu0 %v4519
      %4989 = vmatprep.subr.bf16.mxu0 0
      %4990 = vmatpush1.bf16.msra.mxu0 %v4520
      %4991 = vmatprep.subr.bf16.mxu0 0
      %4992 = vmatpush1.bf16.msra.mxu0 %v4521
      %4993 = vmatprep.subr.bf16.mxu0 0
      %4994 = vmatpush1.bf16.msra.mxu0 %v4522
      %4995 = vmatprep.subr.bf16.mxu0 0
      %4996 = vmatpush1.bf16.msra.mxu0 %v4523
      %4997 = vmatprep.subr.bf16.mxu0 0
      %4998 = vmatpush1.bf16.msra.mxu0 %v4524
      %4999 = vmatprep.subr.bf16.mxu0 0
      %5000 = vmatpush1.bf16.msra.mxu0 %v4525
      %5001 = vmatprep.subr.bf16.mxu0 0
      %5002 = vmatpush1.bf16.msra.mxu0 %v4526
      %5003 = vmatprep.subr.bf16.mxu0 0
      %5004 = vmatpush1.bf16.msra.mxu0 0
      %5005 = vmatprep.subr.bf16.mxu0 0
      %5006 = vmatpush1.bf16.msra.mxu0 0
      %5007 = vmatprep.subr.bf16.mxu0 0
      %5008 = vmatpush1.bf16.msra.mxu0 0
      %5009 = vmatprep.subr.bf16.mxu0 0
      %5010 = vmatpush1.bf16.msra.mxu0 0
      %5011 = vmatprep.subr.bf16.mxu0 0
      %5012 = vmatpush1.bf16.msra.mxu0 0
      %5013 = vmatprep.subr.bf16.mxu0 0
      %5014 = vmatpush1.bf16.msra.mxu0 0
      %5015 = vmatprep.subr.bf16.mxu0 0
      %5016 = vmatpush1.bf16.msra.mxu0 0
      %5017 = vmatprep.subr.bf16.mxu0 0
      %5018 = vmatpush1.bf16.msra.mxu0 0
      %5019 = vmatprep.mubr.bf16.mxu0 0
      %5020 = vmatmul.mubr.bf16.gmra.mrb[0].mxu0 %v4015
      %v5021 = vpop.f32.mrb[0].mxu0
      %v5022 = vadd.f32 %v4925, %v5021
      %v5023 = vpop.f32.mrb[0].mxu0
      %v5024 = vpop.f32.mrb[0].mxu0
      %v5025 = vadd.f32 %v4928, %v5024
      %v5026 = vpop.f32.mrb[0].mxu0
      %5027 = vmatprep.mubr.bf16.mxu0 0
      %5028 = vmatmul.mubr.bf16.gmra.mrb[0].mxu0 %v4016
      %v5029 = vpop.f32.mrb[0].mxu0
      %v5030 = vadd.f32 %v4933, %v5029
      %v5031 = vpop.f32.mrb[0].mxu0
      %v5032 = vpop.f32.mrb[0].mxu0
      %v5033 = vadd.f32 %v4936, %v5032
      %v5034 = vpop.f32.mrb[0].mxu0
      %5035 = vmatprep.mubr.bf16.mxu0 0
      %5036 = vmatmul.mubr.bf16.gmra.mrb[0].mxu0 %v4017
      %v5037 = vpop.f32.mrb[0].mxu0
      %v5038 = vadd.f32 %v4941, %v5037
      %v5039 = vpop.f32.mrb[0].mxu0
      %v5040 = vpop.f32.mrb[0].mxu0
      %v5041 = vadd.f32 %v4944, %v5040
      %v5042 = vpop.f32.mrb[0].mxu0
      %5043 = vmatprep.mubr.bf16.mxu0 0
      %5044 = vmatmul.mubr.bf16.gmra.mrb[0].mxu0 %v4018
      %v5045 = vpop.f32.mrb[0].mxu0
      %v5046 = vadd.f32 %v4949, %v5045
      %v5047 = vpop.f32.mrb[0].mxu0
      %v5048 = vpop.f32.mrb[0].mxu0
      %v5049 = vadd.f32 %v4952, %v5048
      %v5050 = vpop.f32.mrb[0].mxu0
      %5051 = vmatprep.mubr.bf16.mxu0 0
      %5052 = vmatmul.mubr.bf16.gmra.mrb[0].mxu0 %v4019
      %v5053 = vpop.f32.mrb[0].mxu0
      %v5054 = vadd.f32 %v4957, %v5053
      %v5055 = vpop.f32.mrb[0].mxu0
      %v5056 = vpop.f32.mrb[0].mxu0
      %v5057 = vadd.f32 %v4960, %v5056
      %v5058 = vpop.f32.mrb[0].mxu0
      %5059 = vmatprep.mubr.bf16.mxu0 0
      %5060 = vmatmul.mubr.bf16.gmra.mrb[0].mxu0 %v4020
      %v5061 = vpop.f32.mrb[0].mxu0
      %v5062 = vadd.f32 %v4965, %v5061
      %v5063 = vpop.f32.mrb[0].mxu0
      %v5064 = vpop.f32.mrb[0].mxu0
      %v5065 = vadd.f32 %v4968, %v5064
      %v5066 = vpop.f32.mrb[0].mxu0
      %5067 = vmatprep.mubr.bf16.mxu0 0
      %5068 = vmatmul.mubr.bf16.gmra.mrb[0].mxu0 %v4021
      %v5069 = vpop.f32.mrb[0].mxu0
      %v5070 = vadd.f32 %v4973, %v5069
      %v5071 = vpop.f32.mrb[0].mxu0
      %v5072 = vpop.f32.mrb[0].mxu0
      %v5073 = vadd.f32 %v4976, %v5072
      %v5074 = vpop.f32.mrb[0].mxu0
      %5075 = vmatprep.mubr.bf16.mxu0 0
      %5076 = vmatmul.mubr.bf16.gmra.mrb[0].mxu0 %v4022
      %v5077 = vpop.f32.mrb[0].mxu0
      %v5078 = vadd.f32 %v4981, %v5077
      %v5079 = vpop.f32.mrb[0].mxu0
      %v5080 = vpop.f32.mrb[0].mxu0
      %v5081 = vadd.f32 %v4984, %v5080
      %v5082 = vpop.f32.mrb[0].mxu0
      %5083 = vdwg.mxu0
      %v5084 = vld [vmem:[%s6] sm:$0x1]
      %v5086 = vlaneseq
      %v5087 = vshrl.u32 %v5086, 7
      %v5088 = vsub.s32 0, %v5087
      %v5089 = vrot.slane %v5084, %v5088
      %v5091 = vmul.f32 %v5022, %v5089
      %v5092 = vmul.f32 %v5025, %v5089
      %v5093 = vmul.f32 %v5030, %v5089
      %v5094 = vmul.f32 %v5033, %v5089
      %v5095 = vmul.f32 %v5038, %v5089
      %v5096 = vmul.f32 %v5041, %v5089
      %v5097 = vmul.f32 %v5046, %v5089
      %v5098 = vmul.f32 %v5049, %v5089
      %v5099 = vmul.f32 %v5054, %v5089
      %v5100 = vmul.f32 %v5057, %v5089
      %v5101 = vmul.f32 %v5062, %v5089
      %v5102 = vmul.f32 %v5065, %v5089
      %v5103 = vmul.f32 %v5070, %v5089
      %v5104 = vmul.f32 %v5073, %v5089
      %v5105 = vmul.f32 %v5078, %v5089
      %v5106 = vmul.f32 %v5081, %v5089
      %v5107 = vld [vmem:[%s7] sm:$0x1]
      %v5109 = vlaneseq
      %v5110 = vshrl.u32 %v5109, 7
      %v5111 = vsub.s32 0, %v5110
      %v5112 = vrot.slane %v5107, %v5111
      %v5114 = vadd.f32 %v5091, %v5112
      %v5115 = vadd.f32 %v5092, %v5112
      %v5116 = vadd.f32 %v5093, %v5112
      %v5117 = vadd.f32 %v5094, %v5112
      %v5118 = vadd.f32 %v5095, %v5112
      %v5119 = vadd.f32 %v5096, %v5112
      %v5120 = vadd.f32 %v5097, %v5112
      %v5121 = vadd.f32 %v5098, %v5112
      %v5122 = vadd.f32 %v5099, %v5112
      %v5123 = vadd.f32 %v5100, %v5112
      %v5124 = vadd.f32 %v5101, %v5112
      %v5125 = vadd.f32 %v5102, %v5112
      %v5126 = vadd.f32 %v5103, %v5112
      %v5127 = vadd.f32 %v5104, %v5112
      %v5128 = vadd.f32 %v5105, %v5112
      %v5129 = vadd.f32 %v5106, %v5112
      %v5130 = vld [vmem:[%s386] ss:$2 sm:$0xff]
      %s5131 = scalar_lea.vmem %s386, 32
      %v5132 = vld [vmem:[%s5131] ss:$2 sm:$0xff]
      %s5133 = scalar_lea.vmem %s386, 64
      %v5134 = vld [vmem:[%s5133] ss:$2 sm:$0xff]
      %s5135 = scalar_lea.vmem %s386, 96
      %v5136 = vld [vmem:[%s5135] ss:$2 sm:$0xff]
      %s5137 = scalar_lea.vmem %s386, 128
      %v5138 = vld [vmem:[%s5137] ss:$2 sm:$0xff]
      %s5139 = scalar_lea.vmem %s386, 160
      %v5140 = vld [vmem:[%s5139] ss:$2 sm:$0xff]
      %s5141 = scalar_lea.vmem %s386, 192
      %v5142 = vld [vmem:[%s5141] ss:$2 sm:$0xff]
      %s5143 = scalar_lea.vmem %s386, 224
      %v5144 = vld [vmem:[%s5143] ss:$2 sm:$0xff]
      %s5145 = scalar_lea.vmem %s386, 256
      %v5146 = vld [vmem:[%s5145] ss:$2 sm:$0xff]
      %s5147 = scalar_lea.vmem %s386, 288
      %v5148 = vld [vmem:[%s5147] ss:$2 sm:$0xff]
      %s5149 = scalar_lea.vmem %s386, 320
      %v5150 = vld [vmem:[%s5149] ss:$2 sm:$0xff]
      %s5151 = scalar_lea.vmem %s386, 352
      %v5152 = vld [vmem:[%s5151] ss:$2 sm:$0xff]
      %s5153 = scalar_lea.vmem %s386, 384
      %v5154 = vld [vmem:[%s5153] ss:$2 sm:$0xff]
      %s5155 = scalar_lea.vmem %s386, 416
      %v5156 = vld [vmem:[%s5155] ss:$2 sm:$0xff]
      %s5157 = scalar_lea.vmem %s386, 448
      %v5158 = vld [vmem:[%s5157] ss:$2 sm:$0xff]
      %s5159 = scalar_lea.vmem %s386, 480
      %v5160 = vld [vmem:[%s5159] ss:$2 sm:$0xff]
      %v5161 = vpack.c.bf16 %v5132, %v5130
      %v5162 = vpack.c.bf16 %v5136, %v5134
      %v5163 = vpack.c.bf16 %v5140, %v5138
      %v5164 = vpack.c.bf16 %v5144, %v5142
      %v5165 = vpack.c.bf16 %v5148, %v5146
      %v5166 = vpack.c.bf16 %v5152, %v5150
      %v5167 = vpack.c.bf16 %v5156, %v5154
      %v5168 = vpack.c.bf16 %v5160, %v5158
      %v5169 = vld [vmem:[%s8] sm:$0x3]
      %v5171 = vsel %vm602, %v5161, 0
      %v5174 = vsel %vm602, %v5162, 0
      %v5177 = vsel %vm602, %v5163, 0
      %v5180 = vsel %vm602, %v5164, 0
      %v5183 = vsel %vm602, %v5165, 0
      %v5186 = vsel %vm602, %v5166, 0
      %v5189 = vsel %vm602, %v5167, 0
      %v5192 = vsel %vm602, %v5168, 0
      %v5195 = vsel %vm3023, %v5169, 0
      %5197 = vmatprep.subr.bf16.mxu0 0
      %5198 = vmatpush1.bf16.msra.mxu0 %v5195
      %5199 = vmatprep.subr.bf16.mxu0 0
      %5200 = vmatpush1.bf16.msra.mxu0 0
      %5201 = vmatprep.subr.bf16.mxu0 0
      %5202 = vmatpush1.bf16.msra.mxu0 0
      %5203 = vmatprep.subr.bf16.mxu0 0
      %5204 = vmatpush1.bf16.msra.mxu0 0
      %5205 = vmatprep.subr.bf16.mxu0 0
      %5206 = vmatpush1.bf16.msra.mxu0 0
      %5207 = vmatprep.subr.bf16.mxu0 0
      %5208 = vmatpush1.bf16.msra.mxu0 0
      %5209 = vmatprep.subr.bf16.mxu0 0
      %5210 = vmatpush1.bf16.msra.mxu0 0
      %5211 = vmatprep.subr.bf16.mxu0 0
      %5212 = vmatpush1.bf16.msra.mxu0 0
      %5213 = vmatprep.subr.bf16.mxu0 0
      %5214 = vmatpush1.bf16.msra.mxu0 0
      %5215 = vmatprep.subr.bf16.mxu0 0
      %5216 = vmatpush1.bf16.msra.mxu0 0
      %5217 = vmatprep.subr.bf16.mxu0 0
      %5218 = vmatpush1.bf16.msra.mxu0 0
      %5219 = vmatprep.subr.bf16.mxu0 0
      %5220 = vmatpush1.bf16.msra.mxu0 0
      %5221 = vmatprep.subr.bf16.mxu0 0
      %5222 = vmatpush1.bf16.msra.mxu0 0
      %5223 = vmatprep.subr.bf16.mxu0 0
      %5224 = vmatpush1.bf16.msra.mxu0 0
      %5225 = vmatprep.subr.bf16.mxu0 0
      %5226 = vmatpush1.bf16.msra.mxu0 0
      %5227 = vmatprep.subr.bf16.mxu0 0
      %5228 = vmatpush1.bf16.msra.mxu0 0
      %5229 = vmatprep.mubr.bf16.mxu0 0
      %5230 = vmatmul.mubr.bf16.gmra.mrb[0].mxu0 %v5171
      %v5231 = vpop.f32.mrb[0].mxu0
      %v5232 = vadd.f32 0.0, %v5231
      %v5233 = vpop.f32.mrb[0].mxu0
      %v5234 = vpop.f32.mrb[0].mxu0
      %v5235 = vadd.f32 0.0, %v5234
      %v5236 = vpop.f32.mrb[0].mxu0
      %5237 = vmatprep.mubr.bf16.mxu0 0
      %5238 = vmatmul.mubr.bf16.gmra.mrb[0].mxu0 %v5174
      %v5239 = vpop.f32.mrb[0].mxu0
      %v5240 = vadd.f32 0.0, %v5239
      %v5241 = vpop.f32.mrb[0].mxu0
      %v5242 = vpop.f32.mrb[0].mxu0
      %v5243 = vadd.f32 0.0, %v5242
      %v5244 = vpop.f32.mrb[0].mxu0
      %5245 = vmatprep.mubr.bf16.mxu0 0
      %5246 = vmatmul.mubr.bf16.gmra.mrb[0].mxu0 %v5177
      %v5247 = vpop.f32.mrb[0].mxu0
      %v5248 = vadd.f32 0.0, %v5247
      %v5249 = vpop.f32.mrb[0].mxu0
      %v5250 = vpop.f32.mrb[0].mxu0
      %v5251 = vadd.f32 0.0, %v5250
      %v5252 = vpop.f32.mrb[0].mxu0
      %5253 = vmatprep.mubr.bf16.mxu0 0
      %5254 = vmatmul.mubr.bf16.gmra.mrb[0].mxu0 %v5180
      %v5255 = vpop.f32.mrb[0].mxu0
      %v5256 = vadd.f32 0.0, %v5255
      %v5257 = vpop.f32.mrb[0].mxu0
      %v5258 = vpop.f32.mrb[0].mxu0
      %v5259 = vadd.f32 0.0, %v5258
      %v5260 = vpop.f32.mrb[0].mxu0
      %5261 = vmatprep.mubr.bf16.mxu0 0
      %5262 = vmatmul.mubr.bf16.gmra.mrb[0].mxu0 %v5183
      %v5263 = vpop.f32.mrb[0].mxu0
      %v5264 = vadd.f32 0.0, %v5263
      %v5265 = vpop.f32.mrb[0].mxu0
      %v5266 = vpop.f32.mrb[0].mxu0
      %v5267 = vadd.f32 0.0, %v5266
      %v5268 = vpop.f32.mrb[0].mxu0
      %5269 = vmatprep.mubr.bf16.mxu0 0
      %5270 = vmatmul.mubr.bf16.gmra.mrb[0].mxu0 %v5186
      %v5271 = vpop.f32.mrb[0].mxu0
      %v5272 = vadd.f32 0.0, %v5271
      %v5273 = vpop.f32.mrb[0].mxu0
      %v5274 = vpop.f32.mrb[0].mxu0
      %v5275 = vadd.f32 0.0, %v5274
      %v5276 = vpop.f32.mrb[0].mxu0
      %5277 = vmatprep.mubr.bf16.mxu0 0
      %5278 = vmatmul.mubr.bf16.gmra.mrb[0].mxu0 %v5189
      %v5279 = vpop.f32.mrb[0].mxu0
      %v5280 = vadd.f32 0.0, %v5279
      %v5281 = vpop.f32.mrb[0].mxu0
      %v5282 = vpop.f32.mrb[0].mxu0
      %v5283 = vadd.f32 0.0, %v5282
      %v5284 = vpop.f32.mrb[0].mxu0
      %5285 = vmatprep.mubr.bf16.mxu0 0
      %5286 = vmatmul.mubr.bf16.gmra.mrb[0].mxu0 %v5192
      %v5287 = vpop.f32.mrb[0].mxu0
      %v5288 = vadd.f32 0.0, %v5287
      %v5289 = vpop.f32.mrb[0].mxu0
      %v5290 = vpop.f32.mrb[0].mxu0
      %v5291 = vadd.f32 0.0, %v5290
      %v5292 = vpop.f32.mrb[0].mxu0
      %5293 = vdwg.mxu0
      %v5294 = vld [vmem:[%s9] sm:$0x1]
      %v5296 = vlaneseq
      %v5297 = vshrl.u32 %v5296, 7
      %v5298 = vsub.s32 0, %v5297
      %v5299 = vrot.slane %v5294, %v5298
      %v5301 = vmul.f32 %v5232, %v5299
      %v5302 = vmul.f32 %v5235, %v5299
      %v5303 = vmul.f32 %v5240, %v5299
      %v5304 = vmul.f32 %v5243, %v5299
      %v5305 = vmul.f32 %v5248, %v5299
      %v5306 = vmul.f32 %v5251, %v5299
      %v5307 = vmul.f32 %v5256, %v5299
      %v5308 = vmul.f32 %v5259, %v5299
      %v5309 = vmul.f32 %v5264, %v5299
      %v5310 = vmul.f32 %v5267, %v5299
      %v5311 = vmul.f32 %v5272, %v5299
      %v5312 = vmul.f32 %v5275, %v5299
      %v5313 = vmul.f32 %v5280, %v5299
      %v5314 = vmul.f32 %v5283, %v5299
      %v5315 = vmul.f32 %v5288, %v5299
      %v5316 = vmul.f32 %v5291, %v5299
      %v5317 = vld [vmem:[%s10] sm:$0x1]
      %v5319 = vlaneseq
      %v5320 = vshrl.u32 %v5319, 7
      %v5321 = vsub.s32 0, %v5320
      %v5322 = vrot.slane %v5317, %v5321
      %v5324 = vadd.f32 %v5301, %v5322
      %v5325 = vadd.f32 %v5302, %v5322
      %v5326 = vadd.f32 %v5303, %v5322
      %v5327 = vadd.f32 %v5304, %v5322
      %v5328 = vadd.f32 %v5305, %v5322
      %v5329 = vadd.f32 %v5306, %v5322
      %v5330 = vadd.f32 %v5307, %v5322
      %v5331 = vadd.f32 %v5308, %v5322
      %v5332 = vadd.f32 %v5309, %v5322
      %v5333 = vadd.f32 %v5310, %v5322
      %v5334 = vadd.f32 %v5311, %v5322
      %v5335 = vadd.f32 %v5312, %v5322
      %v5336 = vadd.f32 %v5313, %v5322
      %v5337 = vadd.f32 %v5314, %v5322
      %v5338 = vadd.f32 %v5315, %v5322
      %v5339 = vadd.f32 %v5316, %v5322
      %v5340 = vadd.f32 %v5114, %v5324
      %v5341 = vadd.f32 %v5115, %v5325
      %v5342 = vadd.f32 %v5116, %v5326
      %v5343 = vadd.f32 %v5117, %v5327
      %v5344 = vadd.f32 %v5118, %v5328
      %v5345 = vadd.f32 %v5119, %v5329
      %v5346 = vadd.f32 %v5120, %v5330
      %v5347 = vadd.f32 %v5121, %v5331
      %v5348 = vadd.f32 %v5122, %v5332
      %v5349 = vadd.f32 %v5123, %v5333
      %v5350 = vadd.f32 %v5124, %v5334
      %v5351 = vadd.f32 %v5125, %v5335
      %v5352 = vadd.f32 %v5126, %v5336
      %v5353 = vadd.f32 %v5127, %v5337
      %v5354 = vadd.f32 %v5128, %v5338
      %v5355 = vadd.f32 %v5129, %v5339
      %v5356 = vpack.c.bf16 %v5340, %v5340
      %v5357 = vpack.c.bf16 %v5341, %v5341
      %v5358 = vpack.c.bf16 %v5342, %v5342
      %v5359 = vpack.c.bf16 %v5343, %v5343
      %v5360 = vpack.c.bf16 %v5344, %v5344
      %v5361 = vpack.c.bf16 %v5345, %v5345
      %v5362 = vpack.c.bf16 %v5346, %v5346
      %v5363 = vpack.c.bf16 %v5347, %v5347
      %v5364 = vpack.c.bf16 %v5348, %v5348
      %v5365 = vpack.c.bf16 %v5349, %v5349
      %v5366 = vpack.c.bf16 %v5350, %v5350
      %v5367 = vpack.c.bf16 %v5351, %v5351
      %v5368 = vpack.c.bf16 %v5352, %v5352
      %v5369 = vpack.c.bf16 %v5353, %v5353
      %v5370 = vpack.c.bf16 %v5354, %v5354
      %v5371 = vpack.c.bf16 %v5355, %v5355
      %5372 = vst [vmem:[%s393] sm:$0xf] %v5356
      %5373 = vst [vmem:[%s393 + $0x4] sm:$0xf] %v5357
      %5374 = vst [vmem:[%s393 + $0x8] sm:$0xf] %v5358
      %5375 = vst [vmem:[%s393 + $0xc] sm:$0xf] %v5359
      %5376 = vst [vmem:[%s393 + $0x10] sm:$0xf] %v5360
      %5377 = vst [vmem:[%s393 + $0x14] sm:$0xf] %v5361
      %5378 = vst [vmem:[%s393 + $0x18] sm:$0xf] %v5362
      %5379 = vst [vmem:[%s393 + $0x1c] sm:$0xf] %v5363
      %5380 = vst [vmem:[%s393 + $0x20] sm:$0xf] %v5364
      %5381 = vst [vmem:[%s393 + $0x24] sm:$0xf] %v5365
      %5382 = vst [vmem:[%s393 + $0x28] sm:$0xf] %v5366
      %5383 = vst [vmem:[%s393 + $0x2c] sm:$0xf] %v5367
      %5384 = vst [vmem:[%s393 + $0x30] sm:$0xf] %v5368
      %5385 = vst [vmem:[%s393 + $0x34] sm:$0xf] %v5369
      %5386 = vst [vmem:[%s393 + $0x38] sm:$0xf] %v5370
      %5387 = vst [vmem:[%s393 + $0x3c] sm:$0xf] %v5371
      %s5388 = smul.u32 2, %s22
      %p5389 = scmp.lt.s32.totalorder %s5388, 3
      %s5390 = scalar_select %p5389, %s5388, 3
      %s5391 = smul.addr %s5390, 8
      %s5392 = smul.addr %s5391, 4
      %s5393 = scalar_lea.vmem %s11, %s5392
      // Predicated region
      $region65: #{bottleneck_ir_forward.1} parent=63 // pred_check
        %p5394 = pneg %p276
      $region66: #{bottleneck_ir_forward.1} parent=63 // pred_check_branch
        %5396 = sbr.rel (%p5394) target = $region68
      $region67: #{bottleneck_ir_forward.1} parent=63 // pred_region
        %s5397 = smul.u32 2, %s22
      $region68: #{bottleneck_ir_forward.1} parent=63 // pred_fallthru
        _
    $region64: #{bottleneck_ir_forward.1} parent=5 // pred_fallthru
      _
    %p5398 = scmp.le.s32.totalorder 2, %s17
    // Predicated region
    $region69: #{bottleneck_ir_forward.1} parent=5 // pred_check
      %p5399 = pneg %p5398
    $region70: #{bottleneck_ir_forward.1} parent=5 // pred_check_branch
      %5401 = sbr.rel (%p5399) target = $region72
    $region71: #{bottleneck_ir_forward.1} parent=5 // pred_region
      %s5402 = ssub.s32 %s17, 2
      // Predicated region
      $region73: #{bottleneck_ir_forward.1} parent=71 // pred_check
        %p5403 = pneg %p282
      $region74: #{bottleneck_ir_forward.1} parent=71 // pred_check_branch
        %5405 = sbr.rel (%p5403) target = $region76
      $region75: #{bottleneck_ir_forward.1} parent=71 // pred_region
        %s5406 = smul.u32 2, %s23
        %p5407 = scmp.lt.s32.totalorder %s5406, 3
        %s5408 = scalar_select %p5407, %s5406, 3
        %s5409 = smul.addr %s5408, 8
        %s5410 = smul.addr %s5409, 4
        %s5411 = scalar_lea.vmem %s11, %s5410
      $region76: #{bottleneck_ir_forward.1} parent=71 // pred_fallthru
        _
    $region72: #{bottleneck_ir_forward.1} parent=5 // pred_fallthru
      _
  $region6: #{bottleneck_ir_forward.1} parent=0 // loop_footer
    %s21 = sadd.s32 1, %s17
  $region7: #{bottleneck_ir_forward.1} parent=0 // loop_footer_branch
    %16 = sbr.rel target = $region3
  $region8: #{bottleneck_ir_forward.1} parent=0 // loop_exit
    _

</llo_original>
